<compile_context>
chip_gen: v6e
topology: v6e:2x2x1
jax: 0.10.0
libtpu: 0.0.40
codegen_flags: <defaults>
</compile_context>

<pallas_src>
import functools

import numpy as np
import jax
import jax.numpy as jnp
from jax.experimental import pallas as pl
from jax.experimental.pallas import tpu as pltpu


# --------------------------------------------------------------------------
# Fused kernel
# --------------------------------------------------------------------------
def _gcn_fused_kernel(a_ref, wk_ref, b_ref, x_ref, o_ref, *,
                      order, lsub, compute_dtype):
    """Fused graph diffusion + 1x1 conv + bias + ReLU for one (n, L-tile) block.

    a_ref : (S, V, V)                    adjacency stack (VMEM resident)
    wk_ref: (P, Cout*lsub, C*lsub)       W_p (x) I_lsub, P = S*order + 1 (resident)
    b_ref : (Cout, 1, 1) float32         conv bias (resident)
    x_ref : (1, C, V, tile_l)            native NCVL input block
    o_ref : (1, Cout, V, tile_l)         native NCVL output block
    """
    s_count = a_ref.shape[0]
    _, c_in, v_dim, tile_l = x_ref.shape
    c_out = wk_ref.shape[1] // lsub
    assert wk_ref.shape[0] == 1 + s_count * order
    n_sub = tile_l // lsub

    for j in range(n_sub):                      # static unroll over L sub-chunks
        lo, hi = j * lsub, (j + 1) * lsub
        # (C, V, lsub) -> (C, lsub, V): nodes onto the lane axis (XLU minor swap),
        # then a free leading-dim fold to the tall (C*lsub, V) matmul operand.
        xt = jnp.swapaxes(x_ref[0, :, :, lo:hi], 1, 2)
        tall = xt.reshape(c_in * lsub, v_dim).astype(compute_dtype)

        # identity piece -> channel-mix accumulation (f32 accumulator).
        o_acc = jnp.dot(wk_ref[0], tall, preferred_element_type=jnp.float32)

        # k-outer / s-inner: the s_count hop-k diffusion matmuls are mutually
        # independent, hiding the hop-(k-1) -> hop-k MXU dependency.
        cur = [tall] * s_count
        for k in range(order):
            nxt = [jnp.dot(cur[s], a_ref[s],
                           preferred_element_type=jnp.float32).astype(compute_dtype)
                   for s in range(s_count)]
            for s in range(s_count):
                p = 1 + s * order + k
                o_acc = o_acc + jnp.dot(wk_ref[p], nxt[s],
                                        preferred_element_type=jnp.float32)
            cur = nxt

        # bias + ReLU, then swap back to the native (Cout, V, lsub) layout.
        # TODO(synk): F.dropout between the conv and ReLU is the identity in eval mode.
        o3 = o_acc.reshape(c_out, lsub, v_dim) + b_ref[...]
        o3 = jnp.maximum(o3, 0.0)
        o_ref[0, :, :, lo:hi] = jnp.swapaxes(o3, 1, 2).astype(o_ref.dtype)


# --------------------------------------------------------------------------
# Tiling helpers
# --------------------------------------------------------------------------
def _round_up(x, m):
    return (x + m - 1) // m * m


def _pick_tile_l(L):
    """Last-dim block must be a multiple of 128 or the full extent."""
    if L % 128 == 0:
        for t in (512, 256, 128):
            if L % t == 0 and L > t:
                return t
    return L


def _pick_lsub(tile_l, cap=8):
    """Sub-chunk of the time axis processed per matmul group.

    Small lsub keeps the W (x) I_lsub MLP overhead (~lsub * the ideal MLP flops,
    a small fraction of the diffusion flops) negligible; if tile_l has no small
    divisor (e.g. prime 13) a single big chunk beats many tiny-M matmuls.
    """
    best = 1
    for d in range(1, min(cap, tile_l) + 1):
        if tile_l % d == 0:
            best = d
    return tile_l if (best == 1 and tile_l > cap) else best


def _vmem_block_bytes(shape, itemsize):
    """Padded VMEM footprint of one buffer (second-minor -> 8, minor -> 128)."""
    s = list(shape)
    s[-1] = _round_up(s[-1], 128)
    if len(s) >= 2:
        s[-2] = _round_up(s[-2], 8)
    return int(np.prod(s)) * itemsize


# --------------------------------------------------------------------------
# Wrapper
# --------------------------------------------------------------------------
def gcn_forward(x, supports, w_mlp, b_mlp, *, order=2, compute_dtype=None,
                tile_l=None, lsub=None, interpret=False):
    """x: (N, C, V, L); supports: list of (V, V); w_mlp: (Cout, (order*len+1)*C).

    Matches gcn.forward in eval mode (dropout = identity).  compute_dtype=bf16
    casts the MXU operands in-kernel (x/O stay in their HBM dtype; the chained
    order-2 input is rounded to bf16, a documented inference-mode divergence).
    """
    N, C, V, L = x.shape
    S = len(supports)
    P = S * order + 1
    Cout, cin_total = w_mlp.shape
    assert cin_total == P * C, "w_mlp must be (c_out, (order*support_len+1)*c_in)"
    # TODO(synk): self.mlp_1 (the support_len==2 branch) is just this same path with
    # a (order*2+1)*c_in weight; pass that weight + 2 supports to use it.
    out_dtype = x.dtype
    cdt = np.dtype(out_dtype if compute_dtype is None else compute_dtype)

    if tile_l is None:
        tile_l = _pick_tile_l(L)
    assert L % tile_l == 0 and (tile_l == L or tile_l % 128 == 0), \
        "tile_l must divide L and be a multiple of 128 or the full extent"
    if lsub is None:
        lsub = _pick_lsub(tile_l)
    assert tile_l % lsub == 0, "lsub must divide tile_l"

    # Small resident operands (adjacency stack, kron'd MLP weight, bias).
    a_stack = jnp.stack(supports).astype(cdt)                     # (S, V, V)
    w3 = w_mlp.reshape(Cout, P, C).transpose(1, 0, 2)             # (P, Cout, C)
    eye = jnp.eye(lsub, dtype=w_mlp.dtype)
    # wk[p, o*lsub + r, c*lsub + t] = W[o, p*C + c] * (r == t)
    wk = jnp.einsum('poc,rt->porct', w3, eye).reshape(
        P, Cout * lsub, C * lsub).astype(cdt)
    b_arr = jnp.reshape(b_mlp, (Cout, 1, 1)).astype(jnp.float32)

    # Generation-aware VMEM bound: double-buffered x/O blocks + resident A/W/b +
    # f32 matmul temporaries.  This is a compiler check bound, not an allocation;
    # for realistic GCN shapes it stays well under v7x's 64 MiB physical VMEM.
    isz = cdt.itemsize
    est = (2 * _vmem_block_bytes((1, C, V, tile_l), np.dtype(out_dtype).itemsize)
           + 2 * _vmem_block_bytes((1, Cout, V, tile_l), np.dtype(out_dtype).itemsize)
           + 2 * _vmem_block_bytes((S, V, V), isz)
           + 2 * _vmem_block_bytes((P, Cout * lsub, C * lsub), isz)
           + _vmem_block_bytes((Cout, 1, 1), 4)
           + (S + 3) * _vmem_block_bytes((C * lsub, V), 4)
           + 2 * _vmem_block_bytes((Cout * lsub, V), 4))
    vmem_limit = int(min(max(int(1.5 * est) + (4 << 20), 32 << 20), 96 << 20))

    kernel = functools.partial(_gcn_fused_kernel, order=order, lsub=lsub,
                               compute_dtype=cdt)
    grid = (N, L // tile_l)

    out = pl.pallas_call(
        kernel,
        grid=grid,
        in_specs=[
            pl.BlockSpec((S, V, V), lambda n, lt: (0, 0, 0)),                 # A (resident)
            pl.BlockSpec((P, Cout * lsub, C * lsub), lambda n, lt: (0, 0, 0)),# W (x) I
            pl.BlockSpec((Cout, 1, 1), lambda n, lt: (0, 0, 0)),              # bias
            pl.BlockSpec((1, C, V, tile_l), lambda n, lt: (n, 0, 0, lt)),     # x block
        ],
        out_specs=pl.BlockSpec((1, Cout, V, tile_l), lambda n, lt: (n, 0, 0, lt)),
        out_shape=jax.ShapeDtypeStruct((N, Cout, V, L), out_dtype),
        compiler_params=pltpu.CompilerParams(
            dimension_semantics=("parallel", "parallel"),
            vmem_limit_bytes=vmem_limit),
        interpret=interpret,
    )(a_stack, wk, b_arr, x)
    return out


# --------------------------------------------------------------------------
# Pure-JAX reference (replicates the PyTorch forward in eval mode)
# --------------------------------------------------------------------------
def gcn_reference(x, supports, w_mlp, b_mlp, order=2):
    out = [x]
    for a in supports:
        x1 = jnp.einsum('ncvl,vw->ncwl', x, a)
        out.append(x1)
        for _ in range(2, order + 1):
            x2 = jnp.einsum('ncvl,vw->ncwl', x1, a)
            out.append(x2)
            x1 = x2
    h = jnp.concatenate(out, axis=1)                                  # (N, 7C, V, L)
    o = jnp.einsum('oc,ncvl->novl', w_mlp, h) + b_mlp.reshape(1, -1, 1, 1)
    return jnp.maximum(o, 0.0)


if __name__ == "__main__":
    # Small, module-consistent shapes: batch=2, c_in=8, nodes V=16, time L=16.
    N, C_IN, V, L = 2, 8, 16, 16
    C_OUT = 8
    ORDER = 2
    SUPPORT_LEN = 3
    C_IN_TOTAL = (ORDER * SUPPORT_LEN + 1) * C_IN        # 7*c_in -> self.mlp path

    key = jax.random.PRNGKey(0)
    kx, ka0, ka1, ka2, kw, kb = jax.random.split(key, 6)

    x = jax.random.normal(kx, (N, C_IN, V, L), dtype=jnp.float32)
    supports = [
        jax.random.uniform(ka0, (V, V), dtype=jnp.float32) / V,
        jax.random.uniform(ka1, (V, V), dtype=jnp.float32) / V,
        jax.random.uniform(ka2, (V, V), dtype=jnp.float32) / V,
    ]
    # 1x1 Conv2d params (weight squeezed from (c_out, 7*c_in, 1, 1)).
    w_mlp = (jax.random.normal(kw, (C_OUT, C_IN_TOTAL), dtype=jnp.float32)
             * (1.0 / jnp.sqrt(C_IN_TOTAL)))
    b_mlp = jax.random.normal(kb, (C_OUT, 1), dtype=jnp.float32) * 0.1

    ref = gcn_reference(x, supports, w_mlp, b_mlp, order=ORDER)

    # f32 path, default tiling (tile_l = L = 16, lsub = 8 -> two L sub-chunks).
    out = gcn_forward(x, supports, w_mlp, b_mlp)
    out = jax.block_until_ready(out)
    assert out.shape == (N, C_OUT, V, L)
    assert jnp.allclose(out, ref, rtol=1e-4, atol=2e-4), "f32 Pallas mismatch vs reference"

    # bf16 compute path, single L chunk (lsub = tile_l) to exercise that branch.
    out_bf16 = gcn_forward(x, supports, w_mlp, b_mlp,
                           compute_dtype=jnp.bfloat16, lsub=16)
    out_bf16 = jax.block_until_ready(out_bf16)
    assert out_bf16.shape == (N, C_OUT, V, L)
    assert jnp.allclose(out_bf16.astype(jnp.float32), ref, rtol=5e-2, atol=5e-2), \
        "bf16 Pallas mismatch vs reference"

    print("KERNEL_OK")
</pallas_src>

<mosaic_0001>
module attributes {stable_mosaic.version = 11 : i64} {
  func.func @_gcn_fused_kernel(%arg0: i32, %arg1: i32, %arg2: memref<3x16x16xf32, #tpu.memory_space<vmem>>, %arg3: memref<7x64x64xf32, #tpu.memory_space<vmem>>, %arg4: memref<8x1x1xf32, #tpu.memory_space<vmem>>, %arg5: memref<1x8x16x16xf32, #tpu.memory_space<vmem>>, %arg6: memref<1x8x16x16xf32, #tpu.memory_space<vmem>>) attributes {dimension_semantics = [#tpu.dimension_semantics<parallel>, #tpu.dimension_semantics<parallel>], iteration_bounds = array<i64: 2, 1>, scalar_prefetch = 0 : i64, scratch_operands = 0 : i64, tpu.core_type = #tpu.core_type<tc>, window_params = [{pipeline_mode = #tpu.pipeline_mode<synchronous>, transform_indices = @transform_0, window_bounds = array<i64: 3, 16, 16>}, {pipeline_mode = #tpu.pipeline_mode<synchronous>, transform_indices = @transform_1, window_bounds = array<i64: 7, 64, 64>}, {pipeline_mode = #tpu.pipeline_mode<synchronous>, transform_indices = @transform_2, window_bounds = array<i64: 8, 1, 1>}, {transform_indices = @transform_3, window_bounds = array<i64: 1, 8, 16, 16>}, {transform_indices = @transform_4, window_bounds = array<i64: 1, 8, 16, 16>}]} {
    %c0 = arith.constant 0 : index
    %c0_0 = arith.constant 0 : index
    %c0_1 = arith.constant 0 : index
    %c0_2 = arith.constant 0 : index
    %0 = vector.load %arg5[%c0, %c0_0, %c0_1, %c0_2] : memref<1x8x16x16xf32, #tpu.memory_space<vmem>>, vector<1x8x16x8xf32>
    %1 = vector.shape_cast %0 : vector<1x8x16x8xf32> to vector<8x16x8xf32>
    %2 = tpu.transpose %1, [0, 2, 1] : vector<8x16x8xf32> -> vector<8x8x16xf32>
    %3 = vector.shape_cast %2 : vector<8x8x16xf32> to vector<64x16xf32>
    %c0_3 = arith.constant 0 : index
    %c0_4 = arith.constant 0 : index
    %c0_5 = arith.constant 0 : index
    %4 = vector.load %arg3[%c0_3, %c0_4, %c0_5] : memref<7x64x64xf32, #tpu.memory_space<vmem>>, vector<1x64x64xf32>
    %5 = vector.shape_cast %4 : vector<1x64x64xf32> to vector<64x64xf32>
    %cst = arith.constant dense<0.000000e+00> : vector<64x16xf32>
    %6 = tpu.matmul %5, %3, %cst {dimension_numbers = #tpu.dot_dimension_numbers<[1], [0], [0], [1], [0, 0, 1, 1], [], []>} : vector<64x64xf32>, vector<64x16xf32>, vector<64x16xf32> -> vector<64x16xf32>
    %c0_6 = arith.constant 0 : index
    %c0_7 = arith.constant 0 : index
    %c0_8 = arith.constant 0 : index
    %7 = vector.load %arg2[%c0_6, %c0_7, %c0_8] : memref<3x16x16xf32, #tpu.memory_space<vmem>>, vector<1x16x16xf32>
    %8 = vector.shape_cast %7 : vector<1x16x16xf32> to vector<16x16xf32>
    %cst_9 = arith.constant dense<0.000000e+00> : vector<64x16xf32>
    %9 = tpu.matmul %3, %8, %cst_9 {dimension_numbers = #tpu.dot_dimension_numbers<[1], [0], [0], [1], [0, 0, 1, 1], [], []>} : vector<64x16xf32>, vector<16x16xf32>, vector<64x16xf32> -> vector<64x16xf32>
    %c1 = arith.constant 1 : index
    %c0_10 = arith.constant 0 : index
    %c0_11 = arith.constant 0 : index
    %10 = vector.load %arg2[%c1, %c0_10, %c0_11] : memref<3x16x16xf32, #tpu.memory_space<vmem>>, vector<1x16x16xf32>
    %11 = vector.shape_cast %10 : vector<1x16x16xf32> to vector<16x16xf32>
    %cst_12 = arith.constant dense<0.000000e+00> : vector<64x16xf32>
    %12 = tpu.matmul %3, %11, %cst_12 {dimension_numbers = #tpu.dot_dimension_numbers<[1], [0], [0], [1], [0, 0, 1, 1], [], []>} : vector<64x16xf32>, vector<16x16xf32>, vector<64x16xf32> -> vector<64x16xf32>
    %c2 = arith.constant 2 : index
    %c0_13 = arith.constant 0 : index
    %c0_14 = arith.constant 0 : index
    %13 = vector.load %arg2[%c2, %c0_13, %c0_14] : memref<3x16x16xf32, #tpu.memory_space<vmem>>, vector<1x16x16xf32>
    %14 = vector.shape_cast %13 : vector<1x16x16xf32> to vector<16x16xf32>
    %cst_15 = arith.constant dense<0.000000e+00> : vector<64x16xf32>
    %15 = tpu.matmul %3, %14, %cst_15 {dimension_numbers = #tpu.dot_dimension_numbers<[1], [0], [0], [1], [0, 0, 1, 1], [], []>} : vector<64x16xf32>, vector<16x16xf32>, vector<64x16xf32> -> vector<64x16xf32>
    %c1_16 = arith.constant 1 : index
    %c0_17 = arith.constant 0 : index
    %c0_18 = arith.constant 0 : index
    %16 = vector.load %arg3[%c1_16, %c0_17, %c0_18] : memref<7x64x64xf32, #tpu.memory_space<vmem>>, vector<1x64x64xf32>
    %17 = vector.shape_cast %16 : vector<1x64x64xf32> to vector<64x64xf32>
    %cst_19 = arith.constant dense<0.000000e+00> : vector<64x16xf32>
    %18 = tpu.matmul %17, %9, %cst_19 {dimension_numbers = #tpu.dot_dimension_numbers<[1], [0], [0], [1], [0, 0, 1, 1], [], []>} : vector<64x64xf32>, vector<64x16xf32>, vector<64x16xf32> -> vector<64x16xf32>
    %19 = arith.addf %6, %18 : vector<64x16xf32>
    %c3 = arith.constant 3 : index
    %c0_20 = arith.constant 0 : index
    %c0_21 = arith.constant 0 : index
    %20 = vector.load %arg3[%c3, %c0_20, %c0_21] : memref<7x64x64xf32, #tpu.memory_space<vmem>>, vector<1x64x64xf32>
    %21 = vector.shape_cast %20 : vector<1x64x64xf32> to vector<64x64xf32>
    %cst_22 = arith.constant dense<0.000000e+00> : vector<64x16xf32>
    %22 = tpu.matmul %21, %12, %cst_22 {dimension_numbers = #tpu.dot_dimension_numbers<[1], [0], [0], [1], [0, 0, 1, 1], [], []>} : vector<64x64xf32>, vector<64x16xf32>, vector<64x16xf32> -> vector<64x16xf32>
    %23 = arith.addf %19, %22 : vector<64x16xf32>
    %c5 = arith.constant 5 : index
    %c0_23 = arith.constant 0 : index
    %c0_24 = arith.constant 0 : index
    %24 = vector.load %arg3[%c5, %c0_23, %c0_24] : memref<7x64x64xf32, #tpu.memory_space<vmem>>, vector<1x64x64xf32>
    %25 = vector.shape_cast %24 : vector<1x64x64xf32> to vector<64x64xf32>
    %cst_25 = arith.constant dense<0.000000e+00> : vector<64x16xf32>
    %26 = tpu.matmul %25, %15, %cst_25 {dimension_numbers = #tpu.dot_dimension_numbers<[1], [0], [0], [1], [0, 0, 1, 1], [], []>} : vector<64x64xf32>, vector<64x16xf32>, vector<64x16xf32> -> vector<64x16xf32>
    %27 = arith.addf %23, %26 : vector<64x16xf32>
    %c0_26 = arith.constant 0 : index
    %c0_27 = arith.constant 0 : index
    %c0_28 = arith.constant 0 : index
    %28 = vector.load %arg2[%c0_26, %c0_27, %c0_28] : memref<3x16x16xf32, #tpu.memory_space<vmem>>, vector<1x16x16xf32>
    %29 = vector.shape_cast %28 : vector<1x16x16xf32> to vector<16x16xf32>
    %cst_29 = arith.constant dense<0.000000e+00> : vector<64x16xf32>
    %30 = tpu.matmul %9, %29, %cst_29 {dimension_numbers = #tpu.dot_dimension_numbers<[1], [0], [0], [1], [0, 0, 1, 1], [], []>} : vector<64x16xf32>, vector<16x16xf32>, vector<64x16xf32> -> vector<64x16xf32>
    %c1_30 = arith.constant 1 : index
    %c0_31 = arith.constant 0 : index
    %c0_32 = arith.constant 0 : index
    %31 = vector.load %arg2[%c1_30, %c0_31, %c0_32] : memref<3x16x16xf32, #tpu.memory_space<vmem>>, vector<1x16x16xf32>
    %32 = vector.shape_cast %31 : vector<1x16x16xf32> to vector<16x16xf32>
    %cst_33 = arith.constant dense<0.000000e+00> : vector<64x16xf32>
    %33 = tpu.matmul %12, %32, %cst_33 {dimension_numbers = #tpu.dot_dimension_numbers<[1], [0], [0], [1], [0, 0, 1, 1], [], []>} : vector<64x16xf32>, vector<16x16xf32>, vector<64x16xf32> -> vector<64x16xf32>
    %c2_34 = arith.constant 2 : index
    %c0_35 = arith.constant 0 : index
    %c0_36 = arith.constant 0 : index
    %34 = vector.load %arg2[%c2_34, %c0_35, %c0_36] : memref<3x16x16xf32, #tpu.memory_space<vmem>>, vector<1x16x16xf32>
    %35 = vector.shape_cast %34 : vector<1x16x16xf32> to vector<16x16xf32>
    %cst_37 = arith.constant dense<0.000000e+00> : vector<64x16xf32>
    %36 = tpu.matmul %15, %35, %cst_37 {dimension_numbers = #tpu.dot_dimension_numbers<[1], [0], [0], [1], [0, 0, 1, 1], [], []>} : vector<64x16xf32>, vector<16x16xf32>, vector<64x16xf32> -> vector<64x16xf32>
    %c2_38 = arith.constant 2 : index
    %c0_39 = arith.constant 0 : index
    %c0_40 = arith.constant 0 : index
    %37 = vector.load %arg3[%c2_38, %c0_39, %c0_40] : memref<7x64x64xf32, #tpu.memory_space<vmem>>, vector<1x64x64xf32>
    %38 = vector.shape_cast %37 : vector<1x64x64xf32> to vector<64x64xf32>
    %cst_41 = arith.constant dense<0.000000e+00> : vector<64x16xf32>
    %39 = tpu.matmul %38, %30, %cst_41 {dimension_numbers = #tpu.dot_dimension_numbers<[1], [0], [0], [1], [0, 0, 1, 1], [], []>} : vector<64x64xf32>, vector<64x16xf32>, vector<64x16xf32> -> vector<64x16xf32>
    %40 = arith.addf %27, %39 : vector<64x16xf32>
    %c4 = arith.constant 4 : index
    %c0_42 = arith.constant 0 : index
    %c0_43 = arith.constant 0 : index
    %41 = vector.load %arg3[%c4, %c0_42, %c0_43] : memref<7x64x64xf32, #tpu.memory_space<vmem>>, vector<1x64x64xf32>
    %42 = vector.shape_cast %41 : vector<1x64x64xf32> to vector<64x64xf32>
    %cst_44 = arith.constant dense<0.000000e+00> : vector<64x16xf32>
    %43 = tpu.matmul %42, %33, %cst_44 {dimension_numbers = #tpu.dot_dimension_numbers<[1], [0], [0], [1], [0, 0, 1, 1], [], []>} : vector<64x64xf32>, vector<64x16xf32>, vector<64x16xf32> -> vector<64x16xf32>
    %44 = arith.addf %40, %43 : vector<64x16xf32>
    %c6 = arith.constant 6 : index
    %c0_45 = arith.constant 0 : index
    %c0_46 = arith.constant 0 : index
    %45 = vector.load %arg3[%c6, %c0_45, %c0_46] : memref<7x64x64xf32, #tpu.memory_space<vmem>>, vector<1x64x64xf32>
    %46 = vector.shape_cast %45 : vector<1x64x64xf32> to vector<64x64xf32>
    %cst_47 = arith.constant dense<0.000000e+00> : vector<64x16xf32>
    %47 = tpu.matmul %46, %36, %cst_47 {dimension_numbers = #tpu.dot_dimension_numbers<[1], [0], [0], [1], [0, 0, 1, 1], [], []>} : vector<64x64xf32>, vector<64x16xf32>, vector<64x16xf32> -> vector<64x16xf32>
    %48 = arith.addf %44, %47 : vector<64x16xf32>
    %49 = vector.shape_cast %48 : vector<64x16xf32> to vector<8x8x16xf32>
    %c0_48 = arith.constant 0 : index
    %c0_49 = arith.constant 0 : index
    %c0_50 = arith.constant 0 : index
    %50 = vector.load %arg4[%c0_48, %c0_49, %c0_50] : memref<8x1x1xf32, #tpu.memory_space<vmem>>, vector<8x1x1xf32>
    %51 = vector.broadcast %50 : vector<8x1x1xf32> to vector<8x8x16xf32>
    %52 = arith.addf %49, %51 : vector<8x8x16xf32>
    %cst_51 = arith.constant 0.000000e+00 : f32
    %53 = vector.broadcast %cst_51 : f32 to vector<8x8x16xf32>
    %54 = arith.maximumf %52, %53 : vector<8x8x16xf32>
    %55 = tpu.transpose %54, [0, 2, 1] : vector<8x8x16xf32> -> vector<8x16x8xf32>
    %c0_52 = arith.constant 0 : index
    %c0_53 = arith.constant 0 : index
    %c0_54 = arith.constant 0 : index
    %c0_55 = arith.constant 0 : index
    %56 = vector.load %arg6[%c0_52, %c0_53, %c0_54, %c0_55] : memref<1x8x16x16xf32, #tpu.memory_space<vmem>>, vector<1x8x16x8xf32>
    %57 = vector.shape_cast %56 : vector<1x8x16x8xf32> to vector<8x16x8xf32>
    %58 = vector.shape_cast %55 : vector<8x16x8xf32> to vector<1x8x16x8xf32>
    tpu.vector_store %arg6[%c0_52, %c0_53, %c0_54, %c0_55], %58 {strides = array<i32>} : memref<1x8x16x16xf32, #tpu.memory_space<vmem>>, vector<1x8x16x8xf32>,
    %c0_56 = arith.constant 0 : index
    %c0_57 = arith.constant 0 : index
    %c0_58 = arith.constant 0 : index
    %c8 = arith.constant 8 : index
    %59 = vector.load %arg5[%c0_56, %c0_57, %c0_58, %c8] : memref<1x8x16x16xf32, #tpu.memory_space<vmem>>, vector<1x8x16x8xf32>
    %60 = vector.shape_cast %59 : vector<1x8x16x8xf32> to vector<8x16x8xf32>
    %61 = tpu.transpose %60, [0, 2, 1] : vector<8x16x8xf32> -> vector<8x8x16xf32>
    %62 = vector.shape_cast %61 : vector<8x8x16xf32> to vector<64x16xf32>
    %c0_59 = arith.constant 0 : index
    %c0_60 = arith.constant 0 : index
    %c0_61 = arith.constant 0 : index
    %63 = vector.load %arg3[%c0_59, %c0_60, %c0_61] : memref<7x64x64xf32, #tpu.memory_space<vmem>>, vector<1x64x64xf32>
    %64 = vector.shape_cast %63 : vector<1x64x64xf32> to vector<64x64xf32>
    %cst_62 = arith.constant dense<0.000000e+00> : vector<64x16xf32>
    %65 = tpu.matmul %64, %62, %cst_62 {dimension_numbers = #tpu.dot_dimension_numbers<[1], [0], [0], [1], [0, 0, 1, 1], [], []>} : vector<64x64xf32>, vector<64x16xf32>, vector<64x16xf32> -> vector<64x16xf32>
    %c0_63 = arith.constant 0 : index
    %c0_64 = arith.constant 0 : index
    %c0_65 = arith.constant 0 : index
    %66 = vector.load %arg2[%c0_63, %c0_64, %c0_65] : memref<3x16x16xf32, #tpu.memory_space<vmem>>, vector<1x16x16xf32>
    %67 = vector.shape_cast %66 : vector<1x16x16xf32> to vector<16x16xf32>
    %cst_66 = arith.constant dense<0.000000e+00> : vector<64x16xf32>
    %68 = tpu.matmul %62, %67, %cst_66 {dimension_numbers = #tpu.dot_dimension_numbers<[1], [0], [0], [1], [0, 0, 1, 1], [], []>} : vector<64x16xf32>, vector<16x16xf32>, vector<64x16xf32> -> vector<64x16xf32>
    %c1_67 = arith.constant 1 : index
    %c0_68 = arith.constant 0 : index
    %c0_69 = arith.constant 0 : index
    %69 = vector.load %arg2[%c1_67, %c0_68, %c0_69] : memref<3x16x16xf32, #tpu.memory_space<vmem>>, vector<1x16x16xf32>
    %70 = vector.shape_cast %69 : vector<1x16x16xf32> to vector<16x16xf32>
    %cst_70 = arith.constant dense<0.000000e+00> : vector<64x16xf32>
    %71 = tpu.matmul %62, %70, %cst_70 {dimension_numbers = #tpu.dot_dimension_numbers<[1], [0], [0], [1], [0, 0, 1, 1], [], []>} : vector<64x16xf32>, vector<16x16xf32>, vector<64x16xf32> -> vector<64x16xf32>
    %c2_71 = arith.constant 2 : index
    %c0_72 = arith.constant 0 : index
    %c0_73 = arith.constant 0 : index
    %72 = vector.load %arg2[%c2_71, %c0_72, %c0_73] : memref<3x16x16xf32, #tpu.memory_space<vmem>>, vector<1x16x16xf32>
    %73 = vector.shape_cast %72 : vector<1x16x16xf32> to vector<16x16xf32>
    %cst_74 = arith.constant dense<0.000000e+00> : vector<64x16xf32>
    %74 = tpu.matmul %62, %73, %cst_74 {dimension_numbers = #tpu.dot_dimension_numbers<[1], [0], [0], [1], [0, 0, 1, 1], [], []>} : vector<64x16xf32>, vector<16x16xf32>, vector<64x16xf32> -> vector<64x16xf32>
    %c1_75 = arith.constant 1 : index
    %c0_76 = arith.constant 0 : index
    %c0_77 = arith.constant 0 : index
    %75 = vector.load %arg3[%c1_75, %c0_76, %c0_77] : memref<7x64x64xf32, #tpu.memory_space<vmem>>, vector<1x64x64xf32>
    %76 = vector.shape_cast %75 : vector<1x64x64xf32> to vector<64x64xf32>
    %cst_78 = arith.constant dense<0.000000e+00> : vector<64x16xf32>
    %77 = tpu.matmul %76, %68, %cst_78 {dimension_numbers = #tpu.dot_dimension_numbers<[1], [0], [0], [1], [0, 0, 1, 1], [], []>} : vector<64x64xf32>, vector<64x16xf32>, vector<64x16xf32> -> vector<64x16xf32>
    %78 = arith.addf %65, %77 : vector<64x16xf32>
    %c3_79 = arith.constant 3 : index
    %c0_80 = arith.constant 0 : index
    %c0_81 = arith.constant 0 : index
    %79 = vector.load %arg3[%c3_79, %c0_80, %c0_81] : memref<7x64x64xf32, #tpu.memory_space<vmem>>, vector<1x64x64xf32>
    %80 = vector.shape_cast %79 : vector<1x64x64xf32> to vector<64x64xf32>
    %cst_82 = arith.constant dense<0.000000e+00> : vector<64x16xf32>
    %81 = tpu.matmul %80, %71, %cst_82 {dimension_numbers = #tpu.dot_dimension_numbers<[1], [0], [0], [1], [0, 0, 1, 1], [], []>} : vector<64x64xf32>, vector<64x16xf32>, vector<64x16xf32> -> vector<64x16xf32>
    %82 = arith.addf %78, %81 : vector<64x16xf32>
    %c5_83 = arith.constant 5 : index
    %c0_84 = arith.constant 0 : index
    %c0_85 = arith.constant 0 : index
    %83 = vector.load %arg3[%c5_83, %c0_84, %c0_85] : memref<7x64x64xf32, #tpu.memory_space<vmem>>, vector<1x64x64xf32>
    %84 = vector.shape_cast %83 : vector<1x64x64xf32> to vector<64x64xf32>
    %cst_86 = arith.constant dense<0.000000e+00> : vector<64x16xf32>
    %85 = tpu.matmul %84, %74, %cst_86 {dimension_numbers = #tpu.dot_dimension_numbers<[1], [0], [0], [1], [0, 0, 1, 1], [], []>} : vector<64x64xf32>, vector<64x16xf32>, vector<64x16xf32> -> vector<64x16xf32>
    %86 = arith.addf %82, %85 : vector<64x16xf32>
    %c0_87 = arith.constant 0 : index
    %c0_88 = arith.constant 0 : index
    %c0_89 = arith.constant 0 : index
    %87 = vector.load %arg2[%c0_87, %c0_88, %c0_89] : memref<3x16x16xf32, #tpu.memory_space<vmem>>, vector<1x16x16xf32>
    %88 = vector.shape_cast %87 : vector<1x16x16xf32> to vector<16x16xf32>
    %cst_90 = arith.constant dense<0.000000e+00> : vector<64x16xf32>
    %89 = tpu.matmul %68, %88, %cst_90 {dimension_numbers = #tpu.dot_dimension_numbers<[1], [0], [0], [1], [0, 0, 1, 1], [], []>} : vector<64x16xf32>, vector<16x16xf32>, vector<64x16xf32> -> vector<64x16xf32>
    %c1_91 = arith.constant 1 : index
    %c0_92 = arith.constant 0 : index
    %c0_93 = arith.constant 0 : index
    %90 = vector.load %arg2[%c1_91, %c0_92, %c0_93] : memref<3x16x16xf32, #tpu.memory_space<vmem>>, vector<1x16x16xf32>
    %91 = vector.shape_cast %90 : vector<1x16x16xf32> to vector<16x16xf32>
    %cst_94 = arith.constant dense<0.000000e+00> : vector<64x16xf32>
    %92 = tpu.matmul %71, %91, %cst_94 {dimension_numbers = #tpu.dot_dimension_numbers<[1], [0], [0], [1], [0, 0, 1, 1], [], []>} : vector<64x16xf32>, vector<16x16xf32>, vector<64x16xf32> -> vector<64x16xf32>
    %c2_95 = arith.constant 2 : index
    %c0_96 = arith.constant 0 : index
    %c0_97 = arith.constant 0 : index
    %93 = vector.load %arg2[%c2_95, %c0_96, %c0_97] : memref<3x16x16xf32, #tpu.memory_space<vmem>>, vector<1x16x16xf32>
    %94 = vector.shape_cast %93 : vector<1x16x16xf32> to vector<16x16xf32>
    %cst_98 = arith.constant dense<0.000000e+00> : vector<64x16xf32>
    %95 = tpu.matmul %74, %94, %cst_98 {dimension_numbers = #tpu.dot_dimension_numbers<[1], [0], [0], [1], [0, 0, 1, 1], [], []>} : vector<64x16xf32>, vector<16x16xf32>, vector<64x16xf32> -> vector<64x16xf32>
    %c2_99 = arith.constant 2 : index
    %c0_100 = arith.constant 0 : index
    %c0_101 = arith.constant 0 : index
    %96 = vector.load %arg3[%c2_99, %c0_100, %c0_101] : memref<7x64x64xf32, #tpu.memory_space<vmem>>, vector<1x64x64xf32>
    %97 = vector.shape_cast %96 : vector<1x64x64xf32> to vector<64x64xf32>
    %cst_102 = arith.constant dense<0.000000e+00> : vector<64x16xf32>
    %98 = tpu.matmul %97, %89, %cst_102 {dimension_numbers = #tpu.dot_dimension_numbers<[1], [0], [0], [1], [0, 0, 1, 1], [], []>} : vector<64x64xf32>, vector<64x16xf32>, vector<64x16xf32> -> vector<64x16xf32>
    %99 = arith.addf %86, %98 : vector<64x16xf32>
    %c4_103 = arith.constant 4 : index
    %c0_104 = arith.constant 0 : index
    %c0_105 = arith.constant 0 : index
    %100 = vector.load %arg3[%c4_103, %c0_104, %c0_105] : memref<7x64x64xf32, #tpu.memory_space<vmem>>, vector<1x64x64xf32>
    %101 = vector.shape_cast %100 : vector<1x64x64xf32> to vector<64x64xf32>
    %cst_106 = arith.constant dense<0.000000e+00> : vector<64x16xf32>
    %102 = tpu.matmul %101, %92, %cst_106 {dimension_numbers = #tpu.dot_dimension_numbers<[1], [0], [0], [1], [0, 0, 1, 1], [], []>} : vector<64x64xf32>, vector<64x16xf32>, vector<64x16xf32> -> vector<64x16xf32>
    %103 = arith.addf %99, %102 : vector<64x16xf32>
    %c6_107 = arith.constant 6 : index
    %c0_108 = arith.constant 0 : index
    %c0_109 = arith.constant 0 : index
    %104 = vector.load %arg3[%c6_107, %c0_108, %c0_109] : memref<7x64x64xf32, #tpu.memory_space<vmem>>, vector<1x64x64xf32>
    %105 = vector.shape_cast %104 : vector<1x64x64xf32> to vector<64x64xf32>
    %cst_110 = arith.constant dense<0.000000e+00> : vector<64x16xf32>
    %106 = tpu.matmul %105, %95, %cst_110 {dimension_numbers = #tpu.dot_dimension_numbers<[1], [0], [0], [1], [0, 0, 1, 1], [], []>} : vector<64x64xf32>, vector<64x16xf32>, vector<64x16xf32> -> vector<64x16xf32>
    %107 = arith.addf %103, %106 : vector<64x16xf32>
    %108 = vector.shape_cast %107 : vector<64x16xf32> to vector<8x8x16xf32>
    %c0_111 = arith.constant 0 : index
    %c0_112 = arith.constant 0 : index
    %c0_113 = arith.constant 0 : index
    %109 = vector.load %arg4[%c0_111, %c0_112, %c0_113] : memref<8x1x1xf32, #tpu.memory_space<vmem>>, vector<8x1x1xf32>
    %110 = vector.broadcast %109 : vector<8x1x1xf32> to vector<8x8x16xf32>
    %111 = arith.addf %108, %110 : vector<8x8x16xf32>
    %cst_114 = arith.constant 0.000000e+00 : f32
    %112 = vector.broadcast %cst_114 : f32 to vector<8x8x16xf32>
    %113 = arith.maximumf %111, %112 : vector<8x8x16xf32>
    %114 = tpu.transpose %113, [0, 2, 1] : vector<8x8x16xf32> -> vector<8x16x8xf32>
    %c0_115 = arith.constant 0 : index
    %c0_116 = arith.constant 0 : index
    %c0_117 = arith.constant 0 : index
    %c8_118 = arith.constant 8 : index
    %115 = vector.load %arg6[%c0_115, %c0_116, %c0_117, %c8_118] : memref<1x8x16x16xf32, #tpu.memory_space<vmem>>, vector<1x8x16x8xf32>
    %116 = vector.shape_cast %115 : vector<1x8x16x8xf32> to vector<8x16x8xf32>
    %117 = vector.shape_cast %114 : vector<8x16x8xf32> to vector<1x8x16x8xf32>
    tpu.vector_store %arg6[%c0_115, %c0_116, %c0_117, %c8_118], %117 {strides = array<i32>} : memref<1x8x16x16xf32, #tpu.memory_space<vmem>>, vector<1x8x16x8xf32>,
    return
  }
  func.func @transform_0(%arg0: i32, %arg1: i32) -> (i32, i32, i32) {
    %c0_i32 = arith.constant 0 : i32
    %c0_i32_0 = arith.constant 0 : i32
    %c0_i32_1 = arith.constant 0 : i32
    %c0_i32_2 = arith.constant 0 : i32
    return %c0_i32, %c0_i32_0, %c0_i32_1 : i32, i32, i32
  }
  func.func @transform_1(%arg0: i32, %arg1: i32) -> (i32, i32, i32) {
    %c0_i32 = arith.constant 0 : i32
    %c0_i32_0 = arith.constant 0 : i32
    %c0_i32_1 = arith.constant 0 : i32
    %c0_i32_2 = arith.constant 0 : i32
    return %c0_i32, %c0_i32_0, %c0_i32_1 : i32, i32, i32
  }
  func.func @transform_2(%arg0: i32, %arg1: i32) -> (i32, i32, i32) {
    %c0_i32 = arith.constant 0 : i32
    %c0_i32_0 = arith.constant 0 : i32
    %c0_i32_1 = arith.constant 0 : i32
    %c0_i32_2 = arith.constant 0 : i32
    return %c0_i32, %c0_i32_0, %c0_i32_1 : i32, i32, i32
  }
  func.func @transform_3(%arg0: i32, %arg1: i32) -> (i32, i32, i32, i32) {
    %c0_i32 = arith.constant 0 : i32
    %c0_i32_0 = arith.constant 0 : i32
    %c0_i32_1 = arith.constant 0 : i32
    return %arg0, %c0_i32, %c0_i32_0, %arg1 : i32, i32, i32, i32
  }
  func.func @transform_4(%arg0: i32, %arg1: i32) -> (i32, i32, i32, i32) {
    %c0_i32 = arith.constant 0 : i32
    %c0_i32_0 = arith.constant 0 : i32
    %c0_i32_1 = arith.constant 0 : i32
    return %arg0, %c0_i32, %c0_i32_0, %arg1 : i32, i32, i32, i32
  }
}

</mosaic_0001>

<llo_original>
// kernel: tpu_custom_call.1
$region0: #{tpu_custom_call.1}
  #allocation0 [shape = 'u32[]', space=smem, size = 0x4, offset = 0x4, fixed_abs, tag = 'smem constant byte address 0x4 - core index']
  #allocation1 [shape = 'u32[144,128]{1,0:T(1,128)}', space=vmem, size = 0x12000, scoped, tag = 'internal scratch']
  %s0 = inlined_call_operand.hbm [shape: f32[3,16,16], index: 0, kind: input, shape index: {}]
  %s1 = inlined_call_operand.hbm [shape: f32[7,64,64], index: 1, kind: input, shape index: {}]
  %s2 = inlined_call_operand.vmem [shape: f32[8,1,1], index: 2, kind: input, shape index: {}]
  %s3 = inlined_call_operand.hbm [shape: f32[2,8,16,16], index: 3, kind: input, shape index: {}]
  %s4 = inlined_call_operand.hbm [shape: f32[2,8,16,16], index: 4, kind: output, shape index: {}]
  %s5 = sld [smem:[#allocation0]]
  $region61: #{tpu_custom_call.1} parent=0
    _
  %s7 = ssub.s32 1, %s5
  %s8 = scalar_select 0, %s7, %s5
  $region1: #{tpu_custom_call.1} parent=0
    #allocation2 [shape = 'u8[24576]{0}', space=vmem, size = 0x6000, scoped, tag = 'input window, operand 0, single buffered']
    #allocation3 [shape = 's32[2]{0}', space=sflag, size = 0x8, scoped, tag = 'scoped memory for tpu_custom_call.1']
    #allocation4 [shape = 's32[2]{0}', space=sflag, size = 0x8, scoped, tag = 'scoped memory for tpu_custom_call.1']
    #allocation5 [shape = 'u8[229376]{0}', space=vmem, size = 0x38000, scoped, tag = 'input window, operand 1, single buffered']
    #allocation6 [shape = 's32[1]{0}', space=sflag, size = 0x4, scoped, tag = 'scoped memory for tpu_custom_call.1']
    #allocation7 [shape = 'u8[131072]{0}', space=vmem, size = 0x20000, scoped, tag = 'input window, operand 3']
    #allocation8 [shape = 'u8[131072]{0}', space=vmem, size = 0x20000, scoped, tag = 'output window, operand 0']
    %9 = vsyncpa [#allocation3], 0
    %10 = vsyncpa [#allocation6], 0
    %11 = vsyncpa [#allocation4], 0
    %s12 = scalar_lea.sflag [#allocation4], 1
    %13 = vsyncpa %s12, 0
    loop: start=0, step=1, limit=4
    $region2: #{tpu_custom_call.1} parent=1 // loop_pre_header
      _
    $region3: #{tpu_custom_call.1} parent=1 // loop_header
      %s15 = sphi 0, %s19
      %p16 = scmp.ge.s32.totalorder %s15, 4
      %s22 = sphi 0, %s34
      %s23 = sphi 0, %s30
      %s24 = sphi 0, %s22
      %s25 = sphi 0, %s23
      %s26 = sphi 0, %s24
      %s27 = sphi 0, %s25
      %s35 = sphi 0, %s35
      %s37 = sphi 0, %s35
      %s38 = sphi 0, %s37
      %s52 = sphi 0, %s38
      %s56 = sphi 0, %s56
      %s58 = sphi 0, %s56
      %s59 = sphi 0, %s58
      %s73 = sphi 0, %s59
      %s77 = sphi 0, %s77
      %s79 = sphi 0, %s77
      %s80 = sphi 0, %s79
      %s94 = sphi 0, %s80
      %s102 = sphi 0, %s104
      %s105 = sphi 0, %s102
      %s106 = sphi 0, %s105
      %s122 = sphi 0, %s106
      %s130 = sphi 0, %s132
      %s133 = sphi 0, %s130
      %s134 = sphi 0, %s133
      %s150 = sphi 0, %s134
    $region4: #{tpu_custom_call.1} parent=1 // loop_header_branch
      %18 = sbr.rel (%p16) target = $region8
    $region5: #{tpu_custom_call.1} parent=1 // loop_body
      %s20 = ssub.s32 %s15, 1
      %s21 = ssub.s32 %s15, 2
      %s28 = sadd.s32 1, %s23
      %p29 = scmp.ge.s32.totalorder %s28, 1
      %s30 = scalar_select %p29, 0, %s28
      %s31 = sadd.s32 1, %s22
      %s32 = scalar_select %p29, %s31, %s22
      %p33 = scmp.ge.s32.totalorder %s32, 2
      %s34 = scalar_select %p33, 0, %s32
      %s36 = sadd.s32 %s35, 1
      %p39 = scmp.eq.s32.totalorder %s15, 1
      %p40 = scmp.ne.s32.totalorder %s35, %s37
      %p41 = scmp.eq.s32.totalorder %s15, 0
      %p42 = por %p40, %p41
      %p43 = scmp.ne.s32.totalorder %s35, %s37
      %p44 = scmp.eq.s32.totalorder %s20, 1
      %p45 = por %p43, %p44
      %p46 = scmp.ne.s32.totalorder %s37, %s38
      %p47 = scmp.eq.s32.totalorder %s20, 0
      %p48 = por %p46, %p47
      %p49 = scmp.ne.s32.totalorder %s37, %s38
      %p50 = scmp.eq.s32.totalorder %s21, 1
      %p51 = por %p49, %p50
      %p53 = scmp.ne.s32.totalorder %s38, %s52
      %p54 = scmp.eq.s32.totalorder %s21, 0
      %p55 = por %p53, %p54
      %s57 = sadd.s32 %s56, 1
      %p60 = scmp.eq.s32.totalorder %s15, 1
      %p61 = scmp.ne.s32.totalorder %s56, %s58
      %p62 = scmp.eq.s32.totalorder %s15, 0
      %p63 = por %p61, %p62
      %p64 = scmp.ne.s32.totalorder %s56, %s58
      %p65 = scmp.eq.s32.totalorder %s20, 1
      %p66 = por %p64, %p65
      %p67 = scmp.ne.s32.totalorder %s58, %s59
      %p68 = scmp.eq.s32.totalorder %s20, 0
      %p69 = por %p67, %p68
      %p70 = scmp.ne.s32.totalorder %s58, %s59
      %p71 = scmp.eq.s32.totalorder %s21, 1
      %p72 = por %p70, %p71
      %p74 = scmp.ne.s32.totalorder %s59, %s73
      %p75 = scmp.eq.s32.totalorder %s21, 0
      %p76 = por %p74, %p75
      %s78 = sadd.s32 %s77, 1
      %p81 = scmp.eq.s32.totalorder %s15, 1
      %p82 = scmp.ne.s32.totalorder %s77, %s79
      %p83 = scmp.eq.s32.totalorder %s15, 0
      %p84 = por %p82, %p83
      %p85 = scmp.ne.s32.totalorder %s77, %s79
      %p86 = scmp.eq.s32.totalorder %s20, 1
      %p87 = por %p85, %p86
      %p88 = scmp.ne.s32.totalorder %s79, %s80
      %p89 = scmp.eq.s32.totalorder %s20, 0
      %p90 = por %p88, %p89
      %p91 = scmp.ne.s32.totalorder %s79, %s80
      %p92 = scmp.eq.s32.totalorder %s21, 1
      %p93 = por %p91, %p92
      %p95 = scmp.ne.s32.totalorder %s80, %s94
      %p96 = scmp.eq.s32.totalorder %s21, 0
      %p97 = por %p95, %p96
      %s98 = ssub.s32 %s22, %s34
      %s99 = ssub.s32 %s23, %s30
      %s100 = sor.u32 %s98, %s99
      %p101 = scmp.eq.s32.totalorder %s100, 0
      %s103 = sadd.s32 %s102, 1
      %s104 = scalar_select %p101, %s102, %s103
      %p107 = pneg %p101
      %p108 = scmp.eq.s32.totalorder %s15, 1
      %p109 = por %p107, %p108
      %p110 = scmp.ne.s32.totalorder %s102, %s105
      %p111 = scmp.eq.s32.totalorder %s15, 0
      %p112 = por %p110, %p111
      %p113 = scmp.ne.s32.totalorder %s102, %s105
      %p114 = scmp.eq.s32.totalorder %s20, 1
      %p115 = por %p113, %p114
      %p116 = scmp.ne.s32.totalorder %s105, %s106
      %p117 = scmp.eq.s32.totalorder %s20, 0
      %p118 = por %p116, %p117
      %p119 = scmp.ne.s32.totalorder %s105, %s106
      %p120 = scmp.eq.s32.totalorder %s21, 1
      %p121 = por %p119, %p120
      %p123 = scmp.ne.s32.totalorder %s106, %s122
      %p124 = scmp.eq.s32.totalorder %s21, 0
      %p125 = por %p123, %p124
      %s126 = ssub.s32 %s22, %s34
      %s127 = ssub.s32 %s23, %s30
      %s128 = sor.u32 %s126, %s127
      %p129 = scmp.eq.s32.totalorder %s128, 0
      %s131 = sadd.s32 %s130, 1
      %s132 = scalar_select %p129, %s130, %s131
      %p135 = pneg %p129
      %p136 = scmp.eq.s32.totalorder %s15, 1
      %p137 = por %p135, %p136
      %p138 = scmp.ne.s32.totalorder %s130, %s133
      %p139 = scmp.eq.s32.totalorder %s15, 0
      %p140 = por %p138, %p139
      %p141 = scmp.ne.s32.totalorder %s130, %s133
      %p142 = scmp.eq.s32.totalorder %s20, 1
      %p143 = por %p141, %p142
      %p144 = scmp.ne.s32.totalorder %s133, %s134
      %p145 = scmp.eq.s32.totalorder %s20, 0
      %p146 = por %p144, %p145
      %p147 = scmp.ne.s32.totalorder %s133, %s134
      %p148 = scmp.eq.s32.totalorder %s21, 1
      %p149 = por %p147, %p148
      %p151 = scmp.ne.s32.totalorder %s134, %s150
      %p152 = scmp.eq.s32.totalorder %s21, 0
      %p153 = por %p151, %p152
      %p154 = scmp.le.s32.totalorder 1, %s15
      %p155 = scmp.lt.s32.totalorder %s15, 3
      %p156 = pnand %p154, %p155
      %p157 = pneg %p156
      // Predicated region
      $region9: #{tpu_custom_call.1} parent=5 // pred_check
        _
      $region10: #{tpu_custom_call.1} parent=5 // pred_check_branch
        %159 = sbr.rel (%p156) target = $region12
      $region11: #{tpu_custom_call.1} parent=5 // pred_region
        %s160 = ssub.s32 %s15, 1
        // Predicated region
        $region13: #{tpu_custom_call.1} parent=11 // pred_check
          %p161 = pneg %p48
        $region14: #{tpu_custom_call.1} parent=11 // pred_check_branch
          %163 = sbr.rel (%p161) target = $region16
        $region15: #{tpu_custom_call.1} parent=11 // pred_region
          %s165 = ssub.s32 768, 768
          %166 = vsyncadd [#allocation3], %s165
          %s167 = sshll.u32 [#allocation2], 4
          %s168 = int_to_ptr.vmem [resolvable:$true] %s167
          %173 = dma.hbm_to_vmem [thread:$0]  %s0, 768, %s168, [#allocation3], 128, 128, 8
        $region16: #{tpu_custom_call.1} parent=11 // pred_fallthru
          _
        // Predicated region
        $region17: #{tpu_custom_call.1} parent=11 // pred_check
          %p174 = pneg %p69
        $region18: #{tpu_custom_call.1} parent=11 // pred_check_branch
          %176 = sbr.rel (%p174) target = $region20
        $region19: #{tpu_custom_call.1} parent=11 // pred_region
          %s178 = ssub.s32 7168, 7168
          %179 = vsyncadd [#allocation6], %s178
          %s180 = sshll.u32 [#allocation5], 4
          %s181 = int_to_ptr.vmem [resolvable:$true] %s180
          %186 = dma.hbm_to_vmem [thread:$0]  %s1, 7168, %s181, [#allocation6], 128, 128, 8
        $region20: #{tpu_custom_call.1} parent=11 // pred_fallthru
          _
        // Predicated region
        $region21: #{tpu_custom_call.1} parent=11 // pred_check
          %p187 = pneg %p90
        $region22: #{tpu_custom_call.1} parent=11 // pred_check_branch
          %189 = sbr.rel (%p187) target = $region24
        $region23: #{tpu_custom_call.1} parent=11 // pred_region
          _
        $region24: #{tpu_custom_call.1} parent=11 // pred_fallthru
          _
      $region12: #{tpu_custom_call.1} parent=5 // pred_fallthru
        _
      %p190 = scmp.lt.s32.totalorder %s15, 2
      // Predicated region
      $region25: #{tpu_custom_call.1} parent=5 // pred_check
        %p191 = pneg %p190
      $region26: #{tpu_custom_call.1} parent=5 // pred_check_branch
        %193 = sbr.rel (%p191) target = $region28
      $region27: #{tpu_custom_call.1} parent=5 // pred_region
        // Predicated region
        $region29: #{tpu_custom_call.1} parent=27 // pred_check
          %p194 = pneg %p112
        $region30: #{tpu_custom_call.1} parent=27 // pred_check_branch
          %196 = sbr.rel (%p194) target = $region32
        $region31: #{tpu_custom_call.1} parent=27 // pred_region
          %s197 = sand.u32 %s15, 1
          %s198 = scalar_lea.sflag [#allocation3], %s197
          %s199 = sand.u32 %s102, 1
          %s200 = smul.addr %s199, 128
          %s201 = scalar_lea.vmem [#allocation7], %s200
          %s203 = ssub.s32 2048, 2048
          %204 = vsyncadd %s198, %s203
          %s205 = smul.addr %s22, 16
          %s206 = sadd.s32 %s23, %s205
          %s207 = smul.addr %s206, 128
          %s208 = scalar_lea.hbm %s3, %s207
          %s209 = sshll.u32 %s201, 4
          %s210 = int_to_ptr.vmem [resolvable:$true] %s209
          %215 = dma.hbm_to_vmem [thread:$0]  %s208, 2048, %s210, %s198, 128, 128, 8
        $region32: #{tpu_custom_call.1} parent=27 // pred_fallthru
          _
      $region28: #{tpu_custom_call.1} parent=5 // pred_fallthru
        _
      %p216 = scmp.le.s32.totalorder 1, %s15
      %p217 = scmp.lt.s32.totalorder %s15, 3
      %p218 = pnand %p216, %p217
      %p219 = pneg %p218
      // Predicated region
      $region33: #{tpu_custom_call.1} parent=5 // pred_check
        _
      $region34: #{tpu_custom_call.1} parent=5 // pred_check_branch
        %221 = sbr.rel (%p218) target = $region36
      $region35: #{tpu_custom_call.1} parent=5 // pred_region
        %s222 = ssub.s32 %s15, 1
        // Predicated region
        $region37: #{tpu_custom_call.1} parent=35 // pred_check
          %p223 = pneg %p48
        $region38: #{tpu_custom_call.1} parent=35 // pred_check_branch
          %225 = sbr.rel (%p223) target = $region40
        $region39: #{tpu_custom_call.1} parent=35 // pred_region
          %226 = dma.done [#allocation3], 768
        $region40: #{tpu_custom_call.1} parent=35 // pred_fallthru
          _
        // Predicated region
        $region41: #{tpu_custom_call.1} parent=35 // pred_check
          %p227 = pneg %p69
        $region42: #{tpu_custom_call.1} parent=35 // pred_check_branch
          %229 = sbr.rel (%p227) target = $region44
        $region43: #{tpu_custom_call.1} parent=35 // pred_region
          %230 = dma.done [#allocation6], 7168
        $region44: #{tpu_custom_call.1} parent=35 // pred_fallthru
          _
        %s231 = sand.u32 %s20, 1
        %s232 = scalar_lea.sflag [#allocation3], %s231
        %s233 = sand.u32 %s105, 1
        %s234 = smul.addr %s233, 128
        %s235 = scalar_lea.vmem [#allocation7], %s234
        // Predicated region
        $region45: #{tpu_custom_call.1} parent=35 // pred_check
          %p236 = pneg %p118
        $region46: #{tpu_custom_call.1} parent=35 // pred_check_branch
          %238 = sbr.rel (%p236) target = $region48
        $region47: #{tpu_custom_call.1} parent=35 // pred_region
          %239 = dma.done %s232, 2048
        $region48: #{tpu_custom_call.1} parent=35 // pred_fallthru
          _
        %p240 = pneg %p48
        %p241 = pneg %p45
        %p242 = pneg %p69
        %p243 = pneg %p66
        %p244 = pneg %p90
        %p245 = pneg %p87
        %s246 = sand.u32 %s20, 1
        %s247 = scalar_lea.sflag [#allocation3], %s246
        %s248 = sand.u32 %s105, 1
        %s249 = smul.addr %s248, 128
        %s250 = scalar_lea.vmem [#allocation7], %s249
        %p251 = pneg %p118
        %p252 = pneg %p115
        %p253 = pneg %p146
        %p254 = pneg %p143
        %s255 = sand.u32 %s133, 1
        %s256 = scalar_lea.sflag [#allocation4], %s255
        %s257 = sand.u32 %s133, 1
        %s258 = smul.addr %s257, 128
        %s259 = scalar_lea.vmem [#allocation8], %s258
        %v260 = vld [vmem:[%s235] sm:$0xff]
        %v261 = vld [vmem:[%s235 + $0x8] sm:$0xff]
        %v262 = vld [vmem:[%s235 + $0x10] sm:$0xff]
        %v263 = vld [vmem:[%s235 + $0x18] sm:$0xff]
        %v264 = vld [vmem:[%s235 + $0x20] sm:$0xff]
        %v265 = vld [vmem:[%s235 + $0x28] sm:$0xff]
        %v266 = vld [vmem:[%s235 + $0x30] sm:$0xff]
        %v267 = vld [vmem:[%s235 + $0x38] sm:$0xff]
        %v268 = vld [vmem:[%s235 + $0x40] sm:$0xff]
        %v269 = vld [vmem:[%s235 + $0x48] sm:$0xff]
        %v270 = vld [vmem:[%s235 + $0x50] sm:$0xff]
        %v271 = vld [vmem:[%s235 + $0x58] sm:$0xff]
        %v272 = vld [vmem:[%s235 + $0x60] sm:$0xff]
        %v273 = vld [vmem:[%s235 + $0x68] sm:$0xff]
        %v274 = vld [vmem:[%s235 + $0x70] sm:$0xff]
        %v275 = vld [vmem:[%s235 + $0x78] sm:$0xff]
        %276 = vxpose.xlu0.b32.start [1/16] %v260, 128
        %277 = vxpose.xlu0.b32.cont [2/16] %v261, 128
        %278 = vxpose.xlu0.b32.cont [3/16] 0.0, 128
        %279 = vxpose.xlu0.b32.cont [4/16] 0.0, 128
        %280 = vxpose.xlu0.b32.cont [5/16] 0.0, 128
        %281 = vxpose.xlu0.b32.cont [6/16] 0.0, 128
        %282 = vxpose.xlu0.b32.cont [7/16] 0.0, 128
        %283 = vxpose.xlu0.b32.cont [8/16] 0.0, 128
        %284 = vxpose.xlu0.b32.cont [9/16] 0.0, 128
        %285 = vxpose.xlu0.b32.cont [10/16] 0.0, 128
        %286 = vxpose.xlu0.b32.cont [11/16] 0.0, 128
        %287 = vxpose.xlu0.b32.cont [12/16] 0.0, 128
        %288 = vxpose.xlu0.b32.cont [13/16] 0.0, 128
        %289 = vxpose.xlu0.b32.cont [14/16] 0.0, 128
        %290 = vxpose.xlu0.b32.cont [15/16] 0.0, 128
        %291 = vxpose.xlu0.b32.end [16/16] 0.0, 128
        %v292 = vpop.trf.xlu0
        %v293 = vpop.trf.xlu0
        %v294 = vpop.trf.xlu0
        %v295 = vpop.trf.xlu0
        %v296 = vpop.trf.xlu0
        %v297 = vpop.trf.xlu0
        %v298 = vpop.trf.xlu0
        %v299 = vpop.trf.xlu0
        %v300 = vpop.trf.xlu0
        %v301 = vpop.trf.xlu0
        %v302 = vpop.trf.xlu0
        %v303 = vpop.trf.xlu0
        %v304 = vpop.trf.xlu0
        %v305 = vpop.trf.xlu0
        %v306 = vpop.trf.xlu0
        %v307 = vpop.trf.xlu0
        %308 = vxpose.xlu0.b32.start [1/16] %v262, 128
        %309 = vxpose.xlu0.b32.cont [2/16] %v263, 128
        %310 = vxpose.xlu0.b32.cont [3/16] 0.0, 128
        %311 = vxpose.xlu0.b32.cont [4/16] 0.0, 128
        %312 = vxpose.xlu0.b32.cont [5/16] 0.0, 128
        %313 = vxpose.xlu0.b32.cont [6/16] 0.0, 128
        %314 = vxpose.xlu0.b32.cont [7/16] 0.0, 128
        %315 = vxpose.xlu0.b32.cont [8/16] 0.0, 128
        %316 = vxpose.xlu0.b32.cont [9/16] 0.0, 128
        %317 = vxpose.xlu0.b32.cont [10/16] 0.0, 128
        %318 = vxpose.xlu0.b32.cont [11/16] 0.0, 128
        %319 = vxpose.xlu0.b32.cont [12/16] 0.0, 128
        %320 = vxpose.xlu0.b32.cont [13/16] 0.0, 128
        %321 = vxpose.xlu0.b32.cont [14/16] 0.0, 128
        %322 = vxpose.xlu0.b32.cont [15/16] 0.0, 128
        %323 = vxpose.xlu0.b32.end [16/16] 0.0, 128
        %v324 = vpop.trf.xlu0
        %v325 = vpop.trf.xlu0
        %v326 = vpop.trf.xlu0
        %v327 = vpop.trf.xlu0
        %v328 = vpop.trf.xlu0
        %v329 = vpop.trf.xlu0
        %v330 = vpop.trf.xlu0
        %v331 = vpop.trf.xlu0
        %v332 = vpop.trf.xlu0
        %v333 = vpop.trf.xlu0
        %v334 = vpop.trf.xlu0
        %v335 = vpop.trf.xlu0
        %v336 = vpop.trf.xlu0
        %v337 = vpop.trf.xlu0
        %v338 = vpop.trf.xlu0
        %v339 = vpop.trf.xlu0
        %340 = vxpose.xlu0.b32.start [1/16] %v264, 128
        %341 = vxpose.xlu0.b32.cont [2/16] %v265, 128
        %342 = vxpose.xlu0.b32.cont [3/16] 0.0, 128
        %343 = vxpose.xlu0.b32.cont [4/16] 0.0, 128
        %344 = vxpose.xlu0.b32.cont [5/16] 0.0, 128
        %345 = vxpose.xlu0.b32.cont [6/16] 0.0, 128
        %346 = vxpose.xlu0.b32.cont [7/16] 0.0, 128
        %347 = vxpose.xlu0.b32.cont [8/16] 0.0, 128
        %348 = vxpose.xlu0.b32.cont [9/16] 0.0, 128
        %349 = vxpose.xlu0.b32.cont [10/16] 0.0, 128
        %350 = vxpose.xlu0.b32.cont [11/16] 0.0, 128
        %351 = vxpose.xlu0.b32.cont [12/16] 0.0, 128
        %352 = vxpose.xlu0.b32.cont [13/16] 0.0, 128
        %353 = vxpose.xlu0.b32.cont [14/16] 0.0, 128
        %354 = vxpose.xlu0.b32.cont [15/16] 0.0, 128
        %355 = vxpose.xlu0.b32.end [16/16] 0.0, 128
        %v356 = vpop.trf.xlu0
        %v357 = vpop.trf.xlu0
        %v358 = vpop.trf.xlu0
        %v359 = vpop.trf.xlu0
        %v360 = vpop.trf.xlu0
        %v361 = vpop.trf.xlu0
        %v362 = vpop.trf.xlu0
        %v363 = vpop.trf.xlu0
        %v364 = vpop.trf.xlu0
        %v365 = vpop.trf.xlu0
        %v366 = vpop.trf.xlu0
        %v367 = vpop.trf.xlu0
        %v368 = vpop.trf.xlu0
        %v369 = vpop.trf.xlu0
        %v370 = vpop.trf.xlu0
        %v371 = vpop.trf.xlu0
        %372 = vxpose.xlu0.b32.start [1/16] %v266, 128
        %373 = vxpose.xlu0.b32.cont [2/16] %v267, 128
        %374 = vxpose.xlu0.b32.cont [3/16] 0.0, 128
        %375 = vxpose.xlu0.b32.cont [4/16] 0.0, 128
        %376 = vxpose.xlu0.b32.cont [5/16] 0.0, 128
        %377 = vxpose.xlu0.b32.cont [6/16] 0.0, 128
        %378 = vxpose.xlu0.b32.cont [7/16] 0.0, 128
        %379 = vxpose.xlu0.b32.cont [8/16] 0.0, 128
        %380 = vxpose.xlu0.b32.cont [9/16] 0.0, 128
        %381 = vxpose.xlu0.b32.cont [10/16] 0.0, 128
        %382 = vxpose.xlu0.b32.cont [11/16] 0.0, 128
        %383 = vxpose.xlu0.b32.cont [12/16] 0.0, 128
        %384 = vxpose.xlu0.b32.cont [13/16] 0.0, 128
        %385 = vxpose.xlu0.b32.cont [14/16] 0.0, 128
        %386 = vxpose.xlu0.b32.cont [15/16] 0.0, 128
        %387 = vxpose.xlu0.b32.end [16/16] 0.0, 128
        %v388 = vpop.trf.xlu0
        %v389 = vpop.trf.xlu0
        %v390 = vpop.trf.xlu0
        %v391 = vpop.trf.xlu0
        %v392 = vpop.trf.xlu0
        %v393 = vpop.trf.xlu0
        %v394 = vpop.trf.xlu0
        %v395 = vpop.trf.xlu0
        %v396 = vpop.trf.xlu0
        %v397 = vpop.trf.xlu0
        %v398 = vpop.trf.xlu0
        %v399 = vpop.trf.xlu0
        %v400 = vpop.trf.xlu0
        %v401 = vpop.trf.xlu0
        %v402 = vpop.trf.xlu0
        %v403 = vpop.trf.xlu0
        %404 = vxpose.xlu0.b32.start [1/16] %v268, 128
        %405 = vxpose.xlu0.b32.cont [2/16] %v269, 128
        %406 = vxpose.xlu0.b32.cont [3/16] 0.0, 128
        %407 = vxpose.xlu0.b32.cont [4/16] 0.0, 128
        %408 = vxpose.xlu0.b32.cont [5/16] 0.0, 128
        %409 = vxpose.xlu0.b32.cont [6/16] 0.0, 128
        %410 = vxpose.xlu0.b32.cont [7/16] 0.0, 128
        %411 = vxpose.xlu0.b32.cont [8/16] 0.0, 128
        %412 = vxpose.xlu0.b32.cont [9/16] 0.0, 128
        %413 = vxpose.xlu0.b32.cont [10/16] 0.0, 128
        %414 = vxpose.xlu0.b32.cont [11/16] 0.0, 128
        %415 = vxpose.xlu0.b32.cont [12/16] 0.0, 128
        %416 = vxpose.xlu0.b32.cont [13/16] 0.0, 128
        %417 = vxpose.xlu0.b32.cont [14/16] 0.0, 128
        %418 = vxpose.xlu0.b32.cont [15/16] 0.0, 128
        %419 = vxpose.xlu0.b32.end [16/16] 0.0, 128
        %v420 = vpop.trf.xlu0
        %v421 = vpop.trf.xlu0
        %v422 = vpop.trf.xlu0
        %v423 = vpop.trf.xlu0
        %v424 = vpop.trf.xlu0
        %v425 = vpop.trf.xlu0
        %v426 = vpop.trf.xlu0
        %v427 = vpop.trf.xlu0
        %v428 = vpop.trf.xlu0
        %v429 = vpop.trf.xlu0
        %v430 = vpop.trf.xlu0
        %v431 = vpop.trf.xlu0
        %v432 = vpop.trf.xlu0
        %v433 = vpop.trf.xlu0
        %v434 = vpop.trf.xlu0
        %v435 = vpop.trf.xlu0
        %436 = vxpose.xlu0.b32.start [1/16] %v270, 128
        %437 = vxpose.xlu0.b32.cont [2/16] %v271, 128
        %438 = vxpose.xlu0.b32.cont [3/16] 0.0, 128
        %439 = vxpose.xlu0.b32.cont [4/16] 0.0, 128
        %440 = vxpose.xlu0.b32.cont [5/16] 0.0, 128
        %441 = vxpose.xlu0.b32.cont [6/16] 0.0, 128
        %442 = vxpose.xlu0.b32.cont [7/16] 0.0, 128
        %443 = vxpose.xlu0.b32.cont [8/16] 0.0, 128
        %444 = vxpose.xlu0.b32.cont [9/16] 0.0, 128
        %445 = vxpose.xlu0.b32.cont [10/16] 0.0, 128
        %446 = vxpose.xlu0.b32.cont [11/16] 0.0, 128
        %447 = vxpose.xlu0.b32.cont [12/16] 0.0, 128
        %448 = vxpose.xlu0.b32.cont [13/16] 0.0, 128
        %449 = vxpose.xlu0.b32.cont [14/16] 0.0, 128
        %450 = vxpose.xlu0.b32.cont [15/16] 0.0, 128
        %451 = vxpose.xlu0.b32.end [16/16] 0.0, 128
        %v452 = vpop.trf.xlu0
        %v453 = vpop.trf.xlu0
        %v454 = vpop.trf.xlu0
        %v455 = vpop.trf.xlu0
        %v456 = vpop.trf.xlu0
        %v457 = vpop.trf.xlu0
        %v458 = vpop.trf.xlu0
        %v459 = vpop.trf.xlu0
        %v460 = vpop.trf.xlu0
        %v461 = vpop.trf.xlu0
        %v462 = vpop.trf.xlu0
        %v463 = vpop.trf.xlu0
        %v464 = vpop.trf.xlu0
        %v465 = vpop.trf.xlu0
        %v466 = vpop.trf.xlu0
        %v467 = vpop.trf.xlu0
        %468 = vxpose.xlu0.b32.start [1/16] %v272, 128
        %469 = vxpose.xlu0.b32.cont [2/16] %v273, 128
        %470 = vxpose.xlu0.b32.cont [3/16] 0.0, 128
        %471 = vxpose.xlu0.b32.cont [4/16] 0.0, 128
        %472 = vxpose.xlu0.b32.cont [5/16] 0.0, 128
        %473 = vxpose.xlu0.b32.cont [6/16] 0.0, 128
        %474 = vxpose.xlu0.b32.cont [7/16] 0.0, 128
        %475 = vxpose.xlu0.b32.cont [8/16] 0.0, 128
        %476 = vxpose.xlu0.b32.cont [9/16] 0.0, 128
        %477 = vxpose.xlu0.b32.cont [10/16] 0.0, 128
        %478 = vxpose.xlu0.b32.cont [11/16] 0.0, 128
        %479 = vxpose.xlu0.b32.cont [12/16] 0.0, 128
        %480 = vxpose.xlu0.b32.cont [13/16] 0.0, 128
        %481 = vxpose.xlu0.b32.cont [14/16] 0.0, 128
        %482 = vxpose.xlu0.b32.cont [15/16] 0.0, 128
        %483 = vxpose.xlu0.b32.end [16/16] 0.0, 128
        %v484 = vpop.trf.xlu0
        %v485 = vpop.trf.xlu0
        %v486 = vpop.trf.xlu0
        %v487 = vpop.trf.xlu0
        %v488 = vpop.trf.xlu0
        %v489 = vpop.trf.xlu0
        %v490 = vpop.trf.xlu0
        %v491 = vpop.trf.xlu0
        %v492 = vpop.trf.xlu0
        %v493 = vpop.trf.xlu0
        %v494 = vpop.trf.xlu0
        %v495 = vpop.trf.xlu0
        %v496 = vpop.trf.xlu0
        %v497 = vpop.trf.xlu0
        %v498 = vpop.trf.xlu0
        %v499 = vpop.trf.xlu0
        %500 = vxpose.xlu0.b32.start [1/16] %v274, 128
        %501 = vxpose.xlu0.b32.cont [2/16] %v275, 128
        %502 = vxpose.xlu0.b32.cont [3/16] 0.0, 128
        %503 = vxpose.xlu0.b32.cont [4/16] 0.0, 128
        %504 = vxpose.xlu0.b32.cont [5/16] 0.0, 128
        %505 = vxpose.xlu0.b32.cont [6/16] 0.0, 128
        %506 = vxpose.xlu0.b32.cont [7/16] 0.0, 128
        %507 = vxpose.xlu0.b32.cont [8/16] 0.0, 128
        %508 = vxpose.xlu0.b32.cont [9/16] 0.0, 128
        %509 = vxpose.xlu0.b32.cont [10/16] 0.0, 128
        %510 = vxpose.xlu0.b32.cont [11/16] 0.0, 128
        %511 = vxpose.xlu0.b32.cont [12/16] 0.0, 128
        %512 = vxpose.xlu0.b32.cont [13/16] 0.0, 128
        %513 = vxpose.xlu0.b32.cont [14/16] 0.0, 128
        %514 = vxpose.xlu0.b32.cont [15/16] 0.0, 128
        %515 = vxpose.xlu0.b32.end [16/16] 0.0, 128
        %v516 = vpop.trf.xlu0
        %v517 = vpop.trf.xlu0
        %v518 = vpop.trf.xlu0
        %v519 = vpop.trf.xlu0
        %v520 = vpop.trf.xlu0
        %v521 = vpop.trf.xlu0
        %v522 = vpop.trf.xlu0
        %v523 = vpop.trf.xlu0
        %v524 = vpop.trf.xlu0
        %v525 = vpop.trf.xlu0
        %v526 = vpop.trf.xlu0
        %v527 = vpop.trf.xlu0
        %v528 = vpop.trf.xlu0
        %v529 = vpop.trf.xlu0
        %v530 = vpop.trf.xlu0
        %v531 = vpop.trf.xlu0
        %v532 = vld [vmem:[#allocation5] sm:$0xff]
        %v533 = vld [vmem:[#allocation5 + $0x8] sm:$0xff]
        %v534 = vld [vmem:[#allocation5 + $0x10] sm:$0xff]
        %v535 = vld [vmem:[#allocation5 + $0x18] sm:$0xff]
        %v536 = vld [vmem:[#allocation5 + $0x20] sm:$0xff]
        %v537 = vld [vmem:[#allocation5 + $0x28] sm:$0xff]
        %v538 = vld [vmem:[#allocation5 + $0x30] sm:$0xff]
        %v539 = vld [vmem:[#allocation5 + $0x38] sm:$0xff]
        %v540 = vld [vmem:[#allocation2] sm:$0xff]
        %v541 = vld [vmem:[#allocation2 + $0x8] sm:$0xff]
        %vm542 = vcmask 130048
        %v544 = vsel %vm542, %v292, 0
        %v547 = vsel %vm542, %v324, 0
        %v550 = vsel %vm542, %v356, 0
        %v553 = vsel %vm542, %v388, 0
        %v556 = vsel %vm542, %v420, 0
        %v559 = vsel %vm542, %v452, 0
        %v562 = vsel %vm542, %v484, 0
        %v565 = vsel %vm542, %v516, 0
        %567 = vmatprep.subr.mxu0 0.0
        %568 = vmatpush1.msra.mxu0 0.0
        %569 = vmatprep.subr.mxu0 0.0
        %570 = vmatpush1.msra.mxu0 0.0
        %571 = vmatprep.subr.mxu0 0.0
        %572 = vmatpush1.msra.mxu0 0.0
        %573 = vmatprep.subr.mxu0 0.0
        %574 = vmatpush1.msra.mxu0 0.0
        %575 = vmatprep.subr.mxu0 0.0
        %576 = vmatpush1.msra.mxu0 0.0
        %577 = vmatprep.subr.mxu0 0.0
        %578 = vmatpush1.msra.mxu0 0.0
        %579 = vmatprep.subr.mxu0 0.0
        %580 = vmatpush1.msra.mxu0 0.0
        %581 = vmatprep.subr.mxu0 0.0
        %582 = vmatpush1.msra.mxu0 0.0
        %583 = vmatprep.subr.mxu0 0.0
        %584 = vmatpush1.msra.mxu0 0.0
        %585 = vmatprep.subr.mxu0 0.0
        %586 = vmatpush1.msra.mxu0 0.0
        %587 = vmatprep.subr.mxu0 0.0
        %588 = vmatpush1.msra.mxu0 0.0
        %589 = vmatprep.subr.mxu0 0.0
        %590 = vmatpush1.msra.mxu0 0.0
        %591 = vmatprep.subr.mxu0 0.0
        %592 = vmatpush1.msra.mxu0 0.0
        %593 = vmatprep.subr.mxu0 0.0
        %594 = vmatpush1.msra.mxu0 0.0
        %595 = vmatprep.subr.mxu0 0.0
        %596 = vmatpush1.msra.mxu0 %v541
        %597 = vmatprep.subr.mxu0 0.0
        %598 = vmatpush1.msra.mxu0 %v540
        %599 = vmatprep.subr.mxu0 0.0
        %600 = vmatpush2.msra.mxu0 0.0
        %601 = vmatprep.subr.mxu0 0.0
        %602 = vmatpush2.msra.mxu0 0.0
        %603 = vmatprep.subr.mxu0 0.0
        %604 = vmatpush2.msra.mxu0 0.0
        %605 = vmatprep.subr.mxu0 0.0
        %606 = vmatpush2.msra.mxu0 0.0
        %607 = vmatprep.subr.mxu0 0.0
        %608 = vmatpush2.msra.mxu0 0.0
        %609 = vmatprep.subr.mxu0 0.0
        %610 = vmatpush2.msra.mxu0 0.0
        %611 = vmatprep.subr.mxu0 0.0
        %612 = vmatpush2.msra.mxu0 0.0
        %613 = vmatprep.subr.mxu0 0.0
        %614 = vmatpush2.msra.mxu0 0.0
        %615 = vmatprep.subr.mxu0 0.0
        %616 = vmatpush2.msra.mxu0 0.0
        %617 = vmatprep.subr.mxu0 0.0
        %618 = vmatpush2.msra.mxu0 0.0
        %619 = vmatprep.subr.mxu0 0.0
        %620 = vmatpush2.msra.mxu0 0.0
        %621 = vmatprep.subr.mxu0 0.0
        %622 = vmatpush2.msra.mxu0 0.0
        %623 = vmatprep.subr.mxu0 0.0
        %624 = vmatpush2.msra.mxu0 0.0
        %625 = vmatprep.subr.mxu0 0.0
        %626 = vmatpush2.msra.mxu0 0.0
        %627 = vmatprep.subr.mxu0 0.0
        %628 = vmatpush2.msra.mxu0 0.0
        %629 = vmatprep.subr.mxu0 0.0
        %630 = vmatpush2.msra.mxu0 0.0
        %631 = vmatprep.mubr.f32.mxu0 0.0
        %632 = vmatmul.mubr.f32.gmra.mxu0 %v544
        %v633 = vpop.f32.mrf.mxu0
        %v634 = vadd.f32 0.0, %v633
        %v635 = vpop.f32.mrf.mxu0
        %636 = vmatprep.mubr.f32.mxu0 0.0
        %637 = vmatmul.mubr.f32.gmra.mxu0 %v547
        %v638 = vpop.f32.mrf.mxu0
        %v639 = vadd.f32 0.0, %v638
        %v640 = vpop.f32.mrf.mxu0
        %641 = vmatprep.mubr.f32.mxu0 0.0
        %642 = vmatmul.mubr.f32.gmra.mxu0 %v550
        %v643 = vpop.f32.mrf.mxu0
        %v644 = vadd.f32 0.0, %v643
        %v645 = vpop.f32.mrf.mxu0
        %646 = vmatprep.mubr.f32.mxu0 0.0
        %647 = vmatmul.mubr.f32.gmra.mxu0 %v553
        %v648 = vpop.f32.mrf.mxu0
        %v649 = vadd.f32 0.0, %v648
        %v650 = vpop.f32.mrf.mxu0
        %651 = vmatprep.mubr.f32.mxu0 0.0
        %652 = vmatmul.mubr.f32.gmra.mxu0 %v556
        %v653 = vpop.f32.mrf.mxu0
        %v654 = vadd.f32 0.0, %v653
        %v655 = vpop.f32.mrf.mxu0
        %656 = vmatprep.mubr.f32.mxu0 0.0
        %657 = vmatmul.mubr.f32.gmra.mxu0 %v559
        %v658 = vpop.f32.mrf.mxu0
        %v659 = vadd.f32 0.0, %v658
        %v660 = vpop.f32.mrf.mxu0
        %661 = vmatprep.mubr.f32.mxu0 0.0
        %662 = vmatmul.mubr.f32.gmra.mxu0 %v562
        %v663 = vpop.f32.mrf.mxu0
        %v664 = vadd.f32 0.0, %v663
        %v665 = vpop.f32.mrf.mxu0
        %666 = vmatprep.mubr.f32.mxu0 0.0
        %667 = vmatmul.mubr.f32.gmra.mxu0 %v565
        %v668 = vpop.f32.mrf.mxu0
        %v669 = vadd.f32 0.0, %v668
        %v670 = vpop.f32.mrf.mxu0
        %671 = vdwg.mxu0
        %s672 = scalar_lea.vmem [#allocation2], 16
        %v673 = vld [vmem:[%s672] sm:$0xff]
        %v674 = vld [vmem:[%s672 + $0x8] sm:$0xff]
        %675 = vmatprep.subr.mxu0 0.0
        %676 = vmatpush1.msra.mxu0 0.0
        %677 = vmatprep.subr.mxu0 0.0
        %678 = vmatpush1.msra.mxu0 0.0
        %679 = vmatprep.subr.mxu0 0.0
        %680 = vmatpush1.msra.mxu0 0.0
        %681 = vmatprep.subr.mxu0 0.0
        %682 = vmatpush1.msra.mxu0 0.0
        %683 = vmatprep.subr.mxu0 0.0
        %684 = vmatpush1.msra.mxu0 0.0
        %685 = vmatprep.subr.mxu0 0.0
        %686 = vmatpush1.msra.mxu0 0.0
        %687 = vmatprep.subr.mxu0 0.0
        %688 = vmatpush1.msra.mxu0 0.0
        %689 = vmatprep.subr.mxu0 0.0
        %690 = vmatpush1.msra.mxu0 0.0
        %691 = vmatprep.subr.mxu0 0.0
        %692 = vmatpush1.msra.mxu0 0.0
        %693 = vmatprep.subr.mxu0 0.0
        %694 = vmatpush1.msra.mxu0 0.0
        %695 = vmatprep.subr.mxu0 0.0
        %696 = vmatpush1.msra.mxu0 0.0
        %697 = vmatprep.subr.mxu0 0.0
        %698 = vmatpush1.msra.mxu0 0.0
        %699 = vmatprep.subr.mxu0 0.0
        %700 = vmatpush1.msra.mxu0 0.0
        %701 = vmatprep.subr.mxu0 0.0
        %702 = vmatpush1.msra.mxu0 0.0
        %703 = vmatprep.subr.mxu0 0.0
        %704 = vmatpush1.msra.mxu0 %v674
        %705 = vmatprep.subr.mxu0 0.0
        %706 = vmatpush1.msra.mxu0 %v673
        %707 = vmatprep.subr.mxu0 0.0
        %708 = vmatpush2.msra.mxu0 0.0
        %709 = vmatprep.subr.mxu0 0.0
        %710 = vmatpush2.msra.mxu0 0.0
        %711 = vmatprep.subr.mxu0 0.0
        %712 = vmatpush2.msra.mxu0 0.0
        %713 = vmatprep.subr.mxu0 0.0
        %714 = vmatpush2.msra.mxu0 0.0
        %715 = vmatprep.subr.mxu0 0.0
        %716 = vmatpush2.msra.mxu0 0.0
        %717 = vmatprep.subr.mxu0 0.0
        %718 = vmatpush2.msra.mxu0 0.0
        %719 = vmatprep.subr.mxu0 0.0
        %720 = vmatpush2.msra.mxu0 0.0
        %721 = vmatprep.subr.mxu0 0.0
        %722 = vmatpush2.msra.mxu0 0.0
        %723 = vmatprep.subr.mxu0 0.0
        %724 = vmatpush2.msra.mxu0 0.0
        %725 = vmatprep.subr.mxu0 0.0
        %726 = vmatpush2.msra.mxu0 0.0
        %727 = vmatprep.subr.mxu0 0.0
        %728 = vmatpush2.msra.mxu0 0.0
        %729 = vmatprep.subr.mxu0 0.0
        %730 = vmatpush2.msra.mxu0 0.0
        %731 = vmatprep.subr.mxu0 0.0
        %732 = vmatpush2.msra.mxu0 0.0
        %733 = vmatprep.subr.mxu0 0.0
        %734 = vmatpush2.msra.mxu0 0.0
        %735 = vmatprep.subr.mxu0 0.0
        %736 = vmatpush2.msra.mxu0 0.0
        %737 = vmatprep.subr.mxu0 0.0
        %738 = vmatpush2.msra.mxu0 0.0
        %739 = vmatprep.mubr.f32.mxu0 0.0
        %740 = vmatmul.mubr.f32.gmra.mxu0 %v544
        %v741 = vpop.f32.mrf.mxu0
        %v742 = vadd.f32 0.0, %v741
        %v743 = vpop.f32.mrf.mxu0
        %744 = vmatprep.mubr.f32.mxu0 0.0
        %745 = vmatmul.mubr.f32.gmra.mxu0 %v547
        %v746 = vpop.f32.mrf.mxu0
        %v747 = vadd.f32 0.0, %v746
        %v748 = vpop.f32.mrf.mxu0
        %749 = vmatprep.mubr.f32.mxu0 0.0
        %750 = vmatmul.mubr.f32.gmra.mxu0 %v550
        %v751 = vpop.f32.mrf.mxu0
        %v752 = vadd.f32 0.0, %v751
        %v753 = vpop.f32.mrf.mxu0
        %754 = vmatprep.mubr.f32.mxu0 0.0
        %755 = vmatmul.mubr.f32.gmra.mxu0 %v553
        %v756 = vpop.f32.mrf.mxu0
        %v757 = vadd.f32 0.0, %v756
        %v758 = vpop.f32.mrf.mxu0
        %759 = vmatprep.mubr.f32.mxu0 0.0
        %760 = vmatmul.mubr.f32.gmra.mxu0 %v556
        %v761 = vpop.f32.mrf.mxu0
        %v762 = vadd.f32 0.0, %v761
        %v763 = vpop.f32.mrf.mxu0
        %764 = vmatprep.mubr.f32.mxu0 0.0
        %765 = vmatmul.mubr.f32.gmra.mxu0 %v559
        %v766 = vpop.f32.mrf.mxu0
        %v767 = vadd.f32 0.0, %v766
        %v768 = vpop.f32.mrf.mxu0
        %769 = vmatprep.mubr.f32.mxu0 0.0
        %770 = vmatmul.mubr.f32.gmra.mxu0 %v562
        %v771 = vpop.f32.mrf.mxu0
        %v772 = vadd.f32 0.0, %v771
        %v773 = vpop.f32.mrf.mxu0
        %774 = vmatprep.mubr.f32.mxu0 0.0
        %775 = vmatmul.mubr.f32.gmra.mxu0 %v565
        %v776 = vpop.f32.mrf.mxu0
        %v777 = vadd.f32 0.0, %v776
        %v778 = vpop.f32.mrf.mxu0
        %779 = vdwg.mxu0
        %s780 = scalar_lea.vmem [#allocation2], 32
        %v781 = vld [vmem:[%s780] sm:$0xff]
        %v782 = vld [vmem:[%s780 + $0x8] sm:$0xff]
        %783 = vmatprep.subr.mxu0 0.0
        %784 = vmatpush1.msra.mxu0 0.0
        %785 = vmatprep.subr.mxu0 0.0
        %786 = vmatpush1.msra.mxu0 0.0
        %787 = vmatprep.subr.mxu0 0.0
        %788 = vmatpush1.msra.mxu0 0.0
        %789 = vmatprep.subr.mxu0 0.0
        %790 = vmatpush1.msra.mxu0 0.0
        %791 = vmatprep.subr.mxu0 0.0
        %792 = vmatpush1.msra.mxu0 0.0
        %793 = vmatprep.subr.mxu0 0.0
        %794 = vmatpush1.msra.mxu0 0.0
        %795 = vmatprep.subr.mxu0 0.0
        %796 = vmatpush1.msra.mxu0 0.0
        %797 = vmatprep.subr.mxu0 0.0
        %798 = vmatpush1.msra.mxu0 0.0
        %799 = vmatprep.subr.mxu0 0.0
        %800 = vmatpush1.msra.mxu0 0.0
        %801 = vmatprep.subr.mxu0 0.0
        %802 = vmatpush1.msra.mxu0 0.0
        %803 = vmatprep.subr.mxu0 0.0
        %804 = vmatpush1.msra.mxu0 0.0
        %805 = vmatprep.subr.mxu0 0.0
        %806 = vmatpush1.msra.mxu0 0.0
        %807 = vmatprep.subr.mxu0 0.0
        %808 = vmatpush1.msra.mxu0 0.0
        %809 = vmatprep.subr.mxu0 0.0
        %810 = vmatpush1.msra.mxu0 0.0
        %811 = vmatprep.subr.mxu0 0.0
        %812 = vmatpush1.msra.mxu0 %v782
        %813 = vmatprep.subr.mxu0 0.0
        %814 = vmatpush1.msra.mxu0 %v781
        %815 = vmatprep.subr.mxu0 0.0
        %816 = vmatpush2.msra.mxu0 0.0
        %817 = vmatprep.subr.mxu0 0.0
        %818 = vmatpush2.msra.mxu0 0.0
        %819 = vmatprep.subr.mxu0 0.0
        %820 = vmatpush2.msra.mxu0 0.0
        %821 = vmatprep.subr.mxu0 0.0
        %822 = vmatpush2.msra.mxu0 0.0
        %823 = vmatprep.subr.mxu0 0.0
        %824 = vmatpush2.msra.mxu0 0.0
        %825 = vmatprep.subr.mxu0 0.0
        %826 = vmatpush2.msra.mxu0 0.0
        %827 = vmatprep.subr.mxu0 0.0
        %828 = vmatpush2.msra.mxu0 0.0
        %829 = vmatprep.subr.mxu0 0.0
        %830 = vmatpush2.msra.mxu0 0.0
        %831 = vmatprep.subr.mxu0 0.0
        %832 = vmatpush2.msra.mxu0 0.0
        %833 = vmatprep.subr.mxu0 0.0
        %834 = vmatpush2.msra.mxu0 0.0
        %835 = vmatprep.subr.mxu0 0.0
        %836 = vmatpush2.msra.mxu0 0.0
        %837 = vmatprep.subr.mxu0 0.0
        %838 = vmatpush2.msra.mxu0 0.0
        %839 = vmatprep.subr.mxu0 0.0
        %840 = vmatpush2.msra.mxu0 0.0
        %841 = vmatprep.subr.mxu0 0.0
        %842 = vmatpush2.msra.mxu0 0.0
        %843 = vmatprep.subr.mxu0 0.0
        %844 = vmatpush2.msra.mxu0 0.0
        %845 = vmatprep.subr.mxu0 0.0
        %846 = vmatpush2.msra.mxu0 0.0
        %847 = vmatprep.mubr.f32.mxu0 0.0
        %848 = vmatmul.mubr.f32.gmra.mxu0 %v544
        %v849 = vpop.f32.mrf.mxu0
        %v850 = vadd.f32 0.0, %v849
        %v851 = vpop.f32.mrf.mxu0
        %852 = vmatprep.mubr.f32.mxu0 0.0
        %853 = vmatmul.mubr.f32.gmra.mxu0 %v547
        %v854 = vpop.f32.mrf.mxu0
        %v855 = vadd.f32 0.0, %v854
        %v856 = vpop.f32.mrf.mxu0
        %857 = vmatprep.mubr.f32.mxu0 0.0
        %858 = vmatmul.mubr.f32.gmra.mxu0 %v550
        %v859 = vpop.f32.mrf.mxu0
        %v860 = vadd.f32 0.0, %v859
        %v861 = vpop.f32.mrf.mxu0
        %862 = vmatprep.mubr.f32.mxu0 0.0
        %863 = vmatmul.mubr.f32.gmra.mxu0 %v553
        %v864 = vpop.f32.mrf.mxu0
        %v865 = vadd.f32 0.0, %v864
        %v866 = vpop.f32.mrf.mxu0
        %867 = vmatprep.mubr.f32.mxu0 0.0
        %868 = vmatmul.mubr.f32.gmra.mxu0 %v556
        %v869 = vpop.f32.mrf.mxu0
        %v870 = vadd.f32 0.0, %v869
        %v871 = vpop.f32.mrf.mxu0
        %872 = vmatprep.mubr.f32.mxu0 0.0
        %873 = vmatmul.mubr.f32.gmra.mxu0 %v559
        %v874 = vpop.f32.mrf.mxu0
        %v875 = vadd.f32 0.0, %v874
        %v876 = vpop.f32.mrf.mxu0
        %877 = vmatprep.mubr.f32.mxu0 0.0
        %878 = vmatmul.mubr.f32.gmra.mxu0 %v562
        %v879 = vpop.f32.mrf.mxu0
        %v880 = vadd.f32 0.0, %v879
        %v881 = vpop.f32.mrf.mxu0
        %882 = vmatprep.mubr.f32.mxu0 0.0
        %883 = vmatmul.mubr.f32.gmra.mxu0 %v565
        %v884 = vpop.f32.mrf.mxu0
        %v885 = vadd.f32 0.0, %v884
        %v886 = vpop.f32.mrf.mxu0
        %887 = vdwg.mxu0
        %s888 = scalar_lea.vmem [#allocation5], 64
        %v889 = vld [vmem:[%s888] sm:$0xff]
        %v890 = vld [vmem:[%s888 + $0x8] sm:$0xff]
        %v891 = vld [vmem:[%s888 + $0x10] sm:$0xff]
        %v892 = vld [vmem:[%s888 + $0x18] sm:$0xff]
        %v893 = vld [vmem:[%s888 + $0x20] sm:$0xff]
        %v894 = vld [vmem:[%s888 + $0x28] sm:$0xff]
        %v895 = vld [vmem:[%s888 + $0x30] sm:$0xff]
        %v896 = vld [vmem:[%s888 + $0x38] sm:$0xff]
        %vm897 = vcmask 523264
        %v899 = vsel %vm897, %v889, 0
        %v902 = vsel %vm897, %v890, 0
        %v905 = vsel %vm897, %v891, 0
        %v908 = vsel %vm897, %v892, 0
        %v911 = vsel %vm897, %v893, 0
        %v914 = vsel %vm897, %v894, 0
        %v917 = vsel %vm897, %v895, 0
        %v920 = vsel %vm897, %v896, 0
        %922 = vmatprep.subr.mxu0 0.0
        %923 = vmatpush1.msra.mxu0 0.0
        %924 = vmatprep.subr.mxu0 0.0
        %925 = vmatpush1.msra.mxu0 0.0
        %926 = vmatprep.subr.mxu0 0.0
        %927 = vmatpush1.msra.mxu0 0.0
        %928 = vmatprep.subr.mxu0 0.0
        %929 = vmatpush1.msra.mxu0 0.0
        %930 = vmatprep.subr.mxu0 0.0
        %931 = vmatpush1.msra.mxu0 0.0
        %932 = vmatprep.subr.mxu0 0.0
        %933 = vmatpush1.msra.mxu0 0.0
        %934 = vmatprep.subr.mxu0 0.0
        %935 = vmatpush1.msra.mxu0 0.0
        %936 = vmatprep.subr.mxu0 0.0
        %937 = vmatpush1.msra.mxu0 0.0
        %938 = vmatprep.subr.mxu0 0.0
        %939 = vmatpush1.msra.mxu0 %v669
        %940 = vmatprep.subr.mxu0 0.0
        %941 = vmatpush1.msra.mxu0 %v664
        %942 = vmatprep.subr.mxu0 0.0
        %943 = vmatpush1.msra.mxu0 %v659
        %944 = vmatprep.subr.mxu0 0.0
        %945 = vmatpush1.msra.mxu0 %v654
        %946 = vmatprep.subr.mxu0 0.0
        %947 = vmatpush1.msra.mxu0 %v649
        %948 = vmatprep.subr.mxu0 0.0
        %949 = vmatpush1.msra.mxu0 %v644
        %950 = vmatprep.subr.mxu0 0.0
        %951 = vmatpush1.msra.mxu0 %v639
        %952 = vmatprep.subr.mxu0 0.0
        %953 = vmatpush1.msra.mxu0 %v634
        %954 = vmatprep.subr.mxu0 0.0
        %955 = vmatpush2.msra.mxu0 0.0
        %956 = vmatprep.subr.mxu0 0.0
        %957 = vmatpush2.msra.mxu0 0.0
        %958 = vmatprep.subr.mxu0 0.0
        %959 = vmatpush2.msra.mxu0 0.0
        %960 = vmatprep.subr.mxu0 0.0
        %961 = vmatpush2.msra.mxu0 0.0
        %962 = vmatprep.subr.mxu0 0.0
        %963 = vmatpush2.msra.mxu0 0.0
        %964 = vmatprep.subr.mxu0 0.0
        %965 = vmatpush2.msra.mxu0 0.0
        %966 = vmatprep.subr.mxu0 0.0
        %967 = vmatpush2.msra.mxu0 0.0
        %968 = vmatprep.subr.mxu0 0.0
        %969 = vmatpush2.msra.mxu0 0.0
        %970 = vmatprep.subr.mxu0 0.0
        %971 = vmatpush2.msra.mxu0 0.0
        %972 = vmatprep.subr.mxu0 0.0
        %973 = vmatpush2.msra.mxu0 0.0
        %974 = vmatprep.subr.mxu0 0.0
        %975 = vmatpush2.msra.mxu0 0.0
        %976 = vmatprep.subr.mxu0 0.0
        %977 = vmatpush2.msra.mxu0 0.0
        %978 = vmatprep.subr.mxu0 0.0
        %979 = vmatpush2.msra.mxu0 0.0
        %980 = vmatprep.subr.mxu0 0.0
        %981 = vmatpush2.msra.mxu0 0.0
        %982 = vmatprep.subr.mxu0 0.0
        %983 = vmatpush2.msra.mxu0 0.0
        %984 = vmatprep.subr.mxu0 0.0
        %985 = vmatpush2.msra.mxu0 0.0
        %986 = vmatprep.mubr.f32.mxu0 0.0
        %987 = vmatmul.mubr.f32.gmra.mxu0 %v899
        %v988 = vpop.f32.mrf.mxu0
        %v989 = vadd.f32 0.0, %v988
        %v990 = vpop.f32.mrf.mxu0
        %991 = vmatprep.mubr.f32.mxu0 0.0
        %992 = vmatmul.mubr.f32.gmra.mxu0 %v902
        %v993 = vpop.f32.mrf.mxu0
        %v994 = vadd.f32 0.0, %v993
        %v995 = vpop.f32.mrf.mxu0
        %996 = vmatprep.mubr.f32.mxu0 0.0
        %997 = vmatmul.mubr.f32.gmra.mxu0 %v905
        %v998 = vpop.f32.mrf.mxu0
        %v999 = vadd.f32 0.0, %v998
        %v1000 = vpop.f32.mrf.mxu0
        %1001 = vmatprep.mubr.f32.mxu0 0.0
        %1002 = vmatmul.mubr.f32.gmra.mxu0 %v908
        %v1003 = vpop.f32.mrf.mxu0
        %v1004 = vadd.f32 0.0, %v1003
        %v1005 = vpop.f32.mrf.mxu0
        %1006 = vmatprep.mubr.f32.mxu0 0.0
        %1007 = vmatmul.mubr.f32.gmra.mxu0 %v911
        %v1008 = vpop.f32.mrf.mxu0
        %v1009 = vadd.f32 0.0, %v1008
        %v1010 = vpop.f32.mrf.mxu0
        %1011 = vmatprep.mubr.f32.mxu0 0.0
        %1012 = vmatmul.mubr.f32.gmra.mxu0 %v914
        %v1013 = vpop.f32.mrf.mxu0
        %v1014 = vadd.f32 0.0, %v1013
        %v1015 = vpop.f32.mrf.mxu0
        %1016 = vmatprep.mubr.f32.mxu0 0.0
        %1017 = vmatmul.mubr.f32.gmra.mxu0 %v917
        %v1018 = vpop.f32.mrf.mxu0
        %v1019 = vadd.f32 0.0, %v1018
        %v1020 = vpop.f32.mrf.mxu0
        %1021 = vmatprep.mubr.f32.mxu0 0.0
        %1022 = vmatmul.mubr.f32.gmra.mxu0 %v920
        %v1023 = vpop.f32.mrf.mxu0
        %v1024 = vadd.f32 0.0, %v1023
        %v1025 = vpop.f32.mrf.mxu0
        %1026 = vdwg.mxu0
        %v1028 = vsel %vm897, %v532, 0
        %v1031 = vsel %vm897, %v533, 0
        %v1034 = vsel %vm897, %v534, 0
        %v1037 = vsel %vm897, %v535, 0
        %v1040 = vsel %vm897, %v536, 0
        %v1043 = vsel %vm897, %v537, 0
        %v1046 = vsel %vm897, %v538, 0
        %v1049 = vsel %vm897, %v539, 0
        %1051 = vmatprep.subr.mxu0 0.0
        %1052 = vmatpush1.msra.mxu0 0.0
        %1053 = vmatprep.subr.mxu0 0.0
        %1054 = vmatpush1.msra.mxu0 0.0
        %1055 = vmatprep.subr.mxu0 0.0
        %1056 = vmatpush1.msra.mxu0 0.0
        %1057 = vmatprep.subr.mxu0 0.0
        %1058 = vmatpush1.msra.mxu0 0.0
        %1059 = vmatprep.subr.mxu0 0.0
        %1060 = vmatpush1.msra.mxu0 0.0
        %1061 = vmatprep.subr.mxu0 0.0
        %1062 = vmatpush1.msra.mxu0 0.0
        %1063 = vmatprep.subr.mxu0 0.0
        %1064 = vmatpush1.msra.mxu0 0.0
        %1065 = vmatprep.subr.mxu0 0.0
        %1066 = vmatpush1.msra.mxu0 0.0
        %1067 = vmatprep.subr.mxu0 0.0
        %1068 = vmatpush1.msra.mxu0 %v516
        %1069 = vmatprep.subr.mxu0 0.0
        %1070 = vmatpush1.msra.mxu0 %v484
        %1071 = vmatprep.subr.mxu0 0.0
        %1072 = vmatpush1.msra.mxu0 %v452
        %1073 = vmatprep.subr.mxu0 0.0
        %1074 = vmatpush1.msra.mxu0 %v420
        %1075 = vmatprep.subr.mxu0 0.0
        %1076 = vmatpush1.msra.mxu0 %v388
        %1077 = vmatprep.subr.mxu0 0.0
        %1078 = vmatpush1.msra.mxu0 %v356
        %1079 = vmatprep.subr.mxu0 0.0
        %1080 = vmatpush1.msra.mxu0 %v324
        %1081 = vmatprep.subr.mxu0 0.0
        %1082 = vmatpush1.msra.mxu0 %v292
        %1083 = vmatprep.subr.mxu0 0.0
        %1084 = vmatpush2.msra.mxu0 0.0
        %1085 = vmatprep.subr.mxu0 0.0
        %1086 = vmatpush2.msra.mxu0 0.0
        %1087 = vmatprep.subr.mxu0 0.0
        %1088 = vmatpush2.msra.mxu0 0.0
        %1089 = vmatprep.subr.mxu0 0.0
        %1090 = vmatpush2.msra.mxu0 0.0
        %1091 = vmatprep.subr.mxu0 0.0
        %1092 = vmatpush2.msra.mxu0 0.0
        %1093 = vmatprep.subr.mxu0 0.0
        %1094 = vmatpush2.msra.mxu0 0.0
        %1095 = vmatprep.subr.mxu0 0.0
        %1096 = vmatpush2.msra.mxu0 0.0
        %1097 = vmatprep.subr.mxu0 0.0
        %1098 = vmatpush2.msra.mxu0 0.0
        %1099 = vmatprep.subr.mxu0 0.0
        %1100 = vmatpush2.msra.mxu0 0.0
        %1101 = vmatprep.subr.mxu0 0.0
        %1102 = vmatpush2.msra.mxu0 0.0
        %1103 = vmatprep.subr.mxu0 0.0
        %1104 = vmatpush2.msra.mxu0 0.0
        %1105 = vmatprep.subr.mxu0 0.0
        %1106 = vmatpush2.msra.mxu0 0.0
        %1107 = vmatprep.subr.mxu0 0.0
        %1108 = vmatpush2.msra.mxu0 0.0
        %1109 = vmatprep.subr.mxu0 0.0
        %1110 = vmatpush2.msra.mxu0 0.0
        %1111 = vmatprep.subr.mxu0 0.0
        %1112 = vmatpush2.msra.mxu0 0.0
        %1113 = vmatprep.subr.mxu0 0.0
        %1114 = vmatpush2.msra.mxu0 0.0
        %1115 = vmatprep.mubr.f32.mxu0 0.0
        %1116 = vmatmul.mubr.f32.gmra.mxu0 %v1028
        %v1117 = vpop.f32.mrf.mxu0
        %v1118 = vadd.f32 %v989, %v1117
        %v1119 = vpop.f32.mrf.mxu0
        %1120 = vmatprep.mubr.f32.mxu0 0.0
        %1121 = vmatmul.mubr.f32.gmra.mxu0 %v1031
        %v1122 = vpop.f32.mrf.mxu0
        %v1123 = vadd.f32 %v994, %v1122
        %v1124 = vpop.f32.mrf.mxu0
        %1125 = vmatprep.mubr.f32.mxu0 0.0
        %1126 = vmatmul.mubr.f32.gmra.mxu0 %v1034
        %v1127 = vpop.f32.mrf.mxu0
        %v1128 = vadd.f32 %v999, %v1127
        %v1129 = vpop.f32.mrf.mxu0
        %1130 = vmatprep.mubr.f32.mxu0 0.0
        %1131 = vmatmul.mubr.f32.gmra.mxu0 %v1037
        %v1132 = vpop.f32.mrf.mxu0
        %v1133 = vadd.f32 %v1004, %v1132
        %v1134 = vpop.f32.mrf.mxu0
        %1135 = vmatprep.mubr.f32.mxu0 0.0
        %1136 = vmatmul.mubr.f32.gmra.mxu0 %v1040
        %v1137 = vpop.f32.mrf.mxu0
        %v1138 = vadd.f32 %v1009, %v1137
        %v1139 = vpop.f32.mrf.mxu0
        %1140 = vmatprep.mubr.f32.mxu0 0.0
        %1141 = vmatmul.mubr.f32.gmra.mxu0 %v1043
        %v1142 = vpop.f32.mrf.mxu0
        %v1143 = vadd.f32 %v1014, %v1142
        %v1144 = vpop.f32.mrf.mxu0
        %1145 = vmatprep.mubr.f32.mxu0 0.0
        %1146 = vmatmul.mubr.f32.gmra.mxu0 %v1046
        %v1147 = vpop.f32.mrf.mxu0
        %v1148 = vadd.f32 %v1019, %v1147
        %v1149 = vpop.f32.mrf.mxu0
        %1150 = vmatprep.mubr.f32.mxu0 0.0
        %1151 = vmatmul.mubr.f32.gmra.mxu0 %v1049
        %v1152 = vpop.f32.mrf.mxu0
        %v1153 = vadd.f32 %v1024, %v1152
        %v1154 = vpop.f32.mrf.mxu0
        %1155 = vdwg.mxu0
        %s1156 = scalar_lea.vmem [#allocation5], 192
        %v1157 = vld [vmem:[%s1156] sm:$0xff]
        %v1158 = vld [vmem:[%s1156 + $0x8] sm:$0xff]
        %v1159 = vld [vmem:[%s1156 + $0x10] sm:$0xff]
        %v1160 = vld [vmem:[%s1156 + $0x18] sm:$0xff]
        %v1161 = vld [vmem:[%s1156 + $0x20] sm:$0xff]
        %v1162 = vld [vmem:[%s1156 + $0x28] sm:$0xff]
        %v1163 = vld [vmem:[%s1156 + $0x30] sm:$0xff]
        %v1164 = vld [vmem:[%s1156 + $0x38] sm:$0xff]
        %v1166 = vsel %vm897, %v1157, 0
        %v1169 = vsel %vm897, %v1158, 0
        %v1172 = vsel %vm897, %v1159, 0
        %v1175 = vsel %vm897, %v1160, 0
        %v1178 = vsel %vm897, %v1161, 0
        %v1181 = vsel %vm897, %v1162, 0
        %v1184 = vsel %vm897, %v1163, 0
        %v1187 = vsel %vm897, %v1164, 0
        %1189 = vmatprep.subr.mxu0 0.0
        %1190 = vmatpush1.msra.mxu0 0.0
        %1191 = vmatprep.subr.mxu0 0.0
        %1192 = vmatpush1.msra.mxu0 0.0
        %1193 = vmatprep.subr.mxu0 0.0
        %1194 = vmatpush1.msra.mxu0 0.0
        %1195 = vmatprep.subr.mxu0 0.0
        %1196 = vmatpush1.msra.mxu0 0.0
        %1197 = vmatprep.subr.mxu0 0.0
        %1198 = vmatpush1.msra.mxu0 0.0
        %1199 = vmatprep.subr.mxu0 0.0
        %1200 = vmatpush1.msra.mxu0 0.0
        %1201 = vmatprep.subr.mxu0 0.0
        %1202 = vmatpush1.msra.mxu0 0.0
        %1203 = vmatprep.subr.mxu0 0.0
        %1204 = vmatpush1.msra.mxu0 0.0
        %1205 = vmatprep.subr.mxu0 0.0
        %1206 = vmatpush1.msra.mxu0 %v777
        %1207 = vmatprep.subr.mxu0 0.0
        %1208 = vmatpush1.msra.mxu0 %v772
        %1209 = vmatprep.subr.mxu0 0.0
        %1210 = vmatpush1.msra.mxu0 %v767
        %1211 = vmatprep.subr.mxu0 0.0
        %1212 = vmatpush1.msra.mxu0 %v762
        %1213 = vmatprep.subr.mxu0 0.0
        %1214 = vmatpush1.msra.mxu0 %v757
        %1215 = vmatprep.subr.mxu0 0.0
        %1216 = vmatpush1.msra.mxu0 %v752
        %1217 = vmatprep.subr.mxu0 0.0
        %1218 = vmatpush1.msra.mxu0 %v747
        %1219 = vmatprep.subr.mxu0 0.0
        %1220 = vmatpush1.msra.mxu0 %v742
        %1221 = vmatprep.subr.mxu0 0.0
        %1222 = vmatpush2.msra.mxu0 0.0
        %1223 = vmatprep.subr.mxu0 0.0
        %1224 = vmatpush2.msra.mxu0 0.0
        %1225 = vmatprep.subr.mxu0 0.0
        %1226 = vmatpush2.msra.mxu0 0.0
        %1227 = vmatprep.subr.mxu0 0.0
        %1228 = vmatpush2.msra.mxu0 0.0
        %1229 = vmatprep.subr.mxu0 0.0
        %1230 = vmatpush2.msra.mxu0 0.0
        %1231 = vmatprep.subr.mxu0 0.0
        %1232 = vmatpush2.msra.mxu0 0.0
        %1233 = vmatprep.subr.mxu0 0.0
        %1234 = vmatpush2.msra.mxu0 0.0
        %1235 = vmatprep.subr.mxu0 0.0
        %1236 = vmatpush2.msra.mxu0 0.0
        %1237 = vmatprep.subr.mxu0 0.0
        %1238 = vmatpush2.msra.mxu0 0.0
        %1239 = vmatprep.subr.mxu0 0.0
        %1240 = vmatpush2.msra.mxu0 0.0
        %1241 = vmatprep.subr.mxu0 0.0
        %1242 = vmatpush2.msra.mxu0 0.0
        %1243 = vmatprep.subr.mxu0 0.0
        %1244 = vmatpush2.msra.mxu0 0.0
        %1245 = vmatprep.subr.mxu0 0.0
        %1246 = vmatpush2.msra.mxu0 0.0
        %1247 = vmatprep.subr.mxu0 0.0
        %1248 = vmatpush2.msra.mxu0 0.0
        %1249 = vmatprep.subr.mxu0 0.0
        %1250 = vmatpush2.msra.mxu0 0.0
        %1251 = vmatprep.subr.mxu0 0.0
        %1252 = vmatpush2.msra.mxu0 0.0
        %1253 = vmatprep.mubr.f32.mxu0 0.0
        %1254 = vmatmul.mubr.f32.gmra.mxu0 %v1166
        %v1255 = vpop.f32.mrf.mxu0
        %v1256 = vadd.f32 0.0, %v1255
        %v1257 = vpop.f32.mrf.mxu0
        %1258 = vmatprep.mubr.f32.mxu0 0.0
        %1259 = vmatmul.mubr.f32.gmra.mxu0 %v1169
        %v1260 = vpop.f32.mrf.mxu0
        %v1261 = vadd.f32 0.0, %v1260
        %v1262 = vpop.f32.mrf.mxu0
        %1263 = vmatprep.mubr.f32.mxu0 0.0
        %1264 = vmatmul.mubr.f32.gmra.mxu0 %v1172
        %v1265 = vpop.f32.mrf.mxu0
        %v1266 = vadd.f32 0.0, %v1265
        %v1267 = vpop.f32.mrf.mxu0
        %1268 = vmatprep.mubr.f32.mxu0 0.0
        %1269 = vmatmul.mubr.f32.gmra.mxu0 %v1175
        %v1270 = vpop.f32.mrf.mxu0
        %v1271 = vadd.f32 0.0, %v1270
        %v1272 = vpop.f32.mrf.mxu0
        %1273 = vmatprep.mubr.f32.mxu0 0.0
        %1274 = vmatmul.mubr.f32.gmra.mxu0 %v1178
        %v1275 = vpop.f32.mrf.mxu0
        %v1276 = vadd.f32 0.0, %v1275
        %v1277 = vpop.f32.mrf.mxu0
        %1278 = vmatprep.mubr.f32.mxu0 0.0
        %1279 = vmatmul.mubr.f32.gmra.mxu0 %v1181
        %v1280 = vpop.f32.mrf.mxu0
        %v1281 = vadd.f32 0.0, %v1280
        %v1282 = vpop.f32.mrf.mxu0
        %1283 = vmatprep.mubr.f32.mxu0 0.0
        %1284 = vmatmul.mubr.f32.gmra.mxu0 %v1184
        %v1285 = vpop.f32.mrf.mxu0
        %v1286 = vadd.f32 0.0, %v1285
        %v1287 = vpop.f32.mrf.mxu0
        %1288 = vmatprep.mubr.f32.mxu0 0.0
        %1289 = vmatmul.mubr.f32.gmra.mxu0 %v1187
        %v1290 = vpop.f32.mrf.mxu0
        %v1291 = vadd.f32 0.0, %v1290
        %v1292 = vpop.f32.mrf.mxu0
        %1293 = vdwg.mxu0
        %v1294 = vadd.f32 %v1118, %v1256
        %v1295 = vadd.f32 %v1123, %v1261
        %v1296 = vadd.f32 %v1128, %v1266
        %v1297 = vadd.f32 %v1133, %v1271
        %v1298 = vadd.f32 %v1138, %v1276
        %v1299 = vadd.f32 %v1143, %v1281
        %v1300 = vadd.f32 %v1148, %v1286
        %v1301 = vadd.f32 %v1153, %v1291
        %s1302 = scalar_lea.vmem [#allocation5], 320
        %v1303 = vld [vmem:[%s1302] sm:$0xff]
        %v1304 = vld [vmem:[%s1302 + $0x8] sm:$0xff]
        %v1305 = vld [vmem:[%s1302 + $0x10] sm:$0xff]
        %v1306 = vld [vmem:[%s1302 + $0x18] sm:$0xff]
        %v1307 = vld [vmem:[%s1302 + $0x20] sm:$0xff]
        %v1308 = vld [vmem:[%s1302 + $0x28] sm:$0xff]
        %v1309 = vld [vmem:[%s1302 + $0x30] sm:$0xff]
        %v1310 = vld [vmem:[%s1302 + $0x38] sm:$0xff]
        %v1312 = vsel %vm897, %v1303, 0
        %v1315 = vsel %vm897, %v1304, 0
        %v1318 = vsel %vm897, %v1305, 0
        %v1321 = vsel %vm897, %v1306, 0
        %v1324 = vsel %vm897, %v1307, 0
        %v1327 = vsel %vm897, %v1308, 0
        %v1330 = vsel %vm897, %v1309, 0
        %v1333 = vsel %vm897, %v1310, 0
        %1335 = vmatprep.subr.mxu0 0.0
        %1336 = vmatpush1.msra.mxu0 0.0
        %1337 = vmatprep.subr.mxu0 0.0
        %1338 = vmatpush1.msra.mxu0 0.0
        %1339 = vmatprep.subr.mxu0 0.0
        %1340 = vmatpush1.msra.mxu0 0.0
        %1341 = vmatprep.subr.mxu0 0.0
        %1342 = vmatpush1.msra.mxu0 0.0
        %1343 = vmatprep.subr.mxu0 0.0
        %1344 = vmatpush1.msra.mxu0 0.0
        %1345 = vmatprep.subr.mxu0 0.0
        %1346 = vmatpush1.msra.mxu0 0.0
        %1347 = vmatprep.subr.mxu0 0.0
        %1348 = vmatpush1.msra.mxu0 0.0
        %1349 = vmatprep.subr.mxu0 0.0
        %1350 = vmatpush1.msra.mxu0 0.0
        %1351 = vmatprep.subr.mxu0 0.0
        %1352 = vmatpush1.msra.mxu0 %v885
        %1353 = vmatprep.subr.mxu0 0.0
        %1354 = vmatpush1.msra.mxu0 %v880
        %1355 = vmatprep.subr.mxu0 0.0
        %1356 = vmatpush1.msra.mxu0 %v875
        %1357 = vmatprep.subr.mxu0 0.0
        %1358 = vmatpush1.msra.mxu0 %v870
        %1359 = vmatprep.subr.mxu0 0.0
        %1360 = vmatpush1.msra.mxu0 %v865
        %1361 = vmatprep.subr.mxu0 0.0
        %1362 = vmatpush1.msra.mxu0 %v860
        %1363 = vmatprep.subr.mxu0 0.0
        %1364 = vmatpush1.msra.mxu0 %v855
        %1365 = vmatprep.subr.mxu0 0.0
        %1366 = vmatpush1.msra.mxu0 %v850
        %1367 = vmatprep.subr.mxu0 0.0
        %1368 = vmatpush2.msra.mxu0 0.0
        %1369 = vmatprep.subr.mxu0 0.0
        %1370 = vmatpush2.msra.mxu0 0.0
        %1371 = vmatprep.subr.mxu0 0.0
        %1372 = vmatpush2.msra.mxu0 0.0
        %1373 = vmatprep.subr.mxu0 0.0
        %1374 = vmatpush2.msra.mxu0 0.0
        %1375 = vmatprep.subr.mxu0 0.0
        %1376 = vmatpush2.msra.mxu0 0.0
        %1377 = vmatprep.subr.mxu0 0.0
        %1378 = vmatpush2.msra.mxu0 0.0
        %1379 = vmatprep.subr.mxu0 0.0
        %1380 = vmatpush2.msra.mxu0 0.0
        %1381 = vmatprep.subr.mxu0 0.0
        %1382 = vmatpush2.msra.mxu0 0.0
        %1383 = vmatprep.subr.mxu0 0.0
        %1384 = vmatpush2.msra.mxu0 0.0
        %1385 = vmatprep.subr.mxu0 0.0
        %1386 = vmatpush2.msra.mxu0 0.0
        %1387 = vmatprep.subr.mxu0 0.0
        %1388 = vmatpush2.msra.mxu0 0.0
        %1389 = vmatprep.subr.mxu0 0.0
        %1390 = vmatpush2.msra.mxu0 0.0
        %1391 = vmatprep.subr.mxu0 0.0
        %1392 = vmatpush2.msra.mxu0 0.0
        %1393 = vmatprep.subr.mxu0 0.0
        %1394 = vmatpush2.msra.mxu0 0.0
        %1395 = vmatprep.subr.mxu0 0.0
        %1396 = vmatpush2.msra.mxu0 0.0
        %1397 = vmatprep.subr.mxu0 0.0
        %1398 = vmatpush2.msra.mxu0 0.0
        %1399 = vmatprep.mubr.f32.mxu0 0.0
        %1400 = vmatmul.mubr.f32.gmra.mxu0 %v1312
        %v1401 = vpop.f32.mrf.mxu0
        %v1402 = vadd.f32 0.0, %v1401
        %v1403 = vpop.f32.mrf.mxu0
        %1404 = vmatprep.mubr.f32.mxu0 0.0
        %1405 = vmatmul.mubr.f32.gmra.mxu0 %v1315
        %v1406 = vpop.f32.mrf.mxu0
        %v1407 = vadd.f32 0.0, %v1406
        %v1408 = vpop.f32.mrf.mxu0
        %1409 = vmatprep.mubr.f32.mxu0 0.0
        %1410 = vmatmul.mubr.f32.gmra.mxu0 %v1318
        %v1411 = vpop.f32.mrf.mxu0
        %v1412 = vadd.f32 0.0, %v1411
        %v1413 = vpop.f32.mrf.mxu0
        %1414 = vmatprep.mubr.f32.mxu0 0.0
        %1415 = vmatmul.mubr.f32.gmra.mxu0 %v1321
        %v1416 = vpop.f32.mrf.mxu0
        %v1417 = vadd.f32 0.0, %v1416
        %v1418 = vpop.f32.mrf.mxu0
        %1419 = vmatprep.mubr.f32.mxu0 0.0
        %1420 = vmatmul.mubr.f32.gmra.mxu0 %v1324
        %v1421 = vpop.f32.mrf.mxu0
        %v1422 = vadd.f32 0.0, %v1421
        %v1423 = vpop.f32.mrf.mxu0
        %1424 = vmatprep.mubr.f32.mxu0 0.0
        %1425 = vmatmul.mubr.f32.gmra.mxu0 %v1327
        %v1426 = vpop.f32.mrf.mxu0
        %v1427 = vadd.f32 0.0, %v1426
        %v1428 = vpop.f32.mrf.mxu0
        %1429 = vmatprep.mubr.f32.mxu0 0.0
        %1430 = vmatmul.mubr.f32.gmra.mxu0 %v1330
        %v1431 = vpop.f32.mrf.mxu0
        %v1432 = vadd.f32 0.0, %v1431
        %v1433 = vpop.f32.mrf.mxu0
        %1434 = vmatprep.mubr.f32.mxu0 0.0
        %1435 = vmatmul.mubr.f32.gmra.mxu0 %v1333
        %v1436 = vpop.f32.mrf.mxu0
        %v1437 = vadd.f32 0.0, %v1436
        %v1438 = vpop.f32.mrf.mxu0
        %1439 = vdwg.mxu0
        %v1440 = vadd.f32 %v1294, %v1402
        %v1441 = vadd.f32 %v1295, %v1407
        %v1442 = vadd.f32 %v1296, %v1412
        %v1443 = vadd.f32 %v1297, %v1417
        %v1444 = vadd.f32 %v1298, %v1422
        %v1445 = vadd.f32 %v1299, %v1427
        %v1446 = vadd.f32 %v1300, %v1432
        %v1447 = vadd.f32 %v1301, %v1437
        %v1449 = vsel %vm542, %v634, 0
        %v1452 = vsel %vm542, %v639, 0
        %v1455 = vsel %vm542, %v644, 0
        %v1458 = vsel %vm542, %v649, 0
        %v1461 = vsel %vm542, %v654, 0
        %v1464 = vsel %vm542, %v659, 0
        %v1467 = vsel %vm542, %v664, 0
        %v1470 = vsel %vm542, %v669, 0
        %1472 = vmatprep.subr.mxu0 0.0
        %1473 = vmatpush1.msra.mxu0 0.0
        %1474 = vmatprep.subr.mxu0 0.0
        %1475 = vmatpush1.msra.mxu0 0.0
        %1476 = vmatprep.subr.mxu0 0.0
        %1477 = vmatpush1.msra.mxu0 0.0
        %1478 = vmatprep.subr.mxu0 0.0
        %1479 = vmatpush1.msra.mxu0 0.0
        %1480 = vmatprep.subr.mxu0 0.0
        %1481 = vmatpush1.msra.mxu0 0.0
        %1482 = vmatprep.subr.mxu0 0.0
        %1483 = vmatpush1.msra.mxu0 0.0
        %1484 = vmatprep.subr.mxu0 0.0
        %1485 = vmatpush1.msra.mxu0 0.0
        %1486 = vmatprep.subr.mxu0 0.0
        %1487 = vmatpush1.msra.mxu0 0.0
        %1488 = vmatprep.subr.mxu0 0.0
        %1489 = vmatpush1.msra.mxu0 0.0
        %1490 = vmatprep.subr.mxu0 0.0
        %1491 = vmatpush1.msra.mxu0 0.0
        %1492 = vmatprep.subr.mxu0 0.0
        %1493 = vmatpush1.msra.mxu0 0.0
        %1494 = vmatprep.subr.mxu0 0.0
        %1495 = vmatpush1.msra.mxu0 0.0
        %1496 = vmatprep.subr.mxu0 0.0
        %1497 = vmatpush1.msra.mxu0 0.0
        %1498 = vmatprep.subr.mxu0 0.0
        %1499 = vmatpush1.msra.mxu0 0.0
        %1500 = vmatprep.subr.mxu0 0.0
        %1501 = vmatpush1.msra.mxu0 %v541
        %1502 = vmatprep.subr.mxu0 0.0
        %1503 = vmatpush1.msra.mxu0 %v540
        %1504 = vmatprep.subr.mxu0 0.0
        %1505 = vmatpush2.msra.mxu0 0.0
        %1506 = vmatprep.subr.mxu0 0.0
        %1507 = vmatpush2.msra.mxu0 0.0
        %1508 = vmatprep.subr.mxu0 0.0
        %1509 = vmatpush2.msra.mxu0 0.0
        %1510 = vmatprep.subr.mxu0 0.0
        %1511 = vmatpush2.msra.mxu0 0.0
        %1512 = vmatprep.subr.mxu0 0.0
        %1513 = vmatpush2.msra.mxu0 0.0
        %1514 = vmatprep.subr.mxu0 0.0
        %1515 = vmatpush2.msra.mxu0 0.0
        %1516 = vmatprep.subr.mxu0 0.0
        %1517 = vmatpush2.msra.mxu0 0.0
        %1518 = vmatprep.subr.mxu0 0.0
        %1519 = vmatpush2.msra.mxu0 0.0
        %1520 = vmatprep.subr.mxu0 0.0
        %1521 = vmatpush2.msra.mxu0 0.0
        %1522 = vmatprep.subr.mxu0 0.0
        %1523 = vmatpush2.msra.mxu0 0.0
        %1524 = vmatprep.subr.mxu0 0.0
        %1525 = vmatpush2.msra.mxu0 0.0
        %1526 = vmatprep.subr.mxu0 0.0
        %1527 = vmatpush2.msra.mxu0 0.0
        %1528 = vmatprep.subr.mxu0 0.0
        %1529 = vmatpush2.msra.mxu0 0.0
        %1530 = vmatprep.subr.mxu0 0.0
        %1531 = vmatpush2.msra.mxu0 0.0
        %1532 = vmatprep.subr.mxu0 0.0
        %1533 = vmatpush2.msra.mxu0 0.0
        %1534 = vmatprep.subr.mxu0 0.0
        %1535 = vmatpush2.msra.mxu0 0.0
        %1536 = vmatprep.mubr.f32.mxu0 0.0
        %1537 = vmatmul.mubr.f32.gmra.mxu0 %v1449
        %v1538 = vpop.f32.mrf.mxu0
        %v1539 = vadd.f32 0.0, %v1538
        %v1540 = vpop.f32.mrf.mxu0
        %1541 = vmatprep.mubr.f32.mxu0 0.0
        %1542 = vmatmul.mubr.f32.gmra.mxu0 %v1452
        %v1543 = vpop.f32.mrf.mxu0
        %v1544 = vadd.f32 0.0, %v1543
        %v1545 = vpop.f32.mrf.mxu0
        %1546 = vmatprep.mubr.f32.mxu0 0.0
        %1547 = vmatmul.mubr.f32.gmra.mxu0 %v1455
        %v1548 = vpop.f32.mrf.mxu0
        %v1549 = vadd.f32 0.0, %v1548
        %v1550 = vpop.f32.mrf.mxu0
        %1551 = vmatprep.mubr.f32.mxu0 0.0
        %1552 = vmatmul.mubr.f32.gmra.mxu0 %v1458
        %v1553 = vpop.f32.mrf.mxu0
        %v1554 = vadd.f32 0.0, %v1553
        %v1555 = vpop.f32.mrf.mxu0
        %1556 = vmatprep.mubr.f32.mxu0 0.0
        %1557 = vmatmul.mubr.f32.gmra.mxu0 %v1461
        %v1558 = vpop.f32.mrf.mxu0
        %v1559 = vadd.f32 0.0, %v1558
        %v1560 = vpop.f32.mrf.mxu0
        %1561 = vmatprep.mubr.f32.mxu0 0.0
        %1562 = vmatmul.mubr.f32.gmra.mxu0 %v1464
        %v1563 = vpop.f32.mrf.mxu0
        %v1564 = vadd.f32 0.0, %v1563
        %v1565 = vpop.f32.mrf.mxu0
        %1566 = vmatprep.mubr.f32.mxu0 0.0
        %1567 = vmatmul.mubr.f32.gmra.mxu0 %v1467
        %v1568 = vpop.f32.mrf.mxu0
        %v1569 = vadd.f32 0.0, %v1568
        %v1570 = vpop.f32.mrf.mxu0
        %1571 = vmatprep.mubr.f32.mxu0 0.0
        %1572 = vmatmul.mubr.f32.gmra.mxu0 %v1470
        %v1573 = vpop.f32.mrf.mxu0
        %v1574 = vadd.f32 0.0, %v1573
        %v1575 = vpop.f32.mrf.mxu0
        %1576 = vdwg.mxu0
        %v1578 = vsel %vm542, %v742, 0
        %v1581 = vsel %vm542, %v747, 0
        %v1584 = vsel %vm542, %v752, 0
        %v1587 = vsel %vm542, %v757, 0
        %v1590 = vsel %vm542, %v762, 0
        %v1593 = vsel %vm542, %v767, 0
        %v1596 = vsel %vm542, %v772, 0
        %v1599 = vsel %vm542, %v777, 0
        %1601 = vmatprep.subr.mxu0 0.0
        %1602 = vmatpush1.msra.mxu0 0.0
        %1603 = vmatprep.subr.mxu0 0.0
        %1604 = vmatpush1.msra.mxu0 0.0
        %1605 = vmatprep.subr.mxu0 0.0
        %1606 = vmatpush1.msra.mxu0 0.0
        %1607 = vmatprep.subr.mxu0 0.0
        %1608 = vmatpush1.msra.mxu0 0.0
        %1609 = vmatprep.subr.mxu0 0.0
        %1610 = vmatpush1.msra.mxu0 0.0
        %1611 = vmatprep.subr.mxu0 0.0
        %1612 = vmatpush1.msra.mxu0 0.0
        %1613 = vmatprep.subr.mxu0 0.0
        %1614 = vmatpush1.msra.mxu0 0.0
        %1615 = vmatprep.subr.mxu0 0.0
        %1616 = vmatpush1.msra.mxu0 0.0
        %1617 = vmatprep.subr.mxu0 0.0
        %1618 = vmatpush1.msra.mxu0 0.0
        %1619 = vmatprep.subr.mxu0 0.0
        %1620 = vmatpush1.msra.mxu0 0.0
        %1621 = vmatprep.subr.mxu0 0.0
        %1622 = vmatpush1.msra.mxu0 0.0
        %1623 = vmatprep.subr.mxu0 0.0
        %1624 = vmatpush1.msra.mxu0 0.0
        %1625 = vmatprep.subr.mxu0 0.0
        %1626 = vmatpush1.msra.mxu0 0.0
        %1627 = vmatprep.subr.mxu0 0.0
        %1628 = vmatpush1.msra.mxu0 0.0
        %1629 = vmatprep.subr.mxu0 0.0
        %1630 = vmatpush1.msra.mxu0 %v674
        %1631 = vmatprep.subr.mxu0 0.0
        %1632 = vmatpush1.msra.mxu0 %v673
        %1633 = vmatprep.subr.mxu0 0.0
        %1634 = vmatpush2.msra.mxu0 0.0
        %1635 = vmatprep.subr.mxu0 0.0
        %1636 = vmatpush2.msra.mxu0 0.0
        %1637 = vmatprep.subr.mxu0 0.0
        %1638 = vmatpush2.msra.mxu0 0.0
        %1639 = vmatprep.subr.mxu0 0.0
        %1640 = vmatpush2.msra.mxu0 0.0
        %1641 = vmatprep.subr.mxu0 0.0
        %1642 = vmatpush2.msra.mxu0 0.0
        %1643 = vmatprep.subr.mxu0 0.0
        %1644 = vmatpush2.msra.mxu0 0.0
        %1645 = vmatprep.subr.mxu0 0.0
        %1646 = vmatpush2.msra.mxu0 0.0
        %1647 = vmatprep.subr.mxu0 0.0
        %1648 = vmatpush2.msra.mxu0 0.0
        %1649 = vmatprep.subr.mxu0 0.0
        %1650 = vmatpush2.msra.mxu0 0.0
        %1651 = vmatprep.subr.mxu0 0.0
        %1652 = vmatpush2.msra.mxu0 0.0
        %1653 = vmatprep.subr.mxu0 0.0
        %1654 = vmatpush2.msra.mxu0 0.0
        %1655 = vmatprep.subr.mxu0 0.0
        %1656 = vmatpush2.msra.mxu0 0.0
        %1657 = vmatprep.subr.mxu0 0.0
        %1658 = vmatpush2.msra.mxu0 0.0
        %1659 = vmatprep.subr.mxu0 0.0
        %1660 = vmatpush2.msra.mxu0 0.0
        %1661 = vmatprep.subr.mxu0 0.0
        %1662 = vmatpush2.msra.mxu0 0.0
        %1663 = vmatprep.subr.mxu0 0.0
        %1664 = vmatpush2.msra.mxu0 0.0
        %1665 = vmatprep.mubr.f32.mxu0 0.0
        %1666 = vmatmul.mubr.f32.gmra.mxu0 %v1578
        %v1667 = vpop.f32.mrf.mxu0
        %v1668 = vadd.f32 0.0, %v1667
        %v1669 = vpop.f32.mrf.mxu0
        %1670 = vmatprep.mubr.f32.mxu0 0.0
        %1671 = vmatmul.mubr.f32.gmra.mxu0 %v1581
        %v1672 = vpop.f32.mrf.mxu0
        %v1673 = vadd.f32 0.0, %v1672
        %v1674 = vpop.f32.mrf.mxu0
        %1675 = vmatprep.mubr.f32.mxu0 0.0
        %1676 = vmatmul.mubr.f32.gmra.mxu0 %v1584
        %v1677 = vpop.f32.mrf.mxu0
        %v1678 = vadd.f32 0.0, %v1677
        %v1679 = vpop.f32.mrf.mxu0
        %1680 = vmatprep.mubr.f32.mxu0 0.0
        %1681 = vmatmul.mubr.f32.gmra.mxu0 %v1587
        %v1682 = vpop.f32.mrf.mxu0
        %v1683 = vadd.f32 0.0, %v1682
        %v1684 = vpop.f32.mrf.mxu0
        %1685 = vmatprep.mubr.f32.mxu0 0.0
        %1686 = vmatmul.mubr.f32.gmra.mxu0 %v1590
        %v1687 = vpop.f32.mrf.mxu0
        %v1688 = vadd.f32 0.0, %v1687
        %v1689 = vpop.f32.mrf.mxu0
        %1690 = vmatprep.mubr.f32.mxu0 0.0
        %1691 = vmatmul.mubr.f32.gmra.mxu0 %v1593
        %v1692 = vpop.f32.mrf.mxu0
        %v1693 = vadd.f32 0.0, %v1692
        %v1694 = vpop.f32.mrf.mxu0
        %1695 = vmatprep.mubr.f32.mxu0 0.0
        %1696 = vmatmul.mubr.f32.gmra.mxu0 %v1596
        %v1697 = vpop.f32.mrf.mxu0
        %v1698 = vadd.f32 0.0, %v1697
        %v1699 = vpop.f32.mrf.mxu0
        %1700 = vmatprep.mubr.f32.mxu0 0.0
        %1701 = vmatmul.mubr.f32.gmra.mxu0 %v1599
        %v1702 = vpop.f32.mrf.mxu0
        %v1703 = vadd.f32 0.0, %v1702
        %v1704 = vpop.f32.mrf.mxu0
        %1705 = vdwg.mxu0
        %v1707 = vsel %vm542, %v850, 0
        %v1710 = vsel %vm542, %v855, 0
        %v1713 = vsel %vm542, %v860, 0
        %v1716 = vsel %vm542, %v865, 0
        %v1719 = vsel %vm542, %v870, 0
        %v1722 = vsel %vm542, %v875, 0
        %v1725 = vsel %vm542, %v880, 0
        %v1728 = vsel %vm542, %v885, 0
        %1730 = vmatprep.subr.mxu0 0.0
        %1731 = vmatpush1.msra.mxu0 0.0
        %1732 = vmatprep.subr.mxu0 0.0
        %1733 = vmatpush1.msra.mxu0 0.0
        %1734 = vmatprep.subr.mxu0 0.0
        %1735 = vmatpush1.msra.mxu0 0.0
        %1736 = vmatprep.subr.mxu0 0.0
        %1737 = vmatpush1.msra.mxu0 0.0
        %1738 = vmatprep.subr.mxu0 0.0
        %1739 = vmatpush1.msra.mxu0 0.0
        %1740 = vmatprep.subr.mxu0 0.0
        %1741 = vmatpush1.msra.mxu0 0.0
        %1742 = vmatprep.subr.mxu0 0.0
        %1743 = vmatpush1.msra.mxu0 0.0
        %1744 = vmatprep.subr.mxu0 0.0
        %1745 = vmatpush1.msra.mxu0 0.0
        %1746 = vmatprep.subr.mxu0 0.0
        %1747 = vmatpush1.msra.mxu0 0.0
        %1748 = vmatprep.subr.mxu0 0.0
        %1749 = vmatpush1.msra.mxu0 0.0
        %1750 = vmatprep.subr.mxu0 0.0
        %1751 = vmatpush1.msra.mxu0 0.0
        %1752 = vmatprep.subr.mxu0 0.0
        %1753 = vmatpush1.msra.mxu0 0.0
        %1754 = vmatprep.subr.mxu0 0.0
        %1755 = vmatpush1.msra.mxu0 0.0
        %1756 = vmatprep.subr.mxu0 0.0
        %1757 = vmatpush1.msra.mxu0 0.0
        %1758 = vmatprep.subr.mxu0 0.0
        %1759 = vmatpush1.msra.mxu0 %v782
        %1760 = vmatprep.subr.mxu0 0.0
        %1761 = vmatpush1.msra.mxu0 %v781
        %1762 = vmatprep.subr.mxu0 0.0
        %1763 = vmatpush2.msra.mxu0 0.0
        %1764 = vmatprep.subr.mxu0 0.0
        %1765 = vmatpush2.msra.mxu0 0.0
        %1766 = vmatprep.subr.mxu0 0.0
        %1767 = vmatpush2.msra.mxu0 0.0
        %1768 = vmatprep.subr.mxu0 0.0
        %1769 = vmatpush2.msra.mxu0 0.0
        %1770 = vmatprep.subr.mxu0 0.0
        %1771 = vmatpush2.msra.mxu0 0.0
        %1772 = vmatprep.subr.mxu0 0.0
        %1773 = vmatpush2.msra.mxu0 0.0
        %1774 = vmatprep.subr.mxu0 0.0
        %1775 = vmatpush2.msra.mxu0 0.0
        %1776 = vmatprep.subr.mxu0 0.0
        %1777 = vmatpush2.msra.mxu0 0.0
        %1778 = vmatprep.subr.mxu0 0.0
        %1779 = vmatpush2.msra.mxu0 0.0
        %1780 = vmatprep.subr.mxu0 0.0
        %1781 = vmatpush2.msra.mxu0 0.0
        %1782 = vmatprep.subr.mxu0 0.0
        %1783 = vmatpush2.msra.mxu0 0.0
        %1784 = vmatprep.subr.mxu0 0.0
        %1785 = vmatpush2.msra.mxu0 0.0
        %1786 = vmatprep.subr.mxu0 0.0
        %1787 = vmatpush2.msra.mxu0 0.0
        %1788 = vmatprep.subr.mxu0 0.0
        %1789 = vmatpush2.msra.mxu0 0.0
        %1790 = vmatprep.subr.mxu0 0.0
        %1791 = vmatpush2.msra.mxu0 0.0
        %1792 = vmatprep.subr.mxu0 0.0
        %1793 = vmatpush2.msra.mxu0 0.0
        %1794 = vmatprep.mubr.f32.mxu0 0.0
        %1795 = vmatmul.mubr.f32.gmra.mxu0 %v1707
        %v1796 = vpop.f32.mrf.mxu0
        %v1797 = vadd.f32 0.0, %v1796
        %v1798 = vpop.f32.mrf.mxu0
        %1799 = vmatprep.mubr.f32.mxu0 0.0
        %1800 = vmatmul.mubr.f32.gmra.mxu0 %v1710
        %v1801 = vpop.f32.mrf.mxu0
        %v1802 = vadd.f32 0.0, %v1801
        %v1803 = vpop.f32.mrf.mxu0
        %1804 = vmatprep.mubr.f32.mxu0 0.0
        %1805 = vmatmul.mubr.f32.gmra.mxu0 %v1713
        %v1806 = vpop.f32.mrf.mxu0
        %v1807 = vadd.f32 0.0, %v1806
        %v1808 = vpop.f32.mrf.mxu0
        %1809 = vmatprep.mubr.f32.mxu0 0.0
        %1810 = vmatmul.mubr.f32.gmra.mxu0 %v1716
        %v1811 = vpop.f32.mrf.mxu0
        %v1812 = vadd.f32 0.0, %v1811
        %v1813 = vpop.f32.mrf.mxu0
        %1814 = vmatprep.mubr.f32.mxu0 0.0
        %1815 = vmatmul.mubr.f32.gmra.mxu0 %v1719
        %v1816 = vpop.f32.mrf.mxu0
        %v1817 = vadd.f32 0.0, %v1816
        %v1818 = vpop.f32.mrf.mxu0
        %1819 = vmatprep.mubr.f32.mxu0 0.0
        %1820 = vmatmul.mubr.f32.gmra.mxu0 %v1722
        %v1821 = vpop.f32.mrf.mxu0
        %v1822 = vadd.f32 0.0, %v1821
        %v1823 = vpop.f32.mrf.mxu0
        %1824 = vmatprep.mubr.f32.mxu0 0.0
        %1825 = vmatmul.mubr.f32.gmra.mxu0 %v1725
        %v1826 = vpop.f32.mrf.mxu0
        %v1827 = vadd.f32 0.0, %v1826
        %v1828 = vpop.f32.mrf.mxu0
        %1829 = vmatprep.mubr.f32.mxu0 0.0
        %1830 = vmatmul.mubr.f32.gmra.mxu0 %v1728
        %v1831 = vpop.f32.mrf.mxu0
        %v1832 = vadd.f32 0.0, %v1831
        %v1833 = vpop.f32.mrf.mxu0
        %1834 = vdwg.mxu0
        %s1835 = scalar_lea.vmem [#allocation5], 128
        %v1836 = vld [vmem:[%s1835] sm:$0xff]
        %v1837 = vld [vmem:[%s1835 + $0x8] sm:$0xff]
        %v1838 = vld [vmem:[%s1835 + $0x10] sm:$0xff]
        %v1839 = vld [vmem:[%s1835 + $0x18] sm:$0xff]
        %v1840 = vld [vmem:[%s1835 + $0x20] sm:$0xff]
        %v1841 = vld [vmem:[%s1835 + $0x28] sm:$0xff]
        %v1842 = vld [vmem:[%s1835 + $0x30] sm:$0xff]
        %v1843 = vld [vmem:[%s1835 + $0x38] sm:$0xff]
        %v1845 = vsel %vm897, %v1836, 0
        %v1848 = vsel %vm897, %v1837, 0
        %v1851 = vsel %vm897, %v1838, 0
        %v1854 = vsel %vm897, %v1839, 0
        %v1857 = vsel %vm897, %v1840, 0
        %v1860 = vsel %vm897, %v1841, 0
        %v1863 = vsel %vm897, %v1842, 0
        %v1866 = vsel %vm897, %v1843, 0
        %1868 = vmatprep.subr.mxu0 0.0
        %1869 = vmatpush1.msra.mxu0 0.0
        %1870 = vmatprep.subr.mxu0 0.0
        %1871 = vmatpush1.msra.mxu0 0.0
        %1872 = vmatprep.subr.mxu0 0.0
        %1873 = vmatpush1.msra.mxu0 0.0
        %1874 = vmatprep.subr.mxu0 0.0
        %1875 = vmatpush1.msra.mxu0 0.0
        %1876 = vmatprep.subr.mxu0 0.0
        %1877 = vmatpush1.msra.mxu0 0.0
        %1878 = vmatprep.subr.mxu0 0.0
        %1879 = vmatpush1.msra.mxu0 0.0
        %1880 = vmatprep.subr.mxu0 0.0
        %1881 = vmatpush1.msra.mxu0 0.0
        %1882 = vmatprep.subr.mxu0 0.0
        %1883 = vmatpush1.msra.mxu0 0.0
        %1884 = vmatprep.subr.mxu0 0.0
        %1885 = vmatpush1.msra.mxu0 %v1574
        %1886 = vmatprep.subr.mxu0 0.0
        %1887 = vmatpush1.msra.mxu0 %v1569
        %1888 = vmatprep.subr.mxu0 0.0
        %1889 = vmatpush1.msra.mxu0 %v1564
        %1890 = vmatprep.subr.mxu0 0.0
        %1891 = vmatpush1.msra.mxu0 %v1559
        %1892 = vmatprep.subr.mxu0 0.0
        %1893 = vmatpush1.msra.mxu0 %v1554
        %1894 = vmatprep.subr.mxu0 0.0
        %1895 = vmatpush1.msra.mxu0 %v1549
        %1896 = vmatprep.subr.mxu0 0.0
        %1897 = vmatpush1.msra.mxu0 %v1544
        %1898 = vmatprep.subr.mxu0 0.0
        %1899 = vmatpush1.msra.mxu0 %v1539
        %1900 = vmatprep.subr.mxu0 0.0
        %1901 = vmatpush2.msra.mxu0 0.0
        %1902 = vmatprep.subr.mxu0 0.0
        %1903 = vmatpush2.msra.mxu0 0.0
        %1904 = vmatprep.subr.mxu0 0.0
        %1905 = vmatpush2.msra.mxu0 0.0
        %1906 = vmatprep.subr.mxu0 0.0
        %1907 = vmatpush2.msra.mxu0 0.0
        %1908 = vmatprep.subr.mxu0 0.0
        %1909 = vmatpush2.msra.mxu0 0.0
        %1910 = vmatprep.subr.mxu0 0.0
        %1911 = vmatpush2.msra.mxu0 0.0
        %1912 = vmatprep.subr.mxu0 0.0
        %1913 = vmatpush2.msra.mxu0 0.0
        %1914 = vmatprep.subr.mxu0 0.0
        %1915 = vmatpush2.msra.mxu0 0.0
        %1916 = vmatprep.subr.mxu0 0.0
        %1917 = vmatpush2.msra.mxu0 0.0
        %1918 = vmatprep.subr.mxu0 0.0
        %1919 = vmatpush2.msra.mxu0 0.0
        %1920 = vmatprep.subr.mxu0 0.0
        %1921 = vmatpush2.msra.mxu0 0.0
        %1922 = vmatprep.subr.mxu0 0.0
        %1923 = vmatpush2.msra.mxu0 0.0
        %1924 = vmatprep.subr.mxu0 0.0
        %1925 = vmatpush2.msra.mxu0 0.0
        %1926 = vmatprep.subr.mxu0 0.0
        %1927 = vmatpush2.msra.mxu0 0.0
        %1928 = vmatprep.subr.mxu0 0.0
        %1929 = vmatpush2.msra.mxu0 0.0
        %1930 = vmatprep.subr.mxu0 0.0
        %1931 = vmatpush2.msra.mxu0 0.0
        %1932 = vmatprep.mubr.f32.mxu0 0.0
        %1933 = vmatmul.mubr.f32.gmra.mxu0 %v1845
        %v1934 = vpop.f32.mrf.mxu0
        %v1935 = vadd.f32 0.0, %v1934
        %v1936 = vpop.f32.mrf.mxu0
        %1937 = vmatprep.mubr.f32.mxu0 0.0
        %1938 = vmatmul.mubr.f32.gmra.mxu0 %v1848
        %v1939 = vpop.f32.mrf.mxu0
        %v1940 = vadd.f32 0.0, %v1939
        %v1941 = vpop.f32.mrf.mxu0
        %1942 = vmatprep.mubr.f32.mxu0 0.0
        %1943 = vmatmul.mubr.f32.gmra.mxu0 %v1851
        %v1944 = vpop.f32.mrf.mxu0
        %v1945 = vadd.f32 0.0, %v1944
        %v1946 = vpop.f32.mrf.mxu0
        %1947 = vmatprep.mubr.f32.mxu0 0.0
        %1948 = vmatmul.mubr.f32.gmra.mxu0 %v1854
        %v1949 = vpop.f32.mrf.mxu0
        %v1950 = vadd.f32 0.0, %v1949
        %v1951 = vpop.f32.mrf.mxu0
        %1952 = vmatprep.mubr.f32.mxu0 0.0
        %1953 = vmatmul.mubr.f32.gmra.mxu0 %v1857
        %v1954 = vpop.f32.mrf.mxu0
        %v1955 = vadd.f32 0.0, %v1954
        %v1956 = vpop.f32.mrf.mxu0
        %1957 = vmatprep.mubr.f32.mxu0 0.0
        %1958 = vmatmul.mubr.f32.gmra.mxu0 %v1860
        %v1959 = vpop.f32.mrf.mxu0
        %v1960 = vadd.f32 0.0, %v1959
        %v1961 = vpop.f32.mrf.mxu0
        %1962 = vmatprep.mubr.f32.mxu0 0.0
        %1963 = vmatmul.mubr.f32.gmra.mxu0 %v1863
        %v1964 = vpop.f32.mrf.mxu0
        %v1965 = vadd.f32 0.0, %v1964
        %v1966 = vpop.f32.mrf.mxu0
        %1967 = vmatprep.mubr.f32.mxu0 0.0
        %1968 = vmatmul.mubr.f32.gmra.mxu0 %v1866
        %v1969 = vpop.f32.mrf.mxu0
        %v1970 = vadd.f32 0.0, %v1969
        %v1971 = vpop.f32.mrf.mxu0
        %1972 = vdwg.mxu0
        %v1973 = vadd.f32 %v1440, %v1935
        %v1974 = vadd.f32 %v1441, %v1940
        %v1975 = vadd.f32 %v1442, %v1945
        %v1976 = vadd.f32 %v1443, %v1950
        %v1977 = vadd.f32 %v1444, %v1955
        %v1978 = vadd.f32 %v1445, %v1960
        %v1979 = vadd.f32 %v1446, %v1965
        %v1980 = vadd.f32 %v1447, %v1970
        %s1981 = scalar_lea.vmem [#allocation5], 256
        %v1982 = vld [vmem:[%s1981] sm:$0xff]
        %v1983 = vld [vmem:[%s1981 + $0x8] sm:$0xff]
        %v1984 = vld [vmem:[%s1981 + $0x10] sm:$0xff]
        %v1985 = vld [vmem:[%s1981 + $0x18] sm:$0xff]
        %v1986 = vld [vmem:[%s1981 + $0x20] sm:$0xff]
        %v1987 = vld [vmem:[%s1981 + $0x28] sm:$0xff]
        %v1988 = vld [vmem:[%s1981 + $0x30] sm:$0xff]
        %v1989 = vld [vmem:[%s1981 + $0x38] sm:$0xff]
        %v1991 = vsel %vm897, %v1982, 0
        %v1994 = vsel %vm897, %v1983, 0
        %v1997 = vsel %vm897, %v1984, 0
        %v2000 = vsel %vm897, %v1985, 0
        %v2003 = vsel %vm897, %v1986, 0
        %v2006 = vsel %vm897, %v1987, 0
        %v2009 = vsel %vm897, %v1988, 0
        %v2012 = vsel %vm897, %v1989, 0
        %2014 = vmatprep.subr.mxu0 0.0
        %2015 = vmatpush1.msra.mxu0 0.0
        %2016 = vmatprep.subr.mxu0 0.0
        %2017 = vmatpush1.msra.mxu0 0.0
        %2018 = vmatprep.subr.mxu0 0.0
        %2019 = vmatpush1.msra.mxu0 0.0
        %2020 = vmatprep.subr.mxu0 0.0
        %2021 = vmatpush1.msra.mxu0 0.0
        %2022 = vmatprep.subr.mxu0 0.0
        %2023 = vmatpush1.msra.mxu0 0.0
        %2024 = vmatprep.subr.mxu0 0.0
        %2025 = vmatpush1.msra.mxu0 0.0
        %2026 = vmatprep.subr.mxu0 0.0
        %2027 = vmatpush1.msra.mxu0 0.0
        %2028 = vmatprep.subr.mxu0 0.0
        %2029 = vmatpush1.msra.mxu0 0.0
        %2030 = vmatprep.subr.mxu0 0.0
        %2031 = vmatpush1.msra.mxu0 %v1703
        %2032 = vmatprep.subr.mxu0 0.0
        %2033 = vmatpush1.msra.mxu0 %v1698
        %2034 = vmatprep.subr.mxu0 0.0
        %2035 = vmatpush1.msra.mxu0 %v1693
        %2036 = vmatprep.subr.mxu0 0.0
        %2037 = vmatpush1.msra.mxu0 %v1688
        %2038 = vmatprep.subr.mxu0 0.0
        %2039 = vmatpush1.msra.mxu0 %v1683
        %2040 = vmatprep.subr.mxu0 0.0
        %2041 = vmatpush1.msra.mxu0 %v1678
        %2042 = vmatprep.subr.mxu0 0.0
        %2043 = vmatpush1.msra.mxu0 %v1673
        %2044 = vmatprep.subr.mxu0 0.0
        %2045 = vmatpush1.msra.mxu0 %v1668
        %2046 = vmatprep.subr.mxu0 0.0
        %2047 = vmatpush2.msra.mxu0 0.0
        %2048 = vmatprep.subr.mxu0 0.0
        %2049 = vmatpush2.msra.mxu0 0.0
        %2050 = vmatprep.subr.mxu0 0.0
        %2051 = vmatpush2.msra.mxu0 0.0
        %2052 = vmatprep.subr.mxu0 0.0
        %2053 = vmatpush2.msra.mxu0 0.0
        %2054 = vmatprep.subr.mxu0 0.0
        %2055 = vmatpush2.msra.mxu0 0.0
        %2056 = vmatprep.subr.mxu0 0.0
        %2057 = vmatpush2.msra.mxu0 0.0
        %2058 = vmatprep.subr.mxu0 0.0
        %2059 = vmatpush2.msra.mxu0 0.0
        %2060 = vmatprep.subr.mxu0 0.0
        %2061 = vmatpush2.msra.mxu0 0.0
        %2062 = vmatprep.subr.mxu0 0.0
        %2063 = vmatpush2.msra.mxu0 0.0
        %2064 = vmatprep.subr.mxu0 0.0
        %2065 = vmatpush2.msra.mxu0 0.0
        %2066 = vmatprep.subr.mxu0 0.0
        %2067 = vmatpush2.msra.mxu0 0.0
        %2068 = vmatprep.subr.mxu0 0.0
        %2069 = vmatpush2.msra.mxu0 0.0
        %2070 = vmatprep.subr.mxu0 0.0
        %2071 = vmatpush2.msra.mxu0 0.0
        %2072 = vmatprep.subr.mxu0 0.0
        %2073 = vmatpush2.msra.mxu0 0.0
        %2074 = vmatprep.subr.mxu0 0.0
        %2075 = vmatpush2.msra.mxu0 0.0
        %2076 = vmatprep.subr.mxu0 0.0
        %2077 = vmatpush2.msra.mxu0 0.0
        %2078 = vmatprep.mubr.f32.mxu0 0.0
        %2079 = vmatmul.mubr.f32.gmra.mxu0 %v1991
        %v2080 = vpop.f32.mrf.mxu0
        %v2081 = vadd.f32 0.0, %v2080
        %v2082 = vpop.f32.mrf.mxu0
        %2083 = vmatprep.mubr.f32.mxu0 0.0
        %2084 = vmatmul.mubr.f32.gmra.mxu0 %v1994
        %v2085 = vpop.f32.mrf.mxu0
        %v2086 = vadd.f32 0.0, %v2085
        %v2087 = vpop.f32.mrf.mxu0
        %2088 = vmatprep.mubr.f32.mxu0 0.0
        %2089 = vmatmul.mubr.f32.gmra.mxu0 %v1997
        %v2090 = vpop.f32.mrf.mxu0
        %v2091 = vadd.f32 0.0, %v2090
        %v2092 = vpop.f32.mrf.mxu0
        %2093 = vmatprep.mubr.f32.mxu0 0.0
        %2094 = vmatmul.mubr.f32.gmra.mxu0 %v2000
        %v2095 = vpop.f32.mrf.mxu0
        %v2096 = vadd.f32 0.0, %v2095
        %v2097 = vpop.f32.mrf.mxu0
        %2098 = vmatprep.mubr.f32.mxu0 0.0
        %2099 = vmatmul.mubr.f32.gmra.mxu0 %v2003
        %v2100 = vpop.f32.mrf.mxu0
        %v2101 = vadd.f32 0.0, %v2100
        %v2102 = vpop.f32.mrf.mxu0
        %2103 = vmatprep.mubr.f32.mxu0 0.0
        %2104 = vmatmul.mubr.f32.gmra.mxu0 %v2006
        %v2105 = vpop.f32.mrf.mxu0
        %v2106 = vadd.f32 0.0, %v2105
        %v2107 = vpop.f32.mrf.mxu0
        %2108 = vmatprep.mubr.f32.mxu0 0.0
        %2109 = vmatmul.mubr.f32.gmra.mxu0 %v2009
        %v2110 = vpop.f32.mrf.mxu0
        %v2111 = vadd.f32 0.0, %v2110
        %v2112 = vpop.f32.mrf.mxu0
        %2113 = vmatprep.mubr.f32.mxu0 0.0
        %2114 = vmatmul.mubr.f32.gmra.mxu0 %v2012
        %v2115 = vpop.f32.mrf.mxu0
        %v2116 = vadd.f32 0.0, %v2115
        %v2117 = vpop.f32.mrf.mxu0
        %2118 = vdwg.mxu0
        %v2119 = vadd.f32 %v1973, %v2081
        %v2120 = vadd.f32 %v1974, %v2086
        %v2121 = vadd.f32 %v1975, %v2091
        %v2122 = vadd.f32 %v1976, %v2096
        %v2123 = vadd.f32 %v1977, %v2101
        %v2124 = vadd.f32 %v1978, %v2106
        %v2125 = vadd.f32 %v1979, %v2111
        %v2126 = vadd.f32 %v1980, %v2116
        %s2127 = scalar_lea.vmem [#allocation5], 384
        %v2128 = vld [vmem:[%s2127] sm:$0xff]
        %v2129 = vld [vmem:[%s2127 + $0x8] sm:$0xff]
        %v2130 = vld [vmem:[%s2127 + $0x10] sm:$0xff]
        %v2131 = vld [vmem:[%s2127 + $0x18] sm:$0xff]
        %v2132 = vld [vmem:[%s2127 + $0x20] sm:$0xff]
        %v2133 = vld [vmem:[%s2127 + $0x28] sm:$0xff]
        %v2134 = vld [vmem:[%s2127 + $0x30] sm:$0xff]
        %v2135 = vld [vmem:[%s2127 + $0x38] sm:$0xff]
        %v2137 = vsel %vm897, %v2128, 0
        %v2140 = vsel %vm897, %v2129, 0
        %v2143 = vsel %vm897, %v2130, 0
        %v2146 = vsel %vm897, %v2131, 0
        %v2149 = vsel %vm897, %v2132, 0
        %v2152 = vsel %vm897, %v2133, 0
        %v2155 = vsel %vm897, %v2134, 0
        %v2158 = vsel %vm897, %v2135, 0
        %2160 = vmatprep.subr.mxu0 0.0
        %2161 = vmatpush1.msra.mxu0 0.0
        %2162 = vmatprep.subr.mxu0 0.0
        %2163 = vmatpush1.msra.mxu0 0.0
        %2164 = vmatprep.subr.mxu0 0.0
        %2165 = vmatpush1.msra.mxu0 0.0
        %2166 = vmatprep.subr.mxu0 0.0
        %2167 = vmatpush1.msra.mxu0 0.0
        %2168 = vmatprep.subr.mxu0 0.0
        %2169 = vmatpush1.msra.mxu0 0.0
        %2170 = vmatprep.subr.mxu0 0.0
        %2171 = vmatpush1.msra.mxu0 0.0
        %2172 = vmatprep.subr.mxu0 0.0
        %2173 = vmatpush1.msra.mxu0 0.0
        %2174 = vmatprep.subr.mxu0 0.0
        %2175 = vmatpush1.msra.mxu0 0.0
        %2176 = vmatprep.subr.mxu0 0.0
        %2177 = vmatpush1.msra.mxu0 %v1832
        %2178 = vmatprep.subr.mxu0 0.0
        %2179 = vmatpush1.msra.mxu0 %v1827
        %2180 = vmatprep.subr.mxu0 0.0
        %2181 = vmatpush1.msra.mxu0 %v1822
        %2182 = vmatprep.subr.mxu0 0.0
        %2183 = vmatpush1.msra.mxu0 %v1817
        %2184 = vmatprep.subr.mxu0 0.0
        %2185 = vmatpush1.msra.mxu0 %v1812
        %2186 = vmatprep.subr.mxu0 0.0
        %2187 = vmatpush1.msra.mxu0 %v1807
        %2188 = vmatprep.subr.mxu0 0.0
        %2189 = vmatpush1.msra.mxu0 %v1802
        %2190 = vmatprep.subr.mxu0 0.0
        %2191 = vmatpush1.msra.mxu0 %v1797
        %2192 = vmatprep.subr.mxu0 0.0
        %2193 = vmatpush2.msra.mxu0 0.0
        %2194 = vmatprep.subr.mxu0 0.0
        %2195 = vmatpush2.msra.mxu0 0.0
        %2196 = vmatprep.subr.mxu0 0.0
        %2197 = vmatpush2.msra.mxu0 0.0
        %2198 = vmatprep.subr.mxu0 0.0
        %2199 = vmatpush2.msra.mxu0 0.0
        %2200 = vmatprep.subr.mxu0 0.0
        %2201 = vmatpush2.msra.mxu0 0.0
        %2202 = vmatprep.subr.mxu0 0.0
        %2203 = vmatpush2.msra.mxu0 0.0
        %2204 = vmatprep.subr.mxu0 0.0
        %2205 = vmatpush2.msra.mxu0 0.0
        %2206 = vmatprep.subr.mxu0 0.0
        %2207 = vmatpush2.msra.mxu0 0.0
        %2208 = vmatprep.subr.mxu0 0.0
        %2209 = vmatpush2.msra.mxu0 0.0
        %2210 = vmatprep.subr.mxu0 0.0
        %2211 = vmatpush2.msra.mxu0 0.0
        %2212 = vmatprep.subr.mxu0 0.0
        %2213 = vmatpush2.msra.mxu0 0.0
        %2214 = vmatprep.subr.mxu0 0.0
        %2215 = vmatpush2.msra.mxu0 0.0
        %2216 = vmatprep.subr.mxu0 0.0
        %2217 = vmatpush2.msra.mxu0 0.0
        %2218 = vmatprep.subr.mxu0 0.0
        %2219 = vmatpush2.msra.mxu0 0.0
        %2220 = vmatprep.subr.mxu0 0.0
        %2221 = vmatpush2.msra.mxu0 0.0
        %2222 = vmatprep.subr.mxu0 0.0
        %2223 = vmatpush2.msra.mxu0 0.0
        %2224 = vmatprep.mubr.f32.mxu0 0.0
        %2225 = vmatmul.mubr.f32.gmra.mxu0 %v2137
        %v2226 = vpop.f32.mrf.mxu0
        %v2227 = vadd.f32 0.0, %v2226
        %v2228 = vpop.f32.mrf.mxu0
        %2229 = vmatprep.mubr.f32.mxu0 0.0
        %2230 = vmatmul.mubr.f32.gmra.mxu0 %v2140
        %v2231 = vpop.f32.mrf.mxu0
        %v2232 = vadd.f32 0.0, %v2231
        %v2233 = vpop.f32.mrf.mxu0
        %2234 = vmatprep.mubr.f32.mxu0 0.0
        %2235 = vmatmul.mubr.f32.gmra.mxu0 %v2143
        %v2236 = vpop.f32.mrf.mxu0
        %v2237 = vadd.f32 0.0, %v2236
        %v2238 = vpop.f32.mrf.mxu0
        %2239 = vmatprep.mubr.f32.mxu0 0.0
        %2240 = vmatmul.mubr.f32.gmra.mxu0 %v2146
        %v2241 = vpop.f32.mrf.mxu0
        %v2242 = vadd.f32 0.0, %v2241
        %v2243 = vpop.f32.mrf.mxu0
        %2244 = vmatprep.mubr.f32.mxu0 0.0
        %2245 = vmatmul.mubr.f32.gmra.mxu0 %v2149
        %v2246 = vpop.f32.mrf.mxu0
        %v2247 = vadd.f32 0.0, %v2246
        %v2248 = vpop.f32.mrf.mxu0
        %2249 = vmatprep.mubr.f32.mxu0 0.0
        %2250 = vmatmul.mubr.f32.gmra.mxu0 %v2152
        %v2251 = vpop.f32.mrf.mxu0
        %v2252 = vadd.f32 0.0, %v2251
        %v2253 = vpop.f32.mrf.mxu0
        %2254 = vmatprep.mubr.f32.mxu0 0.0
        %2255 = vmatmul.mubr.f32.gmra.mxu0 %v2155
        %v2256 = vpop.f32.mrf.mxu0
        %v2257 = vadd.f32 0.0, %v2256
        %v2258 = vpop.f32.mrf.mxu0
        %2259 = vmatprep.mubr.f32.mxu0 0.0
        %2260 = vmatmul.mubr.f32.gmra.mxu0 %v2158
        %v2261 = vpop.f32.mrf.mxu0
        %v2262 = vadd.f32 0.0, %v2261
        %v2263 = vpop.f32.mrf.mxu0
        %2264 = vdwg.mxu0
        %v2265 = vadd.f32 %v2119, %v2227
        %v2266 = vadd.f32 %v2120, %v2232
        %v2267 = vadd.f32 %v2121, %v2237
        %v2268 = vadd.f32 %v2122, %v2242
        %v2269 = vadd.f32 %v2123, %v2247
        %v2270 = vadd.f32 %v2124, %v2252
        %v2271 = vadd.f32 %v2125, %v2257
        %v2272 = vadd.f32 %v2126, %v2262
        %v2273 = vld [vmem:[%s2] sm:$0x1]
        %v2274 = vld [vmem:[%s2 + $0x1] sm:$0x1]
        %v2275 = vld [vmem:[%s2 + $0x2] sm:$0x1]
        %v2276 = vld [vmem:[%s2 + $0x3] sm:$0x1]
        %v2277 = vld [vmem:[%s2 + $0x4] sm:$0x1]
        %v2278 = vld [vmem:[%s2 + $0x5] sm:$0x1]
        %v2279 = vld [vmem:[%s2 + $0x6] sm:$0x1]
        %v2280 = vld [vmem:[%s2 + $0x7] sm:$0x1]
        %v2289 = vlaneseq
        %v2290 = vshrl.u32 %v2289, 7
        %v2291 = vsub.s32 0, %v2290
        %v2292 = vrot.slane %v2273, %v2291
        %v2293 = vlaneseq
        %v2294 = vshrl.u32 %v2293, 7
        %v2295 = vsub.s32 0, %v2294
        %v2296 = vrot.slane %v2274, %v2295
        %v2297 = vlaneseq
        %v2298 = vshrl.u32 %v2297, 7
        %v2299 = vsub.s32 0, %v2298
        %v2300 = vrot.slane %v2275, %v2299
        %v2301 = vlaneseq
        %v2302 = vshrl.u32 %v2301, 7
        %v2303 = vsub.s32 0, %v2302
        %v2304 = vrot.slane %v2276, %v2303
        %v2305 = vlaneseq
        %v2306 = vshrl.u32 %v2305, 7
        %v2307 = vsub.s32 0, %v2306
        %v2308 = vrot.slane %v2277, %v2307
        %v2309 = vlaneseq
        %v2310 = vshrl.u32 %v2309, 7
        %v2311 = vsub.s32 0, %v2310
        %v2312 = vrot.slane %v2278, %v2311
        %v2313 = vlaneseq
        %v2314 = vshrl.u32 %v2313, 7
        %v2315 = vsub.s32 0, %v2314
        %v2316 = vrot.slane %v2279, %v2315
        %v2317 = vlaneseq
        %v2318 = vshrl.u32 %v2317, 7
        %v2319 = vsub.s32 0, %v2318
        %v2320 = vrot.slane %v2280, %v2319
        %2321 = vset.pattern.permute.xlu0 0
        %2322 = vperm.xlu0 %2321, %v2292
        %v2323 = vpop.permute.xlu0 %2322
        %2325 = vset.pattern.permute.xlu0 0
        %2326 = vperm.xlu0 %2325, %v2296
        %v2327 = vpop.permute.xlu0 %2326
        %2329 = vset.pattern.permute.xlu0 0
        %2330 = vperm.xlu0 %2329, %v2300
        %v2331 = vpop.permute.xlu0 %2330
        %2333 = vset.pattern.permute.xlu0 0
        %2334 = vperm.xlu0 %2333, %v2304
        %v2335 = vpop.permute.xlu0 %2334
        %2337 = vset.pattern.permute.xlu0 0
        %2338 = vperm.xlu0 %2337, %v2308
        %v2339 = vpop.permute.xlu0 %2338
        %2341 = vset.pattern.permute.xlu0 0
        %2342 = vperm.xlu0 %2341, %v2312
        %v2343 = vpop.permute.xlu0 %2342
        %2345 = vset.pattern.permute.xlu0 0
        %2346 = vperm.xlu0 %2345, %v2316
        %v2347 = vpop.permute.xlu0 %2346
        %2349 = vset.pattern.permute.xlu0 0
        %2350 = vperm.xlu0 %2349, %v2320
        %v2351 = vpop.permute.xlu0 %2350
        %v2353 = vadd.f32 %v2265, %v2323
        %v2354 = vadd.f32 %v2266, %v2327
        %v2355 = vadd.f32 %v2267, %v2331
        %v2356 = vadd.f32 %v2268, %v2335
        %v2357 = vadd.f32 %v2269, %v2339
        %v2358 = vadd.f32 %v2270, %v2343
        %v2359 = vadd.f32 %v2271, %v2347
        %v2360 = vadd.f32 %v2272, %v2351
        %v2361 = vmax.f32 %v2353, 0.0
        %v2362 = vmax.f32 %v2354, 0.0
        %v2363 = vmax.f32 %v2355, 0.0
        %v2364 = vmax.f32 %v2356, 0.0
        %v2365 = vmax.f32 %v2357, 0.0
        %v2366 = vmax.f32 %v2358, 0.0
        %v2367 = vmax.f32 %v2359, 0.0
        %v2368 = vmax.f32 %v2360, 0.0
        %2369 = vxpose.xlu0.b32.start [1/16] %v2361, 128
        %2370 = vxpose.xlu0.b32.cont [2/16] 0.0, 128
        %2371 = vxpose.xlu0.b32.cont [3/16] 0.0, 128
        %2372 = vxpose.xlu0.b32.cont [4/16] 0.0, 128
        %2373 = vxpose.xlu0.b32.cont [5/16] 0.0, 128
        %2374 = vxpose.xlu0.b32.cont [6/16] 0.0, 128
        %2375 = vxpose.xlu0.b32.cont [7/16] 0.0, 128
        %2376 = vxpose.xlu0.b32.cont [8/16] 0.0, 128
        %2377 = vxpose.xlu0.b32.cont [9/16] 0.0, 128
        %2378 = vxpose.xlu0.b32.cont [10/16] 0.0, 128
        %2379 = vxpose.xlu0.b32.cont [11/16] 0.0, 128
        %2380 = vxpose.xlu0.b32.cont [12/16] 0.0, 128
        %2381 = vxpose.xlu0.b32.cont [13/16] 0.0, 128
        %2382 = vxpose.xlu0.b32.cont [14/16] 0.0, 128
        %2383 = vxpose.xlu0.b32.cont [15/16] 0.0, 128
        %2384 = vxpose.xlu0.b32.end [16/16] 0.0, 128
        %v2385 = vpop.trf.xlu0
        %v2386 = vpop.trf.xlu0
        %v2387 = vpop.trf.xlu0
        %v2388 = vpop.trf.xlu0
        %v2389 = vpop.trf.xlu0
        %v2390 = vpop.trf.xlu0
        %v2391 = vpop.trf.xlu0
        %v2392 = vpop.trf.xlu0
        %v2393 = vpop.trf.xlu0
        %v2394 = vpop.trf.xlu0
        %v2395 = vpop.trf.xlu0
        %v2396 = vpop.trf.xlu0
        %v2397 = vpop.trf.xlu0
        %v2398 = vpop.trf.xlu0
        %v2399 = vpop.trf.xlu0
        %v2400 = vpop.trf.xlu0
        %2401 = vxpose.xlu0.b32.start [1/16] %v2362, 128
        %2402 = vxpose.xlu0.b32.cont [2/16] 0.0, 128
        %2403 = vxpose.xlu0.b32.cont [3/16] 0.0, 128
        %2404 = vxpose.xlu0.b32.cont [4/16] 0.0, 128
        %2405 = vxpose.xlu0.b32.cont [5/16] 0.0, 128
        %2406 = vxpose.xlu0.b32.cont [6/16] 0.0, 128
        %2407 = vxpose.xlu0.b32.cont [7/16] 0.0, 128
        %2408 = vxpose.xlu0.b32.cont [8/16] 0.0, 128
        %2409 = vxpose.xlu0.b32.cont [9/16] 0.0, 128
        %2410 = vxpose.xlu0.b32.cont [10/16] 0.0, 128
        %2411 = vxpose.xlu0.b32.cont [11/16] 0.0, 128
        %2412 = vxpose.xlu0.b32.cont [12/16] 0.0, 128
        %2413 = vxpose.xlu0.b32.cont [13/16] 0.0, 128
        %2414 = vxpose.xlu0.b32.cont [14/16] 0.0, 128
        %2415 = vxpose.xlu0.b32.cont [15/16] 0.0, 128
        %2416 = vxpose.xlu0.b32.end [16/16] 0.0, 128
        %v2417 = vpop.trf.xlu0
        %v2418 = vpop.trf.xlu0
        %v2419 = vpop.trf.xlu0
        %v2420 = vpop.trf.xlu0
        %v2421 = vpop.trf.xlu0
        %v2422 = vpop.trf.xlu0
        %v2423 = vpop.trf.xlu0
        %v2424 = vpop.trf.xlu0
        %v2425 = vpop.trf.xlu0
        %v2426 = vpop.trf.xlu0
        %v2427 = vpop.trf.xlu0
        %v2428 = vpop.trf.xlu0
        %v2429 = vpop.trf.xlu0
        %v2430 = vpop.trf.xlu0
        %v2431 = vpop.trf.xlu0
        %v2432 = vpop.trf.xlu0
        %2433 = vxpose.xlu0.b32.start [1/16] %v2363, 128
        %2434 = vxpose.xlu0.b32.cont [2/16] 0.0, 128
        %2435 = vxpose.xlu0.b32.cont [3/16] 0.0, 128
        %2436 = vxpose.xlu0.b32.cont [4/16] 0.0, 128
        %2437 = vxpose.xlu0.b32.cont [5/16] 0.0, 128
        %2438 = vxpose.xlu0.b32.cont [6/16] 0.0, 128
        %2439 = vxpose.xlu0.b32.cont [7/16] 0.0, 128
        %2440 = vxpose.xlu0.b32.cont [8/16] 0.0, 128
        %2441 = vxpose.xlu0.b32.cont [9/16] 0.0, 128
        %2442 = vxpose.xlu0.b32.cont [10/16] 0.0, 128
        %2443 = vxpose.xlu0.b32.cont [11/16] 0.0, 128
        %2444 = vxpose.xlu0.b32.cont [12/16] 0.0, 128
        %2445 = vxpose.xlu0.b32.cont [13/16] 0.0, 128
        %2446 = vxpose.xlu0.b32.cont [14/16] 0.0, 128
        %2447 = vxpose.xlu0.b32.cont [15/16] 0.0, 128
        %2448 = vxpose.xlu0.b32.end [16/16] 0.0, 128
        %v2449 = vpop.trf.xlu0
        %v2450 = vpop.trf.xlu0
        %v2451 = vpop.trf.xlu0
        %v2452 = vpop.trf.xlu0
        %v2453 = vpop.trf.xlu0
        %v2454 = vpop.trf.xlu0
        %v2455 = vpop.trf.xlu0
        %v2456 = vpop.trf.xlu0
        %v2457 = vpop.trf.xlu0
        %v2458 = vpop.trf.xlu0
        %v2459 = vpop.trf.xlu0
        %v2460 = vpop.trf.xlu0
        %v2461 = vpop.trf.xlu0
        %v2462 = vpop.trf.xlu0
        %v2463 = vpop.trf.xlu0
        %v2464 = vpop.trf.xlu0
        %2465 = vxpose.xlu0.b32.start [1/16] %v2364, 128
        %2466 = vxpose.xlu0.b32.cont [2/16] 0.0, 128
        %2467 = vxpose.xlu0.b32.cont [3/16] 0.0, 128
        %2468 = vxpose.xlu0.b32.cont [4/16] 0.0, 128
        %2469 = vxpose.xlu0.b32.cont [5/16] 0.0, 128
        %2470 = vxpose.xlu0.b32.cont [6/16] 0.0, 128
        %2471 = vxpose.xlu0.b32.cont [7/16] 0.0, 128
        %2472 = vxpose.xlu0.b32.cont [8/16] 0.0, 128
        %2473 = vxpose.xlu0.b32.cont [9/16] 0.0, 128
        %2474 = vxpose.xlu0.b32.cont [10/16] 0.0, 128
        %2475 = vxpose.xlu0.b32.cont [11/16] 0.0, 128
        %2476 = vxpose.xlu0.b32.cont [12/16] 0.0, 128
        %2477 = vxpose.xlu0.b32.cont [13/16] 0.0, 128
        %2478 = vxpose.xlu0.b32.cont [14/16] 0.0, 128
        %2479 = vxpose.xlu0.b32.cont [15/16] 0.0, 128
        %2480 = vxpose.xlu0.b32.end [16/16] 0.0, 128
        %v2481 = vpop.trf.xlu0
        %v2482 = vpop.trf.xlu0
        %v2483 = vpop.trf.xlu0
        %v2484 = vpop.trf.xlu0
        %v2485 = vpop.trf.xlu0
        %v2486 = vpop.trf.xlu0
        %v2487 = vpop.trf.xlu0
        %v2488 = vpop.trf.xlu0
        %v2489 = vpop.trf.xlu0
        %v2490 = vpop.trf.xlu0
        %v2491 = vpop.trf.xlu0
        %v2492 = vpop.trf.xlu0
        %v2493 = vpop.trf.xlu0
        %v2494 = vpop.trf.xlu0
        %v2495 = vpop.trf.xlu0
        %v2496 = vpop.trf.xlu0
        %2497 = vxpose.xlu0.b32.start [1/16] %v2365, 128
        %2498 = vxpose.xlu0.b32.cont [2/16] 0.0, 128
        %2499 = vxpose.xlu0.b32.cont [3/16] 0.0, 128
        %2500 = vxpose.xlu0.b32.cont [4/16] 0.0, 128
        %2501 = vxpose.xlu0.b32.cont [5/16] 0.0, 128
        %2502 = vxpose.xlu0.b32.cont [6/16] 0.0, 128
        %2503 = vxpose.xlu0.b32.cont [7/16] 0.0, 128
        %2504 = vxpose.xlu0.b32.cont [8/16] 0.0, 128
        %2505 = vxpose.xlu0.b32.cont [9/16] 0.0, 128
        %2506 = vxpose.xlu0.b32.cont [10/16] 0.0, 128
        %2507 = vxpose.xlu0.b32.cont [11/16] 0.0, 128
        %2508 = vxpose.xlu0.b32.cont [12/16] 0.0, 128
        %2509 = vxpose.xlu0.b32.cont [13/16] 0.0, 128
        %2510 = vxpose.xlu0.b32.cont [14/16] 0.0, 128
        %2511 = vxpose.xlu0.b32.cont [15/16] 0.0, 128
        %2512 = vxpose.xlu0.b32.end [16/16] 0.0, 128
        %v2513 = vpop.trf.xlu0
        %v2514 = vpop.trf.xlu0
        %v2515 = vpop.trf.xlu0
        %v2516 = vpop.trf.xlu0
        %v2517 = vpop.trf.xlu0
        %v2518 = vpop.trf.xlu0
        %v2519 = vpop.trf.xlu0
        %v2520 = vpop.trf.xlu0
        %v2521 = vpop.trf.xlu0
        %v2522 = vpop.trf.xlu0
        %v2523 = vpop.trf.xlu0
        %v2524 = vpop.trf.xlu0
        %v2525 = vpop.trf.xlu0
        %v2526 = vpop.trf.xlu0
        %v2527 = vpop.trf.xlu0
        %v2528 = vpop.trf.xlu0
        %2529 = vxpose.xlu0.b32.start [1/16] %v2366, 128
        %2530 = vxpose.xlu0.b32.cont [2/16] 0.0, 128
        %2531 = vxpose.xlu0.b32.cont [3/16] 0.0, 128
        %2532 = vxpose.xlu0.b32.cont [4/16] 0.0, 128
        %2533 = vxpose.xlu0.b32.cont [5/16] 0.0, 128
        %2534 = vxpose.xlu0.b32.cont [6/16] 0.0, 128
        %2535 = vxpose.xlu0.b32.cont [7/16] 0.0, 128
        %2536 = vxpose.xlu0.b32.cont [8/16] 0.0, 128
        %2537 = vxpose.xlu0.b32.cont [9/16] 0.0, 128
        %2538 = vxpose.xlu0.b32.cont [10/16] 0.0, 128
        %2539 = vxpose.xlu0.b32.cont [11/16] 0.0, 128
        %2540 = vxpose.xlu0.b32.cont [12/16] 0.0, 128
        %2541 = vxpose.xlu0.b32.cont [13/16] 0.0, 128
        %2542 = vxpose.xlu0.b32.cont [14/16] 0.0, 128
        %2543 = vxpose.xlu0.b32.cont [15/16] 0.0, 128
        %2544 = vxpose.xlu0.b32.end [16/16] 0.0, 128
        %v2545 = vpop.trf.xlu0
        %v2546 = vpop.trf.xlu0
        %v2547 = vpop.trf.xlu0
        %v2548 = vpop.trf.xlu0
        %v2549 = vpop.trf.xlu0
        %v2550 = vpop.trf.xlu0
        %v2551 = vpop.trf.xlu0
        %v2552 = vpop.trf.xlu0
        %v2553 = vpop.trf.xlu0
        %v2554 = vpop.trf.xlu0
        %v2555 = vpop.trf.xlu0
        %v2556 = vpop.trf.xlu0
        %v2557 = vpop.trf.xlu0
        %v2558 = vpop.trf.xlu0
        %v2559 = vpop.trf.xlu0
        %v2560 = vpop.trf.xlu0
        %2561 = vxpose.xlu0.b32.start [1/16] %v2367, 128
        %2562 = vxpose.xlu0.b32.cont [2/16] 0.0, 128
        %2563 = vxpose.xlu0.b32.cont [3/16] 0.0, 128
        %2564 = vxpose.xlu0.b32.cont [4/16] 0.0, 128
        %2565 = vxpose.xlu0.b32.cont [5/16] 0.0, 128
        %2566 = vxpose.xlu0.b32.cont [6/16] 0.0, 128
        %2567 = vxpose.xlu0.b32.cont [7/16] 0.0, 128
        %2568 = vxpose.xlu0.b32.cont [8/16] 0.0, 128
        %2569 = vxpose.xlu0.b32.cont [9/16] 0.0, 128
        %2570 = vxpose.xlu0.b32.cont [10/16] 0.0, 128
        %2571 = vxpose.xlu0.b32.cont [11/16] 0.0, 128
        %2572 = vxpose.xlu0.b32.cont [12/16] 0.0, 128
        %2573 = vxpose.xlu0.b32.cont [13/16] 0.0, 128
        %2574 = vxpose.xlu0.b32.cont [14/16] 0.0, 128
        %2575 = vxpose.xlu0.b32.cont [15/16] 0.0, 128
        %2576 = vxpose.xlu0.b32.end [16/16] 0.0, 128
        %v2577 = vpop.trf.xlu0
        %v2578 = vpop.trf.xlu0
        %v2579 = vpop.trf.xlu0
        %v2580 = vpop.trf.xlu0
        %v2581 = vpop.trf.xlu0
        %v2582 = vpop.trf.xlu0
        %v2583 = vpop.trf.xlu0
        %v2584 = vpop.trf.xlu0
        %v2585 = vpop.trf.xlu0
        %v2586 = vpop.trf.xlu0
        %v2587 = vpop.trf.xlu0
        %v2588 = vpop.trf.xlu0
        %v2589 = vpop.trf.xlu0
        %v2590 = vpop.trf.xlu0
        %v2591 = vpop.trf.xlu0
        %v2592 = vpop.trf.xlu0
        %2593 = vxpose.xlu0.b32.start [1/16] %v2368, 128
        %2594 = vxpose.xlu0.b32.cont [2/16] 0.0, 128
        %2595 = vxpose.xlu0.b32.cont [3/16] 0.0, 128
        %2596 = vxpose.xlu0.b32.cont [4/16] 0.0, 128
        %2597 = vxpose.xlu0.b32.cont [5/16] 0.0, 128
        %2598 = vxpose.xlu0.b32.cont [6/16] 0.0, 128
        %2599 = vxpose.xlu0.b32.cont [7/16] 0.0, 128
        %2600 = vxpose.xlu0.b32.cont [8/16] 0.0, 128
        %2601 = vxpose.xlu0.b32.cont [9/16] 0.0, 128
        %2602 = vxpose.xlu0.b32.cont [10/16] 0.0, 128
        %2603 = vxpose.xlu0.b32.cont [11/16] 0.0, 128
        %2604 = vxpose.xlu0.b32.cont [12/16] 0.0, 128
        %2605 = vxpose.xlu0.b32.cont [13/16] 0.0, 128
        %2606 = vxpose.xlu0.b32.cont [14/16] 0.0, 128
        %2607 = vxpose.xlu0.b32.cont [15/16] 0.0, 128
        %2608 = vxpose.xlu0.b32.end [16/16] 0.0, 128
        %v2609 = vpop.trf.xlu0
        %v2610 = vpop.trf.xlu0
        %v2611 = vpop.trf.xlu0
        %v2612 = vpop.trf.xlu0
        %v2613 = vpop.trf.xlu0
        %v2614 = vpop.trf.xlu0
        %v2615 = vpop.trf.xlu0
        %v2616 = vpop.trf.xlu0
        %v2617 = vpop.trf.xlu0
        %v2618 = vpop.trf.xlu0
        %v2619 = vpop.trf.xlu0
        %v2620 = vpop.trf.xlu0
        %v2621 = vpop.trf.xlu0
        %v2622 = vpop.trf.xlu0
        %v2623 = vpop.trf.xlu0
        %v2624 = vpop.trf.xlu0
        %vm2625 = vcmask 64512
        %2626 = vst.msk [vmem:[%s259] sm:$0xff] %vm2625, %v2385
        %2627 = vst.msk [vmem:[%s259 + $0x8] sm:$0xff] %vm2625, %v2386
        %2628 = vst.msk [vmem:[%s259 + $0x10] sm:$0xff] %vm2625, %v2417
        %2629 = vst.msk [vmem:[%s259 + $0x18] sm:$0xff] %vm2625, %v2418
        %2630 = vst.msk [vmem:[%s259 + $0x20] sm:$0xff] %vm2625, %v2449
        %2631 = vst.msk [vmem:[%s259 + $0x28] sm:$0xff] %vm2625, %v2450
        %2632 = vst.msk [vmem:[%s259 + $0x30] sm:$0xff] %vm2625, %v2481
        %2633 = vst.msk [vmem:[%s259 + $0x38] sm:$0xff] %vm2625, %v2482
        %2634 = vst.msk [vmem:[%s259 + $0x40] sm:$0xff] %vm2625, %v2513
        %2635 = vst.msk [vmem:[%s259 + $0x48] sm:$0xff] %vm2625, %v2514
        %2636 = vst.msk [vmem:[%s259 + $0x50] sm:$0xff] %vm2625, %v2545
        %2637 = vst.msk [vmem:[%s259 + $0x58] sm:$0xff] %vm2625, %v2546
        %2638 = vst.msk [vmem:[%s259 + $0x60] sm:$0xff] %vm2625, %v2577
        %2639 = vst.msk [vmem:[%s259 + $0x68] sm:$0xff] %vm2625, %v2578
        %2640 = vst.msk [vmem:[%s259 + $0x70] sm:$0xff] %vm2625, %v2609
        %2641 = vst.msk [vmem:[%s259 + $0x78] sm:$0xff] %vm2625, %v2610
        %v2642 = vld [vmem:[%s235] sm:$0xff]
        %v2643 = vld [vmem:[%s235 + $0x8] sm:$0xff]
        %v2644 = vld [vmem:[%s235 + $0x10] sm:$0xff]
        %v2645 = vld [vmem:[%s235 + $0x18] sm:$0xff]
        %v2646 = vld [vmem:[%s235 + $0x20] sm:$0xff]
        %v2647 = vld [vmem:[%s235 + $0x28] sm:$0xff]
        %v2648 = vld [vmem:[%s235 + $0x30] sm:$0xff]
        %v2649 = vld [vmem:[%s235 + $0x38] sm:$0xff]
        %v2650 = vld [vmem:[%s235 + $0x40] sm:$0xff]
        %v2651 = vld [vmem:[%s235 + $0x48] sm:$0xff]
        %v2652 = vld [vmem:[%s235 + $0x50] sm:$0xff]
        %v2653 = vld [vmem:[%s235 + $0x58] sm:$0xff]
        %v2654 = vld [vmem:[%s235 + $0x60] sm:$0xff]
        %v2655 = vld [vmem:[%s235 + $0x68] sm:$0xff]
        %v2656 = vld [vmem:[%s235 + $0x70] sm:$0xff]
        %v2657 = vld [vmem:[%s235 + $0x78] sm:$0xff]
        %2674 = vrot.lane.b32.xlu0 %v2642, 120
        %v2675 = vpop.permute.xlu0 %2674
        %2676 = vrot.lane.b32.xlu0 %v2643, 120
        %v2677 = vpop.permute.xlu0 %2676
        %2678 = vrot.lane.b32.xlu0 %v2644, 120
        %v2679 = vpop.permute.xlu0 %2678
        %2680 = vrot.lane.b32.xlu0 %v2645, 120
        %v2681 = vpop.permute.xlu0 %2680
        %2682 = vrot.lane.b32.xlu0 %v2646, 120
        %v2683 = vpop.permute.xlu0 %2682
        %2684 = vrot.lane.b32.xlu0 %v2647, 120
        %v2685 = vpop.permute.xlu0 %2684
        %2686 = vrot.lane.b32.xlu0 %v2648, 120
        %v2687 = vpop.permute.xlu0 %2686
        %2688 = vrot.lane.b32.xlu0 %v2649, 120
        %v2689 = vpop.permute.xlu0 %2688
        %2690 = vrot.lane.b32.xlu0 %v2650, 120
        %v2691 = vpop.permute.xlu0 %2690
        %2692 = vrot.lane.b32.xlu0 %v2651, 120
        %v2693 = vpop.permute.xlu0 %2692
        %2694 = vrot.lane.b32.xlu0 %v2652, 120
        %v2695 = vpop.permute.xlu0 %2694
        %2696 = vrot.lane.b32.xlu0 %v2653, 120
        %v2697 = vpop.permute.xlu0 %2696
        %2698 = vrot.lane.b32.xlu0 %v2654, 120
        %v2699 = vpop.permute.xlu0 %2698
        %2700 = vrot.lane.b32.xlu0 %v2655, 120
        %v2701 = vpop.permute.xlu0 %2700
        %2702 = vrot.lane.b32.xlu0 %v2656, 120
        %v2703 = vpop.permute.xlu0 %2702
        %2704 = vrot.lane.b32.xlu0 %v2657, 120
        %v2705 = vpop.permute.xlu0 %2704
        %2722 = vxpose.xlu0.b32.start [1/16] %v2675, 128
        %2723 = vxpose.xlu0.b32.cont [2/16] %v2677, 128
        %2724 = vxpose.xlu0.b32.cont [3/16] 0.0, 128
        %2725 = vxpose.xlu0.b32.cont [4/16] 0.0, 128
        %2726 = vxpose.xlu0.b32.cont [5/16] 0.0, 128
        %2727 = vxpose.xlu0.b32.cont [6/16] 0.0, 128
        %2728 = vxpose.xlu0.b32.cont [7/16] 0.0, 128
        %2729 = vxpose.xlu0.b32.cont [8/16] 0.0, 128
        %2730 = vxpose.xlu0.b32.cont [9/16] 0.0, 128
        %2731 = vxpose.xlu0.b32.cont [10/16] 0.0, 128
        %2732 = vxpose.xlu0.b32.cont [11/16] 0.0, 128
        %2733 = vxpose.xlu0.b32.cont [12/16] 0.0, 128
        %2734 = vxpose.xlu0.b32.cont [13/16] 0.0, 128
        %2735 = vxpose.xlu0.b32.cont [14/16] 0.0, 128
        %2736 = vxpose.xlu0.b32.cont [15/16] 0.0, 128
        %2737 = vxpose.xlu0.b32.end [16/16] 0.0, 128
        %v2738 = vpop.trf.xlu0
        %v2739 = vpop.trf.xlu0
        %v2740 = vpop.trf.xlu0
        %v2741 = vpop.trf.xlu0
        %v2742 = vpop.trf.xlu0
        %v2743 = vpop.trf.xlu0
        %v2744 = vpop.trf.xlu0
        %v2745 = vpop.trf.xlu0
        %v2746 = vpop.trf.xlu0
        %v2747 = vpop.trf.xlu0
        %v2748 = vpop.trf.xlu0
        %v2749 = vpop.trf.xlu0
        %v2750 = vpop.trf.xlu0
        %v2751 = vpop.trf.xlu0
        %v2752 = vpop.trf.xlu0
        %v2753 = vpop.trf.xlu0
        %2754 = vxpose.xlu0.b32.start [1/16] %v2679, 128
        %2755 = vxpose.xlu0.b32.cont [2/16] %v2681, 128
        %2756 = vxpose.xlu0.b32.cont [3/16] 0.0, 128
        %2757 = vxpose.xlu0.b32.cont [4/16] 0.0, 128
        %2758 = vxpose.xlu0.b32.cont [5/16] 0.0, 128
        %2759 = vxpose.xlu0.b32.cont [6/16] 0.0, 128
        %2760 = vxpose.xlu0.b32.cont [7/16] 0.0, 128
        %2761 = vxpose.xlu0.b32.cont [8/16] 0.0, 128
        %2762 = vxpose.xlu0.b32.cont [9/16] 0.0, 128
        %2763 = vxpose.xlu0.b32.cont [10/16] 0.0, 128
        %2764 = vxpose.xlu0.b32.cont [11/16] 0.0, 128
        %2765 = vxpose.xlu0.b32.cont [12/16] 0.0, 128
        %2766 = vxpose.xlu0.b32.cont [13/16] 0.0, 128
        %2767 = vxpose.xlu0.b32.cont [14/16] 0.0, 128
        %2768 = vxpose.xlu0.b32.cont [15/16] 0.0, 128
        %2769 = vxpose.xlu0.b32.end [16/16] 0.0, 128
        %v2770 = vpop.trf.xlu0
        %v2771 = vpop.trf.xlu0
        %v2772 = vpop.trf.xlu0
        %v2773 = vpop.trf.xlu0
        %v2774 = vpop.trf.xlu0
        %v2775 = vpop.trf.xlu0
        %v2776 = vpop.trf.xlu0
        %v2777 = vpop.trf.xlu0
        %v2778 = vpop.trf.xlu0
        %v2779 = vpop.trf.xlu0
        %v2780 = vpop.trf.xlu0
        %v2781 = vpop.trf.xlu0
        %v2782 = vpop.trf.xlu0
        %v2783 = vpop.trf.xlu0
        %v2784 = vpop.trf.xlu0
        %v2785 = vpop.trf.xlu0
        %2786 = vxpose.xlu0.b32.start [1/16] %v2683, 128
        %2787 = vxpose.xlu0.b32.cont [2/16] %v2685, 128
        %2788 = vxpose.xlu0.b32.cont [3/16] 0.0, 128
        %2789 = vxpose.xlu0.b32.cont [4/16] 0.0, 128
        %2790 = vxpose.xlu0.b32.cont [5/16] 0.0, 128
        %2791 = vxpose.xlu0.b32.cont [6/16] 0.0, 128
        %2792 = vxpose.xlu0.b32.cont [7/16] 0.0, 128
        %2793 = vxpose.xlu0.b32.cont [8/16] 0.0, 128
        %2794 = vxpose.xlu0.b32.cont [9/16] 0.0, 128
        %2795 = vxpose.xlu0.b32.cont [10/16] 0.0, 128
        %2796 = vxpose.xlu0.b32.cont [11/16] 0.0, 128
        %2797 = vxpose.xlu0.b32.cont [12/16] 0.0, 128
        %2798 = vxpose.xlu0.b32.cont [13/16] 0.0, 128
        %2799 = vxpose.xlu0.b32.cont [14/16] 0.0, 128
        %2800 = vxpose.xlu0.b32.cont [15/16] 0.0, 128
        %2801 = vxpose.xlu0.b32.end [16/16] 0.0, 128
        %v2802 = vpop.trf.xlu0
        %v2803 = vpop.trf.xlu0
        %v2804 = vpop.trf.xlu0
        %v2805 = vpop.trf.xlu0
        %v2806 = vpop.trf.xlu0
        %v2807 = vpop.trf.xlu0
        %v2808 = vpop.trf.xlu0
        %v2809 = vpop.trf.xlu0
        %v2810 = vpop.trf.xlu0
        %v2811 = vpop.trf.xlu0
        %v2812 = vpop.trf.xlu0
        %v2813 = vpop.trf.xlu0
        %v2814 = vpop.trf.xlu0
        %v2815 = vpop.trf.xlu0
        %v2816 = vpop.trf.xlu0
        %v2817 = vpop.trf.xlu0
        %2818 = vxpose.xlu0.b32.start [1/16] %v2687, 128
        %2819 = vxpose.xlu0.b32.cont [2/16] %v2689, 128
        %2820 = vxpose.xlu0.b32.cont [3/16] 0.0, 128
        %2821 = vxpose.xlu0.b32.cont [4/16] 0.0, 128
        %2822 = vxpose.xlu0.b32.cont [5/16] 0.0, 128
        %2823 = vxpose.xlu0.b32.cont [6/16] 0.0, 128
        %2824 = vxpose.xlu0.b32.cont [7/16] 0.0, 128
        %2825 = vxpose.xlu0.b32.cont [8/16] 0.0, 128
        %2826 = vxpose.xlu0.b32.cont [9/16] 0.0, 128
        %2827 = vxpose.xlu0.b32.cont [10/16] 0.0, 128
        %2828 = vxpose.xlu0.b32.cont [11/16] 0.0, 128
        %2829 = vxpose.xlu0.b32.cont [12/16] 0.0, 128
        %2830 = vxpose.xlu0.b32.cont [13/16] 0.0, 128
        %2831 = vxpose.xlu0.b32.cont [14/16] 0.0, 128
        %2832 = vxpose.xlu0.b32.cont [15/16] 0.0, 128
        %2833 = vxpose.xlu0.b32.end [16/16] 0.0, 128
        %v2834 = vpop.trf.xlu0
        %v2835 = vpop.trf.xlu0
        %v2836 = vpop.trf.xlu0
        %v2837 = vpop.trf.xlu0
        %v2838 = vpop.trf.xlu0
        %v2839 = vpop.trf.xlu0
        %v2840 = vpop.trf.xlu0
        %v2841 = vpop.trf.xlu0
        %v2842 = vpop.trf.xlu0
        %v2843 = vpop.trf.xlu0
        %v2844 = vpop.trf.xlu0
        %v2845 = vpop.trf.xlu0
        %v2846 = vpop.trf.xlu0
        %v2847 = vpop.trf.xlu0
        %v2848 = vpop.trf.xlu0
        %v2849 = vpop.trf.xlu0
        %2850 = vxpose.xlu0.b32.start [1/16] %v2691, 128
        %2851 = vxpose.xlu0.b32.cont [2/16] %v2693, 128
        %2852 = vxpose.xlu0.b32.cont [3/16] 0.0, 128
        %2853 = vxpose.xlu0.b32.cont [4/16] 0.0, 128
        %2854 = vxpose.xlu0.b32.cont [5/16] 0.0, 128
        %2855 = vxpose.xlu0.b32.cont [6/16] 0.0, 128
        %2856 = vxpose.xlu0.b32.cont [7/16] 0.0, 128
        %2857 = vxpose.xlu0.b32.cont [8/16] 0.0, 128
        %2858 = vxpose.xlu0.b32.cont [9/16] 0.0, 128
        %2859 = vxpose.xlu0.b32.cont [10/16] 0.0, 128
        %2860 = vxpose.xlu0.b32.cont [11/16] 0.0, 128
        %2861 = vxpose.xlu0.b32.cont [12/16] 0.0, 128
        %2862 = vxpose.xlu0.b32.cont [13/16] 0.0, 128
        %2863 = vxpose.xlu0.b32.cont [14/16] 0.0, 128
        %2864 = vxpose.xlu0.b32.cont [15/16] 0.0, 128
        %2865 = vxpose.xlu0.b32.end [16/16] 0.0, 128
        %v2866 = vpop.trf.xlu0
        %v2867 = vpop.trf.xlu0
        %v2868 = vpop.trf.xlu0
        %v2869 = vpop.trf.xlu0
        %v2870 = vpop.trf.xlu0
        %v2871 = vpop.trf.xlu0
        %v2872 = vpop.trf.xlu0
        %v2873 = vpop.trf.xlu0
        %v2874 = vpop.trf.xlu0
        %v2875 = vpop.trf.xlu0
        %v2876 = vpop.trf.xlu0
        %v2877 = vpop.trf.xlu0
        %v2878 = vpop.trf.xlu0
        %v2879 = vpop.trf.xlu0
        %v2880 = vpop.trf.xlu0
        %v2881 = vpop.trf.xlu0
        %2882 = vxpose.xlu0.b32.start [1/16] %v2695, 128
        %2883 = vxpose.xlu0.b32.cont [2/16] %v2697, 128
        %2884 = vxpose.xlu0.b32.cont [3/16] 0.0, 128
        %2885 = vxpose.xlu0.b32.cont [4/16] 0.0, 128
        %2886 = vxpose.xlu0.b32.cont [5/16] 0.0, 128
        %2887 = vxpose.xlu0.b32.cont [6/16] 0.0, 128
        %2888 = vxpose.xlu0.b32.cont [7/16] 0.0, 128
        %2889 = vxpose.xlu0.b32.cont [8/16] 0.0, 128
        %2890 = vxpose.xlu0.b32.cont [9/16] 0.0, 128
        %2891 = vxpose.xlu0.b32.cont [10/16] 0.0, 128
        %2892 = vxpose.xlu0.b32.cont [11/16] 0.0, 128
        %2893 = vxpose.xlu0.b32.cont [12/16] 0.0, 128
        %2894 = vxpose.xlu0.b32.cont [13/16] 0.0, 128
        %2895 = vxpose.xlu0.b32.cont [14/16] 0.0, 128
        %2896 = vxpose.xlu0.b32.cont [15/16] 0.0, 128
        %2897 = vxpose.xlu0.b32.end [16/16] 0.0, 128
        %v2898 = vpop.trf.xlu0
        %v2899 = vpop.trf.xlu0
        %v2900 = vpop.trf.xlu0
        %v2901 = vpop.trf.xlu0
        %v2902 = vpop.trf.xlu0
        %v2903 = vpop.trf.xlu0
        %v2904 = vpop.trf.xlu0
        %v2905 = vpop.trf.xlu0
        %v2906 = vpop.trf.xlu0
        %v2907 = vpop.trf.xlu0
        %v2908 = vpop.trf.xlu0
        %v2909 = vpop.trf.xlu0
        %v2910 = vpop.trf.xlu0
        %v2911 = vpop.trf.xlu0
        %v2912 = vpop.trf.xlu0
        %v2913 = vpop.trf.xlu0
        %2914 = vxpose.xlu0.b32.start [1/16] %v2699, 128
        %2915 = vxpose.xlu0.b32.cont [2/16] %v2701, 128
        %2916 = vxpose.xlu0.b32.cont [3/16] 0.0, 128
        %2917 = vxpose.xlu0.b32.cont [4/16] 0.0, 128
        %2918 = vxpose.xlu0.b32.cont [5/16] 0.0, 128
        %2919 = vxpose.xlu0.b32.cont [6/16] 0.0, 128
        %2920 = vxpose.xlu0.b32.cont [7/16] 0.0, 128
        %2921 = vxpose.xlu0.b32.cont [8/16] 0.0, 128
        %2922 = vxpose.xlu0.b32.cont [9/16] 0.0, 128
        %2923 = vxpose.xlu0.b32.cont [10/16] 0.0, 128
        %2924 = vxpose.xlu0.b32.cont [11/16] 0.0, 128
        %2925 = vxpose.xlu0.b32.cont [12/16] 0.0, 128
        %2926 = vxpose.xlu0.b32.cont [13/16] 0.0, 128
        %2927 = vxpose.xlu0.b32.cont [14/16] 0.0, 128
        %2928 = vxpose.xlu0.b32.cont [15/16] 0.0, 128
        %2929 = vxpose.xlu0.b32.end [16/16] 0.0, 128
        %v2930 = vpop.trf.xlu0
        %v2931 = vpop.trf.xlu0
        %v2932 = vpop.trf.xlu0
        %v2933 = vpop.trf.xlu0
        %v2934 = vpop.trf.xlu0
        %v2935 = vpop.trf.xlu0
        %v2936 = vpop.trf.xlu0
        %v2937 = vpop.trf.xlu0
        %v2938 = vpop.trf.xlu0
        %v2939 = vpop.trf.xlu0
        %v2940 = vpop.trf.xlu0
        %v2941 = vpop.trf.xlu0
        %v2942 = vpop.trf.xlu0
        %v2943 = vpop.trf.xlu0
        %v2944 = vpop.trf.xlu0
        %v2945 = vpop.trf.xlu0
        %2946 = vxpose.xlu0.b32.start [1/16] %v2703, 128
        %2947 = vxpose.xlu0.b32.cont [2/16] %v2705, 128
        %2948 = vxpose.xlu0.b32.cont [3/16] 0.0, 128
        %2949 = vxpose.xlu0.b32.cont [4/16] 0.0, 128
        %2950 = vxpose.xlu0.b32.cont [5/16] 0.0, 128
        %2951 = vxpose.xlu0.b32.cont [6/16] 0.0, 128
        %2952 = vxpose.xlu0.b32.cont [7/16] 0.0, 128
        %2953 = vxpose.xlu0.b32.cont [8/16] 0.0, 128
        %2954 = vxpose.xlu0.b32.cont [9/16] 0.0, 128
        %2955 = vxpose.xlu0.b32.cont [10/16] 0.0, 128
        %2956 = vxpose.xlu0.b32.cont [11/16] 0.0, 128
        %2957 = vxpose.xlu0.b32.cont [12/16] 0.0, 128
        %2958 = vxpose.xlu0.b32.cont [13/16] 0.0, 128
        %2959 = vxpose.xlu0.b32.cont [14/16] 0.0, 128
        %2960 = vxpose.xlu0.b32.cont [15/16] 0.0, 128
        %2961 = vxpose.xlu0.b32.end [16/16] 0.0, 128
        %v2962 = vpop.trf.xlu0
        %v2963 = vpop.trf.xlu0
        %v2964 = vpop.trf.xlu0
        %v2965 = vpop.trf.xlu0
        %v2966 = vpop.trf.xlu0
        %v2967 = vpop.trf.xlu0
        %v2968 = vpop.trf.xlu0
        %v2969 = vpop.trf.xlu0
        %v2970 = vpop.trf.xlu0
        %v2971 = vpop.trf.xlu0
        %v2972 = vpop.trf.xlu0
        %v2973 = vpop.trf.xlu0
        %v2974 = vpop.trf.xlu0
        %v2975 = vpop.trf.xlu0
        %v2976 = vpop.trf.xlu0
        %v2977 = vpop.trf.xlu0
        %v2978 = vld [vmem:[#allocation5] sm:$0xff]
        %v2979 = vld [vmem:[#allocation5 + $0x8] sm:$0xff]
        %v2980 = vld [vmem:[#allocation5 + $0x10] sm:$0xff]
        %v2981 = vld [vmem:[#allocation5 + $0x18] sm:$0xff]
        %v2982 = vld [vmem:[#allocation5 + $0x20] sm:$0xff]
        %v2983 = vld [vmem:[#allocation5 + $0x28] sm:$0xff]
        %v2984 = vld [vmem:[#allocation5 + $0x30] sm:$0xff]
        %v2985 = vld [vmem:[#allocation5 + $0x38] sm:$0xff]
        %v2986 = vld [vmem:[#allocation2] sm:$0xff]
        %v2987 = vld [vmem:[#allocation2 + $0x8] sm:$0xff]
        %v2989 = vsel %vm542, %v2738, 0
        %v2992 = vsel %vm542, %v2770, 0
        %v2995 = vsel %vm542, %v2802, 0
        %v2998 = vsel %vm542, %v2834, 0
        %v3001 = vsel %vm542, %v2866, 0
        %v3004 = vsel %vm542, %v2898, 0
        %v3007 = vsel %vm542, %v2930, 0
        %v3010 = vsel %vm542, %v2962, 0
        %3012 = vmatprep.subr.mxu0 0.0
        %3013 = vmatpush1.msra.mxu0 0.0
        %3014 = vmatprep.subr.mxu0 0.0
        %3015 = vmatpush1.msra.mxu0 0.0
        %3016 = vmatprep.subr.mxu0 0.0
        %3017 = vmatpush1.msra.mxu0 0.0
        %3018 = vmatprep.subr.mxu0 0.0
        %3019 = vmatpush1.msra.mxu0 0.0
        %3020 = vmatprep.subr.mxu0 0.0
        %3021 = vmatpush1.msra.mxu0 0.0
        %3022 = vmatprep.subr.mxu0 0.0
        %3023 = vmatpush1.msra.mxu0 0.0
        %3024 = vmatprep.subr.mxu0 0.0
        %3025 = vmatpush1.msra.mxu0 0.0
        %3026 = vmatprep.subr.mxu0 0.0
        %3027 = vmatpush1.msra.mxu0 0.0
        %3028 = vmatprep.subr.mxu0 0.0
        %3029 = vmatpush1.msra.mxu0 0.0
        %3030 = vmatprep.subr.mxu0 0.0
        %3031 = vmatpush1.msra.mxu0 0.0
        %3032 = vmatprep.subr.mxu0 0.0
        %3033 = vmatpush1.msra.mxu0 0.0
        %3034 = vmatprep.subr.mxu0 0.0
        %3035 = vmatpush1.msra.mxu0 0.0
        %3036 = vmatprep.subr.mxu0 0.0
        %3037 = vmatpush1.msra.mxu0 0.0
        %3038 = vmatprep.subr.mxu0 0.0
        %3039 = vmatpush1.msra.mxu0 0.0
        %3040 = vmatprep.subr.mxu0 0.0
        %3041 = vmatpush1.msra.mxu0 %v2987
        %3042 = vmatprep.subr.mxu0 0.0
        %3043 = vmatpush1.msra.mxu0 %v2986
        %3044 = vmatprep.subr.mxu0 0.0
        %3045 = vmatpush2.msra.mxu0 0.0
        %3046 = vmatprep.subr.mxu0 0.0
        %3047 = vmatpush2.msra.mxu0 0.0
        %3048 = vmatprep.subr.mxu0 0.0
        %3049 = vmatpush2.msra.mxu0 0.0
        %3050 = vmatprep.subr.mxu0 0.0
        %3051 = vmatpush2.msra.mxu0 0.0
        %3052 = vmatprep.subr.mxu0 0.0
        %3053 = vmatpush2.msra.mxu0 0.0
        %3054 = vmatprep.subr.mxu0 0.0
        %3055 = vmatpush2.msra.mxu0 0.0
        %3056 = vmatprep.subr.mxu0 0.0
        %3057 = vmatpush2.msra.mxu0 0.0
        %3058 = vmatprep.subr.mxu0 0.0
        %3059 = vmatpush2.msra.mxu0 0.0
        %3060 = vmatprep.subr.mxu0 0.0
        %3061 = vmatpush2.msra.mxu0 0.0
        %3062 = vmatprep.subr.mxu0 0.0
        %3063 = vmatpush2.msra.mxu0 0.0
        %3064 = vmatprep.subr.mxu0 0.0
        %3065 = vmatpush2.msra.mxu0 0.0
        %3066 = vmatprep.subr.mxu0 0.0
        %3067 = vmatpush2.msra.mxu0 0.0
        %3068 = vmatprep.subr.mxu0 0.0
        %3069 = vmatpush2.msra.mxu0 0.0
        %3070 = vmatprep.subr.mxu0 0.0
        %3071 = vmatpush2.msra.mxu0 0.0
        %3072 = vmatprep.subr.mxu0 0.0
        %3073 = vmatpush2.msra.mxu0 0.0
        %3074 = vmatprep.subr.mxu0 0.0
        %3075 = vmatpush2.msra.mxu0 0.0
        %3076 = vmatprep.mubr.f32.mxu0 0.0
        %3077 = vmatmul.mubr.f32.gmra.mxu0 %v2989
        %v3078 = vpop.f32.mrf.mxu0
        %v3079 = vadd.f32 0.0, %v3078
        %v3080 = vpop.f32.mrf.mxu0
        %3081 = vmatprep.mubr.f32.mxu0 0.0
        %3082 = vmatmul.mubr.f32.gmra.mxu0 %v2992
        %v3083 = vpop.f32.mrf.mxu0
        %v3084 = vadd.f32 0.0, %v3083
        %v3085 = vpop.f32.mrf.mxu0
        %3086 = vmatprep.mubr.f32.mxu0 0.0
        %3087 = vmatmul.mubr.f32.gmra.mxu0 %v2995
        %v3088 = vpop.f32.mrf.mxu0
        %v3089 = vadd.f32 0.0, %v3088
        %v3090 = vpop.f32.mrf.mxu0
        %3091 = vmatprep.mubr.f32.mxu0 0.0
        %3092 = vmatmul.mubr.f32.gmra.mxu0 %v2998
        %v3093 = vpop.f32.mrf.mxu0
        %v3094 = vadd.f32 0.0, %v3093
        %v3095 = vpop.f32.mrf.mxu0
        %3096 = vmatprep.mubr.f32.mxu0 0.0
        %3097 = vmatmul.mubr.f32.gmra.mxu0 %v3001
        %v3098 = vpop.f32.mrf.mxu0
        %v3099 = vadd.f32 0.0, %v3098
        %v3100 = vpop.f32.mrf.mxu0
        %3101 = vmatprep.mubr.f32.mxu0 0.0
        %3102 = vmatmul.mubr.f32.gmra.mxu0 %v3004
        %v3103 = vpop.f32.mrf.mxu0
        %v3104 = vadd.f32 0.0, %v3103
        %v3105 = vpop.f32.mrf.mxu0
        %3106 = vmatprep.mubr.f32.mxu0 0.0
        %3107 = vmatmul.mubr.f32.gmra.mxu0 %v3007
        %v3108 = vpop.f32.mrf.mxu0
        %v3109 = vadd.f32 0.0, %v3108
        %v3110 = vpop.f32.mrf.mxu0
        %3111 = vmatprep.mubr.f32.mxu0 0.0
        %3112 = vmatmul.mubr.f32.gmra.mxu0 %v3010
        %v3113 = vpop.f32.mrf.mxu0
        %v3114 = vadd.f32 0.0, %v3113
        %v3115 = vpop.f32.mrf.mxu0
        %3116 = vdwg.mxu0
        %v3117 = vld [vmem:[%s672] sm:$0xff]
        %v3118 = vld [vmem:[%s672 + $0x8] sm:$0xff]
        %3119 = vmatprep.subr.mxu0 0.0
        %3120 = vmatpush1.msra.mxu0 0.0
        %3121 = vmatprep.subr.mxu0 0.0
        %3122 = vmatpush1.msra.mxu0 0.0
        %3123 = vmatprep.subr.mxu0 0.0
        %3124 = vmatpush1.msra.mxu0 0.0
        %3125 = vmatprep.subr.mxu0 0.0
        %3126 = vmatpush1.msra.mxu0 0.0
        %3127 = vmatprep.subr.mxu0 0.0
        %3128 = vmatpush1.msra.mxu0 0.0
        %3129 = vmatprep.subr.mxu0 0.0
        %3130 = vmatpush1.msra.mxu0 0.0
        %3131 = vmatprep.subr.mxu0 0.0
        %3132 = vmatpush1.msra.mxu0 0.0
        %3133 = vmatprep.subr.mxu0 0.0
        %3134 = vmatpush1.msra.mxu0 0.0
        %3135 = vmatprep.subr.mxu0 0.0
        %3136 = vmatpush1.msra.mxu0 0.0
        %3137 = vmatprep.subr.mxu0 0.0
        %3138 = vmatpush1.msra.mxu0 0.0
        %3139 = vmatprep.subr.mxu0 0.0
        %3140 = vmatpush1.msra.mxu0 0.0
        %3141 = vmatprep.subr.mxu0 0.0
        %3142 = vmatpush1.msra.mxu0 0.0
        %3143 = vmatprep.subr.mxu0 0.0
        %3144 = vmatpush1.msra.mxu0 0.0
        %3145 = vmatprep.subr.mxu0 0.0
        %3146 = vmatpush1.msra.mxu0 0.0
        %3147 = vmatprep.subr.mxu0 0.0
        %3148 = vmatpush1.msra.mxu0 %v3118
        %3149 = vmatprep.subr.mxu0 0.0
        %3150 = vmatpush1.msra.mxu0 %v3117
        %3151 = vmatprep.subr.mxu0 0.0
        %3152 = vmatpush2.msra.mxu0 0.0
        %3153 = vmatprep.subr.mxu0 0.0
        %3154 = vmatpush2.msra.mxu0 0.0
        %3155 = vmatprep.subr.mxu0 0.0
        %3156 = vmatpush2.msra.mxu0 0.0
        %3157 = vmatprep.subr.mxu0 0.0
        %3158 = vmatpush2.msra.mxu0 0.0
        %3159 = vmatprep.subr.mxu0 0.0
        %3160 = vmatpush2.msra.mxu0 0.0
        %3161 = vmatprep.subr.mxu0 0.0
        %3162 = vmatpush2.msra.mxu0 0.0
        %3163 = vmatprep.subr.mxu0 0.0
        %3164 = vmatpush2.msra.mxu0 0.0
        %3165 = vmatprep.subr.mxu0 0.0
        %3166 = vmatpush2.msra.mxu0 0.0
        %3167 = vmatprep.subr.mxu0 0.0
        %3168 = vmatpush2.msra.mxu0 0.0
        %3169 = vmatprep.subr.mxu0 0.0
        %3170 = vmatpush2.msra.mxu0 0.0
        %3171 = vmatprep.subr.mxu0 0.0
        %3172 = vmatpush2.msra.mxu0 0.0
        %3173 = vmatprep.subr.mxu0 0.0
        %3174 = vmatpush2.msra.mxu0 0.0
        %3175 = vmatprep.subr.mxu0 0.0
        %3176 = vmatpush2.msra.mxu0 0.0
        %3177 = vmatprep.subr.mxu0 0.0
        %3178 = vmatpush2.msra.mxu0 0.0
        %3179 = vmatprep.subr.mxu0 0.0
        %3180 = vmatpush2.msra.mxu0 0.0
        %3181 = vmatprep.subr.mxu0 0.0
        %3182 = vmatpush2.msra.mxu0 0.0
        %3183 = vmatprep.mubr.f32.mxu0 0.0
        %3184 = vmatmul.mubr.f32.gmra.mxu0 %v2989
        %v3185 = vpop.f32.mrf.mxu0
        %v3186 = vadd.f32 0.0, %v3185
        %v3187 = vpop.f32.mrf.mxu0
        %3188 = vmatprep.mubr.f32.mxu0 0.0
        %3189 = vmatmul.mubr.f32.gmra.mxu0 %v2992
        %v3190 = vpop.f32.mrf.mxu0
        %v3191 = vadd.f32 0.0, %v3190
        %v3192 = vpop.f32.mrf.mxu0
        %3193 = vmatprep.mubr.f32.mxu0 0.0
        %3194 = vmatmul.mubr.f32.gmra.mxu0 %v2995
        %v3195 = vpop.f32.mrf.mxu0
        %v3196 = vadd.f32 0.0, %v3195
        %v3197 = vpop.f32.mrf.mxu0
        %3198 = vmatprep.mubr.f32.mxu0 0.0
        %3199 = vmatmul.mubr.f32.gmra.mxu0 %v2998
        %v3200 = vpop.f32.mrf.mxu0
        %v3201 = vadd.f32 0.0, %v3200
        %v3202 = vpop.f32.mrf.mxu0
        %3203 = vmatprep.mubr.f32.mxu0 0.0
        %3204 = vmatmul.mubr.f32.gmra.mxu0 %v3001
        %v3205 = vpop.f32.mrf.mxu0
        %v3206 = vadd.f32 0.0, %v3205
        %v3207 = vpop.f32.mrf.mxu0
        %3208 = vmatprep.mubr.f32.mxu0 0.0
        %3209 = vmatmul.mubr.f32.gmra.mxu0 %v3004
        %v3210 = vpop.f32.mrf.mxu0
        %v3211 = vadd.f32 0.0, %v3210
        %v3212 = vpop.f32.mrf.mxu0
        %3213 = vmatprep.mubr.f32.mxu0 0.0
        %3214 = vmatmul.mubr.f32.gmra.mxu0 %v3007
        %v3215 = vpop.f32.mrf.mxu0
        %v3216 = vadd.f32 0.0, %v3215
        %v3217 = vpop.f32.mrf.mxu0
        %3218 = vmatprep.mubr.f32.mxu0 0.0
        %3219 = vmatmul.mubr.f32.gmra.mxu0 %v3010
        %v3220 = vpop.f32.mrf.mxu0
        %v3221 = vadd.f32 0.0, %v3220
        %v3222 = vpop.f32.mrf.mxu0
        %3223 = vdwg.mxu0
        %v3224 = vld [vmem:[%s780] sm:$0xff]
        %v3225 = vld [vmem:[%s780 + $0x8] sm:$0xff]
        %3226 = vmatprep.subr.mxu0 0.0
        %3227 = vmatpush1.msra.mxu0 0.0
        %3228 = vmatprep.subr.mxu0 0.0
        %3229 = vmatpush1.msra.mxu0 0.0
        %3230 = vmatprep.subr.mxu0 0.0
        %3231 = vmatpush1.msra.mxu0 0.0
        %3232 = vmatprep.subr.mxu0 0.0
        %3233 = vmatpush1.msra.mxu0 0.0
        %3234 = vmatprep.subr.mxu0 0.0
        %3235 = vmatpush1.msra.mxu0 0.0
        %3236 = vmatprep.subr.mxu0 0.0
        %3237 = vmatpush1.msra.mxu0 0.0
        %3238 = vmatprep.subr.mxu0 0.0
        %3239 = vmatpush1.msra.mxu0 0.0
        %3240 = vmatprep.subr.mxu0 0.0
        %3241 = vmatpush1.msra.mxu0 0.0
        %3242 = vmatprep.subr.mxu0 0.0
        %3243 = vmatpush1.msra.mxu0 0.0
        %3244 = vmatprep.subr.mxu0 0.0
        %3245 = vmatpush1.msra.mxu0 0.0
        %3246 = vmatprep.subr.mxu0 0.0
        %3247 = vmatpush1.msra.mxu0 0.0
        %3248 = vmatprep.subr.mxu0 0.0
        %3249 = vmatpush1.msra.mxu0 0.0
        %3250 = vmatprep.subr.mxu0 0.0
        %3251 = vmatpush1.msra.mxu0 0.0
        %3252 = vmatprep.subr.mxu0 0.0
        %3253 = vmatpush1.msra.mxu0 0.0
        %3254 = vmatprep.subr.mxu0 0.0
        %3255 = vmatpush1.msra.mxu0 %v3225
        %3256 = vmatprep.subr.mxu0 0.0
        %3257 = vmatpush1.msra.mxu0 %v3224
        %3258 = vmatprep.subr.mxu0 0.0
        %3259 = vmatpush2.msra.mxu0 0.0
        %3260 = vmatprep.subr.mxu0 0.0
        %3261 = vmatpush2.msra.mxu0 0.0
        %3262 = vmatprep.subr.mxu0 0.0
        %3263 = vmatpush2.msra.mxu0 0.0
        %3264 = vmatprep.subr.mxu0 0.0
        %3265 = vmatpush2.msra.mxu0 0.0
        %3266 = vmatprep.subr.mxu0 0.0
        %3267 = vmatpush2.msra.mxu0 0.0
        %3268 = vmatprep.subr.mxu0 0.0
        %3269 = vmatpush2.msra.mxu0 0.0
        %3270 = vmatprep.subr.mxu0 0.0
        %3271 = vmatpush2.msra.mxu0 0.0
        %3272 = vmatprep.subr.mxu0 0.0
        %3273 = vmatpush2.msra.mxu0 0.0
        %3274 = vmatprep.subr.mxu0 0.0
        %3275 = vmatpush2.msra.mxu0 0.0
        %3276 = vmatprep.subr.mxu0 0.0
        %3277 = vmatpush2.msra.mxu0 0.0
        %3278 = vmatprep.subr.mxu0 0.0
        %3279 = vmatpush2.msra.mxu0 0.0
        %3280 = vmatprep.subr.mxu0 0.0
        %3281 = vmatpush2.msra.mxu0 0.0
        %3282 = vmatprep.subr.mxu0 0.0
        %3283 = vmatpush2.msra.mxu0 0.0
        %3284 = vmatprep.subr.mxu0 0.0
        %3285 = vmatpush2.msra.mxu0 0.0
        %3286 = vmatprep.subr.mxu0 0.0
        %3287 = vmatpush2.msra.mxu0 0.0
        %3288 = vmatprep.subr.mxu0 0.0
        %3289 = vmatpush2.msra.mxu0 0.0
        %3290 = vmatprep.mubr.f32.mxu0 0.0
        %3291 = vmatmul.mubr.f32.gmra.mxu0 %v2989
        %v3292 = vpop.f32.mrf.mxu0
        %v3293 = vadd.f32 0.0, %v3292
        %v3294 = vpop.f32.mrf.mxu0
        %3295 = vmatprep.mubr.f32.mxu0 0.0
        %3296 = vmatmul.mubr.f32.gmra.mxu0 %v2992
        %v3297 = vpop.f32.mrf.mxu0
        %v3298 = vadd.f32 0.0, %v3297
        %v3299 = vpop.f32.mrf.mxu0
        %3300 = vmatprep.mubr.f32.mxu0 0.0
        %3301 = vmatmul.mubr.f32.gmra.mxu0 %v2995
        %v3302 = vpop.f32.mrf.mxu0
        %v3303 = vadd.f32 0.0, %v3302
        %v3304 = vpop.f32.mrf.mxu0
        %3305 = vmatprep.mubr.f32.mxu0 0.0
        %3306 = vmatmul.mubr.f32.gmra.mxu0 %v2998
        %v3307 = vpop.f32.mrf.mxu0
        %v3308 = vadd.f32 0.0, %v3307
        %v3309 = vpop.f32.mrf.mxu0
        %3310 = vmatprep.mubr.f32.mxu0 0.0
        %3311 = vmatmul.mubr.f32.gmra.mxu0 %v3001
        %v3312 = vpop.f32.mrf.mxu0
        %v3313 = vadd.f32 0.0, %v3312
        %v3314 = vpop.f32.mrf.mxu0
        %3315 = vmatprep.mubr.f32.mxu0 0.0
        %3316 = vmatmul.mubr.f32.gmra.mxu0 %v3004
        %v3317 = vpop.f32.mrf.mxu0
        %v3318 = vadd.f32 0.0, %v3317
        %v3319 = vpop.f32.mrf.mxu0
        %3320 = vmatprep.mubr.f32.mxu0 0.0
        %3321 = vmatmul.mubr.f32.gmra.mxu0 %v3007
        %v3322 = vpop.f32.mrf.mxu0
        %v3323 = vadd.f32 0.0, %v3322
        %v3324 = vpop.f32.mrf.mxu0
        %3325 = vmatprep.mubr.f32.mxu0 0.0
        %3326 = vmatmul.mubr.f32.gmra.mxu0 %v3010
        %v3327 = vpop.f32.mrf.mxu0
        %v3328 = vadd.f32 0.0, %v3327
        %v3329 = vpop.f32.mrf.mxu0
        %3330 = vdwg.mxu0
        %v3331 = vld [vmem:[%s888] sm:$0xff]
        %v3332 = vld [vmem:[%s888 + $0x8] sm:$0xff]
        %v3333 = vld [vmem:[%s888 + $0x10] sm:$0xff]
        %v3334 = vld [vmem:[%s888 + $0x18] sm:$0xff]
        %v3335 = vld [vmem:[%s888 + $0x20] sm:$0xff]
        %v3336 = vld [vmem:[%s888 + $0x28] sm:$0xff]
        %v3337 = vld [vmem:[%s888 + $0x30] sm:$0xff]
        %v3338 = vld [vmem:[%s888 + $0x38] sm:$0xff]
        %v3340 = vsel %vm897, %v3331, 0
        %v3343 = vsel %vm897, %v3332, 0
        %v3346 = vsel %vm897, %v3333, 0
        %v3349 = vsel %vm897, %v3334, 0
        %v3352 = vsel %vm897, %v3335, 0
        %v3355 = vsel %vm897, %v3336, 0
        %v3358 = vsel %vm897, %v3337, 0
        %v3361 = vsel %vm897, %v3338, 0
        %3363 = vmatprep.subr.mxu0 0.0
        %3364 = vmatpush1.msra.mxu0 0.0
        %3365 = vmatprep.subr.mxu0 0.0
        %3366 = vmatpush1.msra.mxu0 0.0
        %3367 = vmatprep.subr.mxu0 0.0
        %3368 = vmatpush1.msra.mxu0 0.0
        %3369 = vmatprep.subr.mxu0 0.0
        %3370 = vmatpush1.msra.mxu0 0.0
        %3371 = vmatprep.subr.mxu0 0.0
        %3372 = vmatpush1.msra.mxu0 0.0
        %3373 = vmatprep.subr.mxu0 0.0
        %3374 = vmatpush1.msra.mxu0 0.0
        %3375 = vmatprep.subr.mxu0 0.0
        %3376 = vmatpush1.msra.mxu0 0.0
        %3377 = vmatprep.subr.mxu0 0.0
        %3378 = vmatpush1.msra.mxu0 0.0
        %3379 = vmatprep.subr.mxu0 0.0
        %3380 = vmatpush1.msra.mxu0 %v3114
        %3381 = vmatprep.subr.mxu0 0.0
        %3382 = vmatpush1.msra.mxu0 %v3109
        %3383 = vmatprep.subr.mxu0 0.0
        %3384 = vmatpush1.msra.mxu0 %v3104
        %3385 = vmatprep.subr.mxu0 0.0
        %3386 = vmatpush1.msra.mxu0 %v3099
        %3387 = vmatprep.subr.mxu0 0.0
        %3388 = vmatpush1.msra.mxu0 %v3094
        %3389 = vmatprep.subr.mxu0 0.0
        %3390 = vmatpush1.msra.mxu0 %v3089
        %3391 = vmatprep.subr.mxu0 0.0
        %3392 = vmatpush1.msra.mxu0 %v3084
        %3393 = vmatprep.subr.mxu0 0.0
        %3394 = vmatpush1.msra.mxu0 %v3079
        %3395 = vmatprep.subr.mxu0 0.0
        %3396 = vmatpush2.msra.mxu0 0.0
        %3397 = vmatprep.subr.mxu0 0.0
        %3398 = vmatpush2.msra.mxu0 0.0
        %3399 = vmatprep.subr.mxu0 0.0
        %3400 = vmatpush2.msra.mxu0 0.0
        %3401 = vmatprep.subr.mxu0 0.0
        %3402 = vmatpush2.msra.mxu0 0.0
        %3403 = vmatprep.subr.mxu0 0.0
        %3404 = vmatpush2.msra.mxu0 0.0
        %3405 = vmatprep.subr.mxu0 0.0
        %3406 = vmatpush2.msra.mxu0 0.0
        %3407 = vmatprep.subr.mxu0 0.0
        %3408 = vmatpush2.msra.mxu0 0.0
        %3409 = vmatprep.subr.mxu0 0.0
        %3410 = vmatpush2.msra.mxu0 0.0
        %3411 = vmatprep.subr.mxu0 0.0
        %3412 = vmatpush2.msra.mxu0 0.0
        %3413 = vmatprep.subr.mxu0 0.0
        %3414 = vmatpush2.msra.mxu0 0.0
        %3415 = vmatprep.subr.mxu0 0.0
        %3416 = vmatpush2.msra.mxu0 0.0
        %3417 = vmatprep.subr.mxu0 0.0
        %3418 = vmatpush2.msra.mxu0 0.0
        %3419 = vmatprep.subr.mxu0 0.0
        %3420 = vmatpush2.msra.mxu0 0.0
        %3421 = vmatprep.subr.mxu0 0.0
        %3422 = vmatpush2.msra.mxu0 0.0
        %3423 = vmatprep.subr.mxu0 0.0
        %3424 = vmatpush2.msra.mxu0 0.0
        %3425 = vmatprep.subr.mxu0 0.0
        %3426 = vmatpush2.msra.mxu0 0.0
        %3427 = vmatprep.mubr.f32.mxu0 0.0
        %3428 = vmatmul.mubr.f32.gmra.mxu0 %v3340
        %v3429 = vpop.f32.mrf.mxu0
        %v3430 = vadd.f32 0.0, %v3429
        %v3431 = vpop.f32.mrf.mxu0
        %3432 = vmatprep.mubr.f32.mxu0 0.0
        %3433 = vmatmul.mubr.f32.gmra.mxu0 %v3343
        %v3434 = vpop.f32.mrf.mxu0
        %v3435 = vadd.f32 0.0, %v3434
        %v3436 = vpop.f32.mrf.mxu0
        %3437 = vmatprep.mubr.f32.mxu0 0.0
        %3438 = vmatmul.mubr.f32.gmra.mxu0 %v3346
        %v3439 = vpop.f32.mrf.mxu0
        %v3440 = vadd.f32 0.0, %v3439
        %v3441 = vpop.f32.mrf.mxu0
        %3442 = vmatprep.mubr.f32.mxu0 0.0
        %3443 = vmatmul.mubr.f32.gmra.mxu0 %v3349
        %v3444 = vpop.f32.mrf.mxu0
        %v3445 = vadd.f32 0.0, %v3444
        %v3446 = vpop.f32.mrf.mxu0
        %3447 = vmatprep.mubr.f32.mxu0 0.0
        %3448 = vmatmul.mubr.f32.gmra.mxu0 %v3352
        %v3449 = vpop.f32.mrf.mxu0
        %v3450 = vadd.f32 0.0, %v3449
        %v3451 = vpop.f32.mrf.mxu0
        %3452 = vmatprep.mubr.f32.mxu0 0.0
        %3453 = vmatmul.mubr.f32.gmra.mxu0 %v3355
        %v3454 = vpop.f32.mrf.mxu0
        %v3455 = vadd.f32 0.0, %v3454
        %v3456 = vpop.f32.mrf.mxu0
        %3457 = vmatprep.mubr.f32.mxu0 0.0
        %3458 = vmatmul.mubr.f32.gmra.mxu0 %v3358
        %v3459 = vpop.f32.mrf.mxu0
        %v3460 = vadd.f32 0.0, %v3459
        %v3461 = vpop.f32.mrf.mxu0
        %3462 = vmatprep.mubr.f32.mxu0 0.0
        %3463 = vmatmul.mubr.f32.gmra.mxu0 %v3361
        %v3464 = vpop.f32.mrf.mxu0
        %v3465 = vadd.f32 0.0, %v3464
        %v3466 = vpop.f32.mrf.mxu0
        %3467 = vdwg.mxu0
        %v3469 = vsel %vm897, %v2978, 0
        %v3472 = vsel %vm897, %v2979, 0
        %v3475 = vsel %vm897, %v2980, 0
        %v3478 = vsel %vm897, %v2981, 0
        %v3481 = vsel %vm897, %v2982, 0
        %v3484 = vsel %vm897, %v2983, 0
        %v3487 = vsel %vm897, %v2984, 0
        %v3490 = vsel %vm897, %v2985, 0
        %3492 = vmatprep.subr.mxu0 0.0
        %3493 = vmatpush1.msra.mxu0 0.0
        %3494 = vmatprep.subr.mxu0 0.0
        %3495 = vmatpush1.msra.mxu0 0.0
        %3496 = vmatprep.subr.mxu0 0.0
        %3497 = vmatpush1.msra.mxu0 0.0
        %3498 = vmatprep.subr.mxu0 0.0
        %3499 = vmatpush1.msra.mxu0 0.0
        %3500 = vmatprep.subr.mxu0 0.0
        %3501 = vmatpush1.msra.mxu0 0.0
        %3502 = vmatprep.subr.mxu0 0.0
        %3503 = vmatpush1.msra.mxu0 0.0
        %3504 = vmatprep.subr.mxu0 0.0
        %3505 = vmatpush1.msra.mxu0 0.0
        %3506 = vmatprep.subr.mxu0 0.0
        %3507 = vmatpush1.msra.mxu0 0.0
        %3508 = vmatprep.subr.mxu0 0.0
        %3509 = vmatpush1.msra.mxu0 %v2962
        %3510 = vmatprep.subr.mxu0 0.0
        %3511 = vmatpush1.msra.mxu0 %v2930
        %3512 = vmatprep.subr.mxu0 0.0
        %3513 = vmatpush1.msra.mxu0 %v2898
        %3514 = vmatprep.subr.mxu0 0.0
        %3515 = vmatpush1.msra.mxu0 %v2866
        %3516 = vmatprep.subr.mxu0 0.0
        %3517 = vmatpush1.msra.mxu0 %v2834
        %3518 = vmatprep.subr.mxu0 0.0
        %3519 = vmatpush1.msra.mxu0 %v2802
        %3520 = vmatprep.subr.mxu0 0.0
        %3521 = vmatpush1.msra.mxu0 %v2770
        %3522 = vmatprep.subr.mxu0 0.0
        %3523 = vmatpush1.msra.mxu0 %v2738
        %3524 = vmatprep.subr.mxu0 0.0
        %3525 = vmatpush2.msra.mxu0 0.0
        %3526 = vmatprep.subr.mxu0 0.0
        %3527 = vmatpush2.msra.mxu0 0.0
        %3528 = vmatprep.subr.mxu0 0.0
        %3529 = vmatpush2.msra.mxu0 0.0
        %3530 = vmatprep.subr.mxu0 0.0
        %3531 = vmatpush2.msra.mxu0 0.0
        %3532 = vmatprep.subr.mxu0 0.0
        %3533 = vmatpush2.msra.mxu0 0.0
        %3534 = vmatprep.subr.mxu0 0.0
        %3535 = vmatpush2.msra.mxu0 0.0
        %3536 = vmatprep.subr.mxu0 0.0
        %3537 = vmatpush2.msra.mxu0 0.0
        %3538 = vmatprep.subr.mxu0 0.0
        %3539 = vmatpush2.msra.mxu0 0.0
        %3540 = vmatprep.subr.mxu0 0.0
        %3541 = vmatpush2.msra.mxu0 0.0
        %3542 = vmatprep.subr.mxu0 0.0
        %3543 = vmatpush2.msra.mxu0 0.0
        %3544 = vmatprep.subr.mxu0 0.0
        %3545 = vmatpush2.msra.mxu0 0.0
        %3546 = vmatprep.subr.mxu0 0.0
        %3547 = vmatpush2.msra.mxu0 0.0
        %3548 = vmatprep.subr.mxu0 0.0
        %3549 = vmatpush2.msra.mxu0 0.0
        %3550 = vmatprep.subr.mxu0 0.0
        %3551 = vmatpush2.msra.mxu0 0.0
        %3552 = vmatprep.subr.mxu0 0.0
        %3553 = vmatpush2.msra.mxu0 0.0
        %3554 = vmatprep.subr.mxu0 0.0
        %3555 = vmatpush2.msra.mxu0 0.0
        %3556 = vmatprep.mubr.f32.mxu0 0.0
        %3557 = vmatmul.mubr.f32.gmra.mxu0 %v3469
        %v3558 = vpop.f32.mrf.mxu0
        %v3559 = vadd.f32 %v3430, %v3558
        %v3560 = vpop.f32.mrf.mxu0
        %3561 = vmatprep.mubr.f32.mxu0 0.0
        %3562 = vmatmul.mubr.f32.gmra.mxu0 %v3472
        %v3563 = vpop.f32.mrf.mxu0
        %v3564 = vadd.f32 %v3435, %v3563
        %v3565 = vpop.f32.mrf.mxu0
        %3566 = vmatprep.mubr.f32.mxu0 0.0
        %3567 = vmatmul.mubr.f32.gmra.mxu0 %v3475
        %v3568 = vpop.f32.mrf.mxu0
        %v3569 = vadd.f32 %v3440, %v3568
        %v3570 = vpop.f32.mrf.mxu0
        %3571 = vmatprep.mubr.f32.mxu0 0.0
        %3572 = vmatmul.mubr.f32.gmra.mxu0 %v3478
        %v3573 = vpop.f32.mrf.mxu0
        %v3574 = vadd.f32 %v3445, %v3573
        %v3575 = vpop.f32.mrf.mxu0
        %3576 = vmatprep.mubr.f32.mxu0 0.0
        %3577 = vmatmul.mubr.f32.gmra.mxu0 %v3481
        %v3578 = vpop.f32.mrf.mxu0
        %v3579 = vadd.f32 %v3450, %v3578
        %v3580 = vpop.f32.mrf.mxu0
        %3581 = vmatprep.mubr.f32.mxu0 0.0
        %3582 = vmatmul.mubr.f32.gmra.mxu0 %v3484
        %v3583 = vpop.f32.mrf.mxu0
        %v3584 = vadd.f32 %v3455, %v3583
        %v3585 = vpop.f32.mrf.mxu0
        %3586 = vmatprep.mubr.f32.mxu0 0.0
        %3587 = vmatmul.mubr.f32.gmra.mxu0 %v3487
        %v3588 = vpop.f32.mrf.mxu0
        %v3589 = vadd.f32 %v3460, %v3588
        %v3590 = vpop.f32.mrf.mxu0
        %3591 = vmatprep.mubr.f32.mxu0 0.0
        %3592 = vmatmul.mubr.f32.gmra.mxu0 %v3490
        %v3593 = vpop.f32.mrf.mxu0
        %v3594 = vadd.f32 %v3465, %v3593
        %v3595 = vpop.f32.mrf.mxu0
        %3596 = vdwg.mxu0
        %v3597 = vld [vmem:[%s1156] sm:$0xff]
        %v3598 = vld [vmem:[%s1156 + $0x8] sm:$0xff]
        %v3599 = vld [vmem:[%s1156 + $0x10] sm:$0xff]
        %v3600 = vld [vmem:[%s1156 + $0x18] sm:$0xff]
        %v3601 = vld [vmem:[%s1156 + $0x20] sm:$0xff]
        %v3602 = vld [vmem:[%s1156 + $0x28] sm:$0xff]
        %v3603 = vld [vmem:[%s1156 + $0x30] sm:$0xff]
        %v3604 = vld [vmem:[%s1156 + $0x38] sm:$0xff]
        %v3606 = vsel %vm897, %v3597, 0
        %v3609 = vsel %vm897, %v3598, 0
        %v3612 = vsel %vm897, %v3599, 0
        %v3615 = vsel %vm897, %v3600, 0
        %v3618 = vsel %vm897, %v3601, 0
        %v3621 = vsel %vm897, %v3602, 0
        %v3624 = vsel %vm897, %v3603, 0
        %v3627 = vsel %vm897, %v3604, 0
        %3629 = vmatprep.subr.mxu0 0.0
        %3630 = vmatpush1.msra.mxu0 0.0
        %3631 = vmatprep.subr.mxu0 0.0
        %3632 = vmatpush1.msra.mxu0 0.0
        %3633 = vmatprep.subr.mxu0 0.0
        %3634 = vmatpush1.msra.mxu0 0.0
        %3635 = vmatprep.subr.mxu0 0.0
        %3636 = vmatpush1.msra.mxu0 0.0
        %3637 = vmatprep.subr.mxu0 0.0
        %3638 = vmatpush1.msra.mxu0 0.0
        %3639 = vmatprep.subr.mxu0 0.0
        %3640 = vmatpush1.msra.mxu0 0.0
        %3641 = vmatprep.subr.mxu0 0.0
        %3642 = vmatpush1.msra.mxu0 0.0
        %3643 = vmatprep.subr.mxu0 0.0
        %3644 = vmatpush1.msra.mxu0 0.0
        %3645 = vmatprep.subr.mxu0 0.0
        %3646 = vmatpush1.msra.mxu0 %v3221
        %3647 = vmatprep.subr.mxu0 0.0
        %3648 = vmatpush1.msra.mxu0 %v3216
        %3649 = vmatprep.subr.mxu0 0.0
        %3650 = vmatpush1.msra.mxu0 %v3211
        %3651 = vmatprep.subr.mxu0 0.0
        %3652 = vmatpush1.msra.mxu0 %v3206
        %3653 = vmatprep.subr.mxu0 0.0
        %3654 = vmatpush1.msra.mxu0 %v3201
        %3655 = vmatprep.subr.mxu0 0.0
        %3656 = vmatpush1.msra.mxu0 %v3196
        %3657 = vmatprep.subr.mxu0 0.0
        %3658 = vmatpush1.msra.mxu0 %v3191
        %3659 = vmatprep.subr.mxu0 0.0
        %3660 = vmatpush1.msra.mxu0 %v3186
        %3661 = vmatprep.subr.mxu0 0.0
        %3662 = vmatpush2.msra.mxu0 0.0
        %3663 = vmatprep.subr.mxu0 0.0
        %3664 = vmatpush2.msra.mxu0 0.0
        %3665 = vmatprep.subr.mxu0 0.0
        %3666 = vmatpush2.msra.mxu0 0.0
        %3667 = vmatprep.subr.mxu0 0.0
        %3668 = vmatpush2.msra.mxu0 0.0
        %3669 = vmatprep.subr.mxu0 0.0
        %3670 = vmatpush2.msra.mxu0 0.0
        %3671 = vmatprep.subr.mxu0 0.0
        %3672 = vmatpush2.msra.mxu0 0.0
        %3673 = vmatprep.subr.mxu0 0.0
        %3674 = vmatpush2.msra.mxu0 0.0
        %3675 = vmatprep.subr.mxu0 0.0
        %3676 = vmatpush2.msra.mxu0 0.0
        %3677 = vmatprep.subr.mxu0 0.0
        %3678 = vmatpush2.msra.mxu0 0.0
        %3679 = vmatprep.subr.mxu0 0.0
        %3680 = vmatpush2.msra.mxu0 0.0
        %3681 = vmatprep.subr.mxu0 0.0
        %3682 = vmatpush2.msra.mxu0 0.0
        %3683 = vmatprep.subr.mxu0 0.0
        %3684 = vmatpush2.msra.mxu0 0.0
        %3685 = vmatprep.subr.mxu0 0.0
        %3686 = vmatpush2.msra.mxu0 0.0
        %3687 = vmatprep.subr.mxu0 0.0
        %3688 = vmatpush2.msra.mxu0 0.0
        %3689 = vmatprep.subr.mxu0 0.0
        %3690 = vmatpush2.msra.mxu0 0.0
        %3691 = vmatprep.subr.mxu0 0.0
        %3692 = vmatpush2.msra.mxu0 0.0
        %3693 = vmatprep.mubr.f32.mxu0 0.0
        %3694 = vmatmul.mubr.f32.gmra.mxu0 %v3606
        %v3695 = vpop.f32.mrf.mxu0
        %v3696 = vadd.f32 0.0, %v3695
        %v3697 = vpop.f32.mrf.mxu0
        %3698 = vmatprep.mubr.f32.mxu0 0.0
        %3699 = vmatmul.mubr.f32.gmra.mxu0 %v3609
        %v3700 = vpop.f32.mrf.mxu0
        %v3701 = vadd.f32 0.0, %v3700
        %v3702 = vpop.f32.mrf.mxu0
        %3703 = vmatprep.mubr.f32.mxu0 0.0
        %3704 = vmatmul.mubr.f32.gmra.mxu0 %v3612
        %v3705 = vpop.f32.mrf.mxu0
        %v3706 = vadd.f32 0.0, %v3705
        %v3707 = vpop.f32.mrf.mxu0
        %3708 = vmatprep.mubr.f32.mxu0 0.0
        %3709 = vmatmul.mubr.f32.gmra.mxu0 %v3615
        %v3710 = vpop.f32.mrf.mxu0
        %v3711 = vadd.f32 0.0, %v3710
        %v3712 = vpop.f32.mrf.mxu0
        %3713 = vmatprep.mubr.f32.mxu0 0.0
        %3714 = vmatmul.mubr.f32.gmra.mxu0 %v3618
        %v3715 = vpop.f32.mrf.mxu0
        %v3716 = vadd.f32 0.0, %v3715
        %v3717 = vpop.f32.mrf.mxu0
        %3718 = vmatprep.mubr.f32.mxu0 0.0
        %3719 = vmatmul.mubr.f32.gmra.mxu0 %v3621
        %v3720 = vpop.f32.mrf.mxu0
        %v3721 = vadd.f32 0.0, %v3720
        %v3722 = vpop.f32.mrf.mxu0
        %3723 = vmatprep.mubr.f32.mxu0 0.0
        %3724 = vmatmul.mubr.f32.gmra.mxu0 %v3624
        %v3725 = vpop.f32.mrf.mxu0
        %v3726 = vadd.f32 0.0, %v3725
        %v3727 = vpop.f32.mrf.mxu0
        %3728 = vmatprep.mubr.f32.mxu0 0.0
        %3729 = vmatmul.mubr.f32.gmra.mxu0 %v3627
        %v3730 = vpop.f32.mrf.mxu0
        %v3731 = vadd.f32 0.0, %v3730
        %v3732 = vpop.f32.mrf.mxu0
        %3733 = vdwg.mxu0
        %v3734 = vadd.f32 %v3559, %v3696
        %v3735 = vadd.f32 %v3564, %v3701
        %v3736 = vadd.f32 %v3569, %v3706
        %v3737 = vadd.f32 %v3574, %v3711
        %v3738 = vadd.f32 %v3579, %v3716
        %v3739 = vadd.f32 %v3584, %v3721
        %v3740 = vadd.f32 %v3589, %v3726
        %v3741 = vadd.f32 %v3594, %v3731
        %v3742 = vld [vmem:[%s1302] sm:$0xff]
        %v3743 = vld [vmem:[%s1302 + $0x8] sm:$0xff]
        %v3744 = vld [vmem:[%s1302 + $0x10] sm:$0xff]
        %v3745 = vld [vmem:[%s1302 + $0x18] sm:$0xff]
        %v3746 = vld [vmem:[%s1302 + $0x20] sm:$0xff]
        %v3747 = vld [vmem:[%s1302 + $0x28] sm:$0xff]
        %v3748 = vld [vmem:[%s1302 + $0x30] sm:$0xff]
        %v3749 = vld [vmem:[%s1302 + $0x38] sm:$0xff]
        %v3751 = vsel %vm897, %v3742, 0
        %v3754 = vsel %vm897, %v3743, 0
        %v3757 = vsel %vm897, %v3744, 0
        %v3760 = vsel %vm897, %v3745, 0
        %v3763 = vsel %vm897, %v3746, 0
        %v3766 = vsel %vm897, %v3747, 0
        %v3769 = vsel %vm897, %v3748, 0
        %v3772 = vsel %vm897, %v3749, 0
        %3774 = vmatprep.subr.mxu0 0.0
        %3775 = vmatpush1.msra.mxu0 0.0
        %3776 = vmatprep.subr.mxu0 0.0
        %3777 = vmatpush1.msra.mxu0 0.0
        %3778 = vmatprep.subr.mxu0 0.0
        %3779 = vmatpush1.msra.mxu0 0.0
        %3780 = vmatprep.subr.mxu0 0.0
        %3781 = vmatpush1.msra.mxu0 0.0
        %3782 = vmatprep.subr.mxu0 0.0
        %3783 = vmatpush1.msra.mxu0 0.0
        %3784 = vmatprep.subr.mxu0 0.0
        %3785 = vmatpush1.msra.mxu0 0.0
        %3786 = vmatprep.subr.mxu0 0.0
        %3787 = vmatpush1.msra.mxu0 0.0
        %3788 = vmatprep.subr.mxu0 0.0
        %3789 = vmatpush1.msra.mxu0 0.0
        %3790 = vmatprep.subr.mxu0 0.0
        %3791 = vmatpush1.msra.mxu0 %v3328
        %3792 = vmatprep.subr.mxu0 0.0
        %3793 = vmatpush1.msra.mxu0 %v3323
        %3794 = vmatprep.subr.mxu0 0.0
        %3795 = vmatpush1.msra.mxu0 %v3318
        %3796 = vmatprep.subr.mxu0 0.0
        %3797 = vmatpush1.msra.mxu0 %v3313
        %3798 = vmatprep.subr.mxu0 0.0
        %3799 = vmatpush1.msra.mxu0 %v3308
        %3800 = vmatprep.subr.mxu0 0.0
        %3801 = vmatpush1.msra.mxu0 %v3303
        %3802 = vmatprep.subr.mxu0 0.0
        %3803 = vmatpush1.msra.mxu0 %v3298
        %3804 = vmatprep.subr.mxu0 0.0
        %3805 = vmatpush1.msra.mxu0 %v3293
        %3806 = vmatprep.subr.mxu0 0.0
        %3807 = vmatpush2.msra.mxu0 0.0
        %3808 = vmatprep.subr.mxu0 0.0
        %3809 = vmatpush2.msra.mxu0 0.0
        %3810 = vmatprep.subr.mxu0 0.0
        %3811 = vmatpush2.msra.mxu0 0.0
        %3812 = vmatprep.subr.mxu0 0.0
        %3813 = vmatpush2.msra.mxu0 0.0
        %3814 = vmatprep.subr.mxu0 0.0
        %3815 = vmatpush2.msra.mxu0 0.0
        %3816 = vmatprep.subr.mxu0 0.0
        %3817 = vmatpush2.msra.mxu0 0.0
        %3818 = vmatprep.subr.mxu0 0.0
        %3819 = vmatpush2.msra.mxu0 0.0
        %3820 = vmatprep.subr.mxu0 0.0
        %3821 = vmatpush2.msra.mxu0 0.0
        %3822 = vmatprep.subr.mxu0 0.0
        %3823 = vmatpush2.msra.mxu0 0.0
        %3824 = vmatprep.subr.mxu0 0.0
        %3825 = vmatpush2.msra.mxu0 0.0
        %3826 = vmatprep.subr.mxu0 0.0
        %3827 = vmatpush2.msra.mxu0 0.0
        %3828 = vmatprep.subr.mxu0 0.0
        %3829 = vmatpush2.msra.mxu0 0.0
        %3830 = vmatprep.subr.mxu0 0.0
        %3831 = vmatpush2.msra.mxu0 0.0
        %3832 = vmatprep.subr.mxu0 0.0
        %3833 = vmatpush2.msra.mxu0 0.0
        %3834 = vmatprep.subr.mxu0 0.0
        %3835 = vmatpush2.msra.mxu0 0.0
        %3836 = vmatprep.subr.mxu0 0.0
        %3837 = vmatpush2.msra.mxu0 0.0
        %3838 = vmatprep.mubr.f32.mxu0 0.0
        %3839 = vmatmul.mubr.f32.gmra.mxu0 %v3751
        %v3840 = vpop.f32.mrf.mxu0
        %v3841 = vadd.f32 0.0, %v3840
        %v3842 = vpop.f32.mrf.mxu0
        %3843 = vmatprep.mubr.f32.mxu0 0.0
        %3844 = vmatmul.mubr.f32.gmra.mxu0 %v3754
        %v3845 = vpop.f32.mrf.mxu0
        %v3846 = vadd.f32 0.0, %v3845
        %v3847 = vpop.f32.mrf.mxu0
        %3848 = vmatprep.mubr.f32.mxu0 0.0
        %3849 = vmatmul.mubr.f32.gmra.mxu0 %v3757
        %v3850 = vpop.f32.mrf.mxu0
        %v3851 = vadd.f32 0.0, %v3850
        %v3852 = vpop.f32.mrf.mxu0
        %3853 = vmatprep.mubr.f32.mxu0 0.0
        %3854 = vmatmul.mubr.f32.gmra.mxu0 %v3760
        %v3855 = vpop.f32.mrf.mxu0
        %v3856 = vadd.f32 0.0, %v3855
        %v3857 = vpop.f32.mrf.mxu0
        %3858 = vmatprep.mubr.f32.mxu0 0.0
        %3859 = vmatmul.mubr.f32.gmra.mxu0 %v3763
        %v3860 = vpop.f32.mrf.mxu0
        %v3861 = vadd.f32 0.0, %v3860
        %v3862 = vpop.f32.mrf.mxu0
        %3863 = vmatprep.mubr.f32.mxu0 0.0
        %3864 = vmatmul.mubr.f32.gmra.mxu0 %v3766
        %v3865 = vpop.f32.mrf.mxu0
        %v3866 = vadd.f32 0.0, %v3865
        %v3867 = vpop.f32.mrf.mxu0
        %3868 = vmatprep.mubr.f32.mxu0 0.0
        %3869 = vmatmul.mubr.f32.gmra.mxu0 %v3769
        %v3870 = vpop.f32.mrf.mxu0
        %v3871 = vadd.f32 0.0, %v3870
        %v3872 = vpop.f32.mrf.mxu0
        %3873 = vmatprep.mubr.f32.mxu0 0.0
        %3874 = vmatmul.mubr.f32.gmra.mxu0 %v3772
        %v3875 = vpop.f32.mrf.mxu0
        %v3876 = vadd.f32 0.0, %v3875
        %v3877 = vpop.f32.mrf.mxu0
        %3878 = vdwg.mxu0
        %v3879 = vadd.f32 %v3734, %v3841
        %v3880 = vadd.f32 %v3735, %v3846
        %v3881 = vadd.f32 %v3736, %v3851
        %v3882 = vadd.f32 %v3737, %v3856
        %v3883 = vadd.f32 %v3738, %v3861
        %v3884 = vadd.f32 %v3739, %v3866
        %v3885 = vadd.f32 %v3740, %v3871
        %v3886 = vadd.f32 %v3741, %v3876
        %v3888 = vsel %vm542, %v3079, 0
        %v3891 = vsel %vm542, %v3084, 0
        %v3894 = vsel %vm542, %v3089, 0
        %v3897 = vsel %vm542, %v3094, 0
        %v3900 = vsel %vm542, %v3099, 0
        %v3903 = vsel %vm542, %v3104, 0
        %v3906 = vsel %vm542, %v3109, 0
        %v3909 = vsel %vm542, %v3114, 0
        %3911 = vmatprep.subr.mxu0 0.0
        %3912 = vmatpush1.msra.mxu0 0.0
        %3913 = vmatprep.subr.mxu0 0.0
        %3914 = vmatpush1.msra.mxu0 0.0
        %3915 = vmatprep.subr.mxu0 0.0
        %3916 = vmatpush1.msra.mxu0 0.0
        %3917 = vmatprep.subr.mxu0 0.0
        %3918 = vmatpush1.msra.mxu0 0.0
        %3919 = vmatprep.subr.mxu0 0.0
        %3920 = vmatpush1.msra.mxu0 0.0
        %3921 = vmatprep.subr.mxu0 0.0
        %3922 = vmatpush1.msra.mxu0 0.0
        %3923 = vmatprep.subr.mxu0 0.0
        %3924 = vmatpush1.msra.mxu0 0.0
        %3925 = vmatprep.subr.mxu0 0.0
        %3926 = vmatpush1.msra.mxu0 0.0
        %3927 = vmatprep.subr.mxu0 0.0
        %3928 = vmatpush1.msra.mxu0 0.0
        %3929 = vmatprep.subr.mxu0 0.0
        %3930 = vmatpush1.msra.mxu0 0.0
        %3931 = vmatprep.subr.mxu0 0.0
        %3932 = vmatpush1.msra.mxu0 0.0
        %3933 = vmatprep.subr.mxu0 0.0
        %3934 = vmatpush1.msra.mxu0 0.0
        %3935 = vmatprep.subr.mxu0 0.0
        %3936 = vmatpush1.msra.mxu0 0.0
        %3937 = vmatprep.subr.mxu0 0.0
        %3938 = vmatpush1.msra.mxu0 0.0
        %3939 = vmatprep.subr.mxu0 0.0
        %3940 = vmatpush1.msra.mxu0 %v2987
        %3941 = vmatprep.subr.mxu0 0.0
        %3942 = vmatpush1.msra.mxu0 %v2986
        %3943 = vmatprep.subr.mxu0 0.0
        %3944 = vmatpush2.msra.mxu0 0.0
        %3945 = vmatprep.subr.mxu0 0.0
        %3946 = vmatpush2.msra.mxu0 0.0
        %3947 = vmatprep.subr.mxu0 0.0
        %3948 = vmatpush2.msra.mxu0 0.0
        %3949 = vmatprep.subr.mxu0 0.0
        %3950 = vmatpush2.msra.mxu0 0.0
        %3951 = vmatprep.subr.mxu0 0.0
        %3952 = vmatpush2.msra.mxu0 0.0
        %3953 = vmatprep.subr.mxu0 0.0
        %3954 = vmatpush2.msra.mxu0 0.0
        %3955 = vmatprep.subr.mxu0 0.0
        %3956 = vmatpush2.msra.mxu0 0.0
        %3957 = vmatprep.subr.mxu0 0.0
        %3958 = vmatpush2.msra.mxu0 0.0
        %3959 = vmatprep.subr.mxu0 0.0
        %3960 = vmatpush2.msra.mxu0 0.0
        %3961 = vmatprep.subr.mxu0 0.0
        %3962 = vmatpush2.msra.mxu0 0.0
        %3963 = vmatprep.subr.mxu0 0.0
        %3964 = vmatpush2.msra.mxu0 0.0
        %3965 = vmatprep.subr.mxu0 0.0
        %3966 = vmatpush2.msra.mxu0 0.0
        %3967 = vmatprep.subr.mxu0 0.0
        %3968 = vmatpush2.msra.mxu0 0.0
        %3969 = vmatprep.subr.mxu0 0.0
        %3970 = vmatpush2.msra.mxu0 0.0
        %3971 = vmatprep.subr.mxu0 0.0
        %3972 = vmatpush2.msra.mxu0 0.0
        %3973 = vmatprep.subr.mxu0 0.0
        %3974 = vmatpush2.msra.mxu0 0.0
        %3975 = vmatprep.mubr.f32.mxu0 0.0
        %3976 = vmatmul.mubr.f32.gmra.mxu0 %v3888
        %v3977 = vpop.f32.mrf.mxu0
        %v3978 = vadd.f32 0.0, %v3977
        %v3979 = vpop.f32.mrf.mxu0
        %3980 = vmatprep.mubr.f32.mxu0 0.0
        %3981 = vmatmul.mubr.f32.gmra.mxu0 %v3891
        %v3982 = vpop.f32.mrf.mxu0
        %v3983 = vadd.f32 0.0, %v3982
        %v3984 = vpop.f32.mrf.mxu0
        %3985 = vmatprep.mubr.f32.mxu0 0.0
        %3986 = vmatmul.mubr.f32.gmra.mxu0 %v3894
        %v3987 = vpop.f32.mrf.mxu0
        %v3988 = vadd.f32 0.0, %v3987
        %v3989 = vpop.f32.mrf.mxu0
        %3990 = vmatprep.mubr.f32.mxu0 0.0
        %3991 = vmatmul.mubr.f32.gmra.mxu0 %v3897
        %v3992 = vpop.f32.mrf.mxu0
        %v3993 = vadd.f32 0.0, %v3992
        %v3994 = vpop.f32.mrf.mxu0
        %3995 = vmatprep.mubr.f32.mxu0 0.0
        %3996 = vmatmul.mubr.f32.gmra.mxu0 %v3900
        %v3997 = vpop.f32.mrf.mxu0
        %v3998 = vadd.f32 0.0, %v3997
        %v3999 = vpop.f32.mrf.mxu0
        %4000 = vmatprep.mubr.f32.mxu0 0.0
        %4001 = vmatmul.mubr.f32.gmra.mxu0 %v3903
        %v4002 = vpop.f32.mrf.mxu0
        %v4003 = vadd.f32 0.0, %v4002
        %v4004 = vpop.f32.mrf.mxu0
        %4005 = vmatprep.mubr.f32.mxu0 0.0
        %4006 = vmatmul.mubr.f32.gmra.mxu0 %v3906
        %v4007 = vpop.f32.mrf.mxu0
        %v4008 = vadd.f32 0.0, %v4007
        %v4009 = vpop.f32.mrf.mxu0
        %4010 = vmatprep.mubr.f32.mxu0 0.0
        %4011 = vmatmul.mubr.f32.gmra.mxu0 %v3909
        %v4012 = vpop.f32.mrf.mxu0
        %v4013 = vadd.f32 0.0, %v4012
        %v4014 = vpop.f32.mrf.mxu0
        %4015 = vdwg.mxu0
        %v4017 = vsel %vm542, %v3186, 0
        %v4020 = vsel %vm542, %v3191, 0
        %v4023 = vsel %vm542, %v3196, 0
        %v4026 = vsel %vm542, %v3201, 0
        %v4029 = vsel %vm542, %v3206, 0
        %v4032 = vsel %vm542, %v3211, 0
        %v4035 = vsel %vm542, %v3216, 0
        %v4038 = vsel %vm542, %v3221, 0
        %4040 = vmatprep.subr.mxu0 0.0
        %4041 = vmatpush1.msra.mxu0 0.0
        %4042 = vmatprep.subr.mxu0 0.0
        %4043 = vmatpush1.msra.mxu0 0.0
        %4044 = vmatprep.subr.mxu0 0.0
        %4045 = vmatpush1.msra.mxu0 0.0
        %4046 = vmatprep.subr.mxu0 0.0
        %4047 = vmatpush1.msra.mxu0 0.0
        %4048 = vmatprep.subr.mxu0 0.0
        %4049 = vmatpush1.msra.mxu0 0.0
        %4050 = vmatprep.subr.mxu0 0.0
        %4051 = vmatpush1.msra.mxu0 0.0
        %4052 = vmatprep.subr.mxu0 0.0
        %4053 = vmatpush1.msra.mxu0 0.0
        %4054 = vmatprep.subr.mxu0 0.0
        %4055 = vmatpush1.msra.mxu0 0.0
        %4056 = vmatprep.subr.mxu0 0.0
        %4057 = vmatpush1.msra.mxu0 0.0
        %4058 = vmatprep.subr.mxu0 0.0
        %4059 = vmatpush1.msra.mxu0 0.0
        %4060 = vmatprep.subr.mxu0 0.0
        %4061 = vmatpush1.msra.mxu0 0.0
        %4062 = vmatprep.subr.mxu0 0.0
        %4063 = vmatpush1.msra.mxu0 0.0
        %4064 = vmatprep.subr.mxu0 0.0
        %4065 = vmatpush1.msra.mxu0 0.0
        %4066 = vmatprep.subr.mxu0 0.0
        %4067 = vmatpush1.msra.mxu0 0.0
        %4068 = vmatprep.subr.mxu0 0.0
        %4069 = vmatpush1.msra.mxu0 %v3118
        %4070 = vmatprep.subr.mxu0 0.0
        %4071 = vmatpush1.msra.mxu0 %v3117
        %4072 = vmatprep.subr.mxu0 0.0
        %4073 = vmatpush2.msra.mxu0 0.0
        %4074 = vmatprep.subr.mxu0 0.0
        %4075 = vmatpush2.msra.mxu0 0.0
        %4076 = vmatprep.subr.mxu0 0.0
        %4077 = vmatpush2.msra.mxu0 0.0
        %4078 = vmatprep.subr.mxu0 0.0
        %4079 = vmatpush2.msra.mxu0 0.0
        %4080 = vmatprep.subr.mxu0 0.0
        %4081 = vmatpush2.msra.mxu0 0.0
        %4082 = vmatprep.subr.mxu0 0.0
        %4083 = vmatpush2.msra.mxu0 0.0
        %4084 = vmatprep.subr.mxu0 0.0
        %4085 = vmatpush2.msra.mxu0 0.0
        %4086 = vmatprep.subr.mxu0 0.0
        %4087 = vmatpush2.msra.mxu0 0.0
        %4088 = vmatprep.subr.mxu0 0.0
        %4089 = vmatpush2.msra.mxu0 0.0
        %4090 = vmatprep.subr.mxu0 0.0
        %4091 = vmatpush2.msra.mxu0 0.0
        %4092 = vmatprep.subr.mxu0 0.0
        %4093 = vmatpush2.msra.mxu0 0.0
        %4094 = vmatprep.subr.mxu0 0.0
        %4095 = vmatpush2.msra.mxu0 0.0
        %4096 = vmatprep.subr.mxu0 0.0
        %4097 = vmatpush2.msra.mxu0 0.0
        %4098 = vmatprep.subr.mxu0 0.0
        %4099 = vmatpush2.msra.mxu0 0.0
        %4100 = vmatprep.subr.mxu0 0.0
        %4101 = vmatpush2.msra.mxu0 0.0
        %4102 = vmatprep.subr.mxu0 0.0
        %4103 = vmatpush2.msra.mxu0 0.0
        %4104 = vmatprep.mubr.f32.mxu0 0.0
        %4105 = vmatmul.mubr.f32.gmra.mxu0 %v4017
        %v4106 = vpop.f32.mrf.mxu0
        %v4107 = vadd.f32 0.0, %v4106
        %v4108 = vpop.f32.mrf.mxu0
        %4109 = vmatprep.mubr.f32.mxu0 0.0
        %4110 = vmatmul.mubr.f32.gmra.mxu0 %v4020
        %v4111 = vpop.f32.mrf.mxu0
        %v4112 = vadd.f32 0.0, %v4111
        %v4113 = vpop.f32.mrf.mxu0
        %4114 = vmatprep.mubr.f32.mxu0 0.0
        %4115 = vmatmul.mubr.f32.gmra.mxu0 %v4023
        %v4116 = vpop.f32.mrf.mxu0
        %v4117 = vadd.f32 0.0, %v4116
        %v4118 = vpop.f32.mrf.mxu0
        %4119 = vmatprep.mubr.f32.mxu0 0.0
        %4120 = vmatmul.mubr.f32.gmra.mxu0 %v4026
        %v4121 = vpop.f32.mrf.mxu0
        %v4122 = vadd.f32 0.0, %v4121
        %v4123 = vpop.f32.mrf.mxu0
        %4124 = vmatprep.mubr.f32.mxu0 0.0
        %4125 = vmatmul.mubr.f32.gmra.mxu0 %v4029
        %v4126 = vpop.f32.mrf.mxu0
        %v4127 = vadd.f32 0.0, %v4126
        %v4128 = vpop.f32.mrf.mxu0
        %4129 = vmatprep.mubr.f32.mxu0 0.0
        %4130 = vmatmul.mubr.f32.gmra.mxu0 %v4032
        %v4131 = vpop.f32.mrf.mxu0
        %v4132 = vadd.f32 0.0, %v4131
        %v4133 = vpop.f32.mrf.mxu0
        %4134 = vmatprep.mubr.f32.mxu0 0.0
        %4135 = vmatmul.mubr.f32.gmra.mxu0 %v4035
        %v4136 = vpop.f32.mrf.mxu0
        %v4137 = vadd.f32 0.0, %v4136
        %v4138 = vpop.f32.mrf.mxu0
        %4139 = vmatprep.mubr.f32.mxu0 0.0
        %4140 = vmatmul.mubr.f32.gmra.mxu0 %v4038
        %v4141 = vpop.f32.mrf.mxu0
        %v4142 = vadd.f32 0.0, %v4141
        %v4143 = vpop.f32.mrf.mxu0
        %4144 = vdwg.mxu0
        %v4146 = vsel %vm542, %v3293, 0
        %v4149 = vsel %vm542, %v3298, 0
        %v4152 = vsel %vm542, %v3303, 0
        %v4155 = vsel %vm542, %v3308, 0
        %v4158 = vsel %vm542, %v3313, 0
        %v4161 = vsel %vm542, %v3318, 0
        %v4164 = vsel %vm542, %v3323, 0
        %v4167 = vsel %vm542, %v3328, 0
        %4169 = vmatprep.subr.mxu0 0.0
        %4170 = vmatpush1.msra.mxu0 0.0
        %4171 = vmatprep.subr.mxu0 0.0
        %4172 = vmatpush1.msra.mxu0 0.0
        %4173 = vmatprep.subr.mxu0 0.0
        %4174 = vmatpush1.msra.mxu0 0.0
        %4175 = vmatprep.subr.mxu0 0.0
        %4176 = vmatpush1.msra.mxu0 0.0
        %4177 = vmatprep.subr.mxu0 0.0
        %4178 = vmatpush1.msra.mxu0 0.0
        %4179 = vmatprep.subr.mxu0 0.0
        %4180 = vmatpush1.msra.mxu0 0.0
        %4181 = vmatprep.subr.mxu0 0.0
        %4182 = vmatpush1.msra.mxu0 0.0
        %4183 = vmatprep.subr.mxu0 0.0
        %4184 = vmatpush1.msra.mxu0 0.0
        %4185 = vmatprep.subr.mxu0 0.0
        %4186 = vmatpush1.msra.mxu0 0.0
        %4187 = vmatprep.subr.mxu0 0.0
        %4188 = vmatpush1.msra.mxu0 0.0
        %4189 = vmatprep.subr.mxu0 0.0
        %4190 = vmatpush1.msra.mxu0 0.0
        %4191 = vmatprep.subr.mxu0 0.0
        %4192 = vmatpush1.msra.mxu0 0.0
        %4193 = vmatprep.subr.mxu0 0.0
        %4194 = vmatpush1.msra.mxu0 0.0
        %4195 = vmatprep.subr.mxu0 0.0
        %4196 = vmatpush1.msra.mxu0 0.0
        %4197 = vmatprep.subr.mxu0 0.0
        %4198 = vmatpush1.msra.mxu0 %v3225
        %4199 = vmatprep.subr.mxu0 0.0
        %4200 = vmatpush1.msra.mxu0 %v3224
        %4201 = vmatprep.subr.mxu0 0.0
        %4202 = vmatpush2.msra.mxu0 0.0
        %4203 = vmatprep.subr.mxu0 0.0
        %4204 = vmatpush2.msra.mxu0 0.0
        %4205 = vmatprep.subr.mxu0 0.0
        %4206 = vmatpush2.msra.mxu0 0.0
        %4207 = vmatprep.subr.mxu0 0.0
        %4208 = vmatpush2.msra.mxu0 0.0
        %4209 = vmatprep.subr.mxu0 0.0
        %4210 = vmatpush2.msra.mxu0 0.0
        %4211 = vmatprep.subr.mxu0 0.0
        %4212 = vmatpush2.msra.mxu0 0.0
        %4213 = vmatprep.subr.mxu0 0.0
        %4214 = vmatpush2.msra.mxu0 0.0
        %4215 = vmatprep.subr.mxu0 0.0
        %4216 = vmatpush2.msra.mxu0 0.0
        %4217 = vmatprep.subr.mxu0 0.0
        %4218 = vmatpush2.msra.mxu0 0.0
        %4219 = vmatprep.subr.mxu0 0.0
        %4220 = vmatpush2.msra.mxu0 0.0
        %4221 = vmatprep.subr.mxu0 0.0
        %4222 = vmatpush2.msra.mxu0 0.0
        %4223 = vmatprep.subr.mxu0 0.0
        %4224 = vmatpush2.msra.mxu0 0.0
        %4225 = vmatprep.subr.mxu0 0.0
        %4226 = vmatpush2.msra.mxu0 0.0
        %4227 = vmatprep.subr.mxu0 0.0
        %4228 = vmatpush2.msra.mxu0 0.0
        %4229 = vmatprep.subr.mxu0 0.0
        %4230 = vmatpush2.msra.mxu0 0.0
        %4231 = vmatprep.subr.mxu0 0.0
        %4232 = vmatpush2.msra.mxu0 0.0
        %4233 = vmatprep.mubr.f32.mxu0 0.0
        %4234 = vmatmul.mubr.f32.gmra.mxu0 %v4146
        %v4235 = vpop.f32.mrf.mxu0
        %v4236 = vadd.f32 0.0, %v4235
        %v4237 = vpop.f32.mrf.mxu0
        %4238 = vmatprep.mubr.f32.mxu0 0.0
        %4239 = vmatmul.mubr.f32.gmra.mxu0 %v4149
        %v4240 = vpop.f32.mrf.mxu0
        %v4241 = vadd.f32 0.0, %v4240
        %v4242 = vpop.f32.mrf.mxu0
        %4243 = vmatprep.mubr.f32.mxu0 0.0
        %4244 = vmatmul.mubr.f32.gmra.mxu0 %v4152
        %v4245 = vpop.f32.mrf.mxu0
        %v4246 = vadd.f32 0.0, %v4245
        %v4247 = vpop.f32.mrf.mxu0
        %4248 = vmatprep.mubr.f32.mxu0 0.0
        %4249 = vmatmul.mubr.f32.gmra.mxu0 %v4155
        %v4250 = vpop.f32.mrf.mxu0
        %v4251 = vadd.f32 0.0, %v4250
        %v4252 = vpop.f32.mrf.mxu0
        %4253 = vmatprep.mubr.f32.mxu0 0.0
        %4254 = vmatmul.mubr.f32.gmra.mxu0 %v4158
        %v4255 = vpop.f32.mrf.mxu0
        %v4256 = vadd.f32 0.0, %v4255
        %v4257 = vpop.f32.mrf.mxu0
        %4258 = vmatprep.mubr.f32.mxu0 0.0
        %4259 = vmatmul.mubr.f32.gmra.mxu0 %v4161
        %v4260 = vpop.f32.mrf.mxu0
        %v4261 = vadd.f32 0.0, %v4260
        %v4262 = vpop.f32.mrf.mxu0
        %4263 = vmatprep.mubr.f32.mxu0 0.0
        %4264 = vmatmul.mubr.f32.gmra.mxu0 %v4164
        %v4265 = vpop.f32.mrf.mxu0
        %v4266 = vadd.f32 0.0, %v4265
        %v4267 = vpop.f32.mrf.mxu0
        %4268 = vmatprep.mubr.f32.mxu0 0.0
        %4269 = vmatmul.mubr.f32.gmra.mxu0 %v4167
        %v4270 = vpop.f32.mrf.mxu0
        %v4271 = vadd.f32 0.0, %v4270
        %v4272 = vpop.f32.mrf.mxu0
        %4273 = vdwg.mxu0
        %v4274 = vld [vmem:[%s1835] sm:$0xff]
        %v4275 = vld [vmem:[%s1835 + $0x8] sm:$0xff]
        %v4276 = vld [vmem:[%s1835 + $0x10] sm:$0xff]
        %v4277 = vld [vmem:[%s1835 + $0x18] sm:$0xff]
        %v4278 = vld [vmem:[%s1835 + $0x20] sm:$0xff]
        %v4279 = vld [vmem:[%s1835 + $0x28] sm:$0xff]
        %v4280 = vld [vmem:[%s1835 + $0x30] sm:$0xff]
        %v4281 = vld [vmem:[%s1835 + $0x38] sm:$0xff]
        %v4283 = vsel %vm897, %v4274, 0
        %v4286 = vsel %vm897, %v4275, 0
        %v4289 = vsel %vm897, %v4276, 0
        %v4292 = vsel %vm897, %v4277, 0
        %v4295 = vsel %vm897, %v4278, 0
        %v4298 = vsel %vm897, %v4279, 0
        %v4301 = vsel %vm897, %v4280, 0
        %v4304 = vsel %vm897, %v4281, 0
        %4306 = vmatprep.subr.mxu0 0.0
        %4307 = vmatpush1.msra.mxu0 0.0
        %4308 = vmatprep.subr.mxu0 0.0
        %4309 = vmatpush1.msra.mxu0 0.0
        %4310 = vmatprep.subr.mxu0 0.0
        %4311 = vmatpush1.msra.mxu0 0.0
        %4312 = vmatprep.subr.mxu0 0.0
        %4313 = vmatpush1.msra.mxu0 0.0
        %4314 = vmatprep.subr.mxu0 0.0
        %4315 = vmatpush1.msra.mxu0 0.0
        %4316 = vmatprep.subr.mxu0 0.0
        %4317 = vmatpush1.msra.mxu0 0.0
        %4318 = vmatprep.subr.mxu0 0.0
        %4319 = vmatpush1.msra.mxu0 0.0
        %4320 = vmatprep.subr.mxu0 0.0
        %4321 = vmatpush1.msra.mxu0 0.0
        %4322 = vmatprep.subr.mxu0 0.0
        %4323 = vmatpush1.msra.mxu0 %v4013
        %4324 = vmatprep.subr.mxu0 0.0
        %4325 = vmatpush1.msra.mxu0 %v4008
        %4326 = vmatprep.subr.mxu0 0.0
        %4327 = vmatpush1.msra.mxu0 %v4003
        %4328 = vmatprep.subr.mxu0 0.0
        %4329 = vmatpush1.msra.mxu0 %v3998
        %4330 = vmatprep.subr.mxu0 0.0
        %4331 = vmatpush1.msra.mxu0 %v3993
        %4332 = vmatprep.subr.mxu0 0.0
        %4333 = vmatpush1.msra.mxu0 %v3988
        %4334 = vmatprep.subr.mxu0 0.0
        %4335 = vmatpush1.msra.mxu0 %v3983
        %4336 = vmatprep.subr.mxu0 0.0
        %4337 = vmatpush1.msra.mxu0 %v3978
        %4338 = vmatprep.subr.mxu0 0.0
        %4339 = vmatpush2.msra.mxu0 0.0
        %4340 = vmatprep.subr.mxu0 0.0
        %4341 = vmatpush2.msra.mxu0 0.0
        %4342 = vmatprep.subr.mxu0 0.0
        %4343 = vmatpush2.msra.mxu0 0.0
        %4344 = vmatprep.subr.mxu0 0.0
        %4345 = vmatpush2.msra.mxu0 0.0
        %4346 = vmatprep.subr.mxu0 0.0
        %4347 = vmatpush2.msra.mxu0 0.0
        %4348 = vmatprep.subr.mxu0 0.0
        %4349 = vmatpush2.msra.mxu0 0.0
        %4350 = vmatprep.subr.mxu0 0.0
        %4351 = vmatpush2.msra.mxu0 0.0
        %4352 = vmatprep.subr.mxu0 0.0
        %4353 = vmatpush2.msra.mxu0 0.0
        %4354 = vmatprep.subr.mxu0 0.0
        %4355 = vmatpush2.msra.mxu0 0.0
        %4356 = vmatprep.subr.mxu0 0.0
        %4357 = vmatpush2.msra.mxu0 0.0
        %4358 = vmatprep.subr.mxu0 0.0
        %4359 = vmatpush2.msra.mxu0 0.0
        %4360 = vmatprep.subr.mxu0 0.0
        %4361 = vmatpush2.msra.mxu0 0.0
        %4362 = vmatprep.subr.mxu0 0.0
        %4363 = vmatpush2.msra.mxu0 0.0
        %4364 = vmatprep.subr.mxu0 0.0
        %4365 = vmatpush2.msra.mxu0 0.0
        %4366 = vmatprep.subr.mxu0 0.0
        %4367 = vmatpush2.msra.mxu0 0.0
        %4368 = vmatprep.subr.mxu0 0.0
        %4369 = vmatpush2.msra.mxu0 0.0
        %4370 = vmatprep.mubr.f32.mxu0 0.0
        %4371 = vmatmul.mubr.f32.gmra.mxu0 %v4283
        %v4372 = vpop.f32.mrf.mxu0
        %v4373 = vadd.f32 0.0, %v4372
        %v4374 = vpop.f32.mrf.mxu0
        %4375 = vmatprep.mubr.f32.mxu0 0.0
        %4376 = vmatmul.mubr.f32.gmra.mxu0 %v4286
        %v4377 = vpop.f32.mrf.mxu0
        %v4378 = vadd.f32 0.0, %v4377
        %v4379 = vpop.f32.mrf.mxu0
        %4380 = vmatprep.mubr.f32.mxu0 0.0
        %4381 = vmatmul.mubr.f32.gmra.mxu0 %v4289
        %v4382 = vpop.f32.mrf.mxu0
        %v4383 = vadd.f32 0.0, %v4382
        %v4384 = vpop.f32.mrf.mxu0
        %4385 = vmatprep.mubr.f32.mxu0 0.0
        %4386 = vmatmul.mubr.f32.gmra.mxu0 %v4292
        %v4387 = vpop.f32.mrf.mxu0
        %v4388 = vadd.f32 0.0, %v4387
        %v4389 = vpop.f32.mrf.mxu0
        %4390 = vmatprep.mubr.f32.mxu0 0.0
        %4391 = vmatmul.mubr.f32.gmra.mxu0 %v4295
        %v4392 = vpop.f32.mrf.mxu0
        %v4393 = vadd.f32 0.0, %v4392
        %v4394 = vpop.f32.mrf.mxu0
        %4395 = vmatprep.mubr.f32.mxu0 0.0
        %4396 = vmatmul.mubr.f32.gmra.mxu0 %v4298
        %v4397 = vpop.f32.mrf.mxu0
        %v4398 = vadd.f32 0.0, %v4397
        %v4399 = vpop.f32.mrf.mxu0
        %4400 = vmatprep.mubr.f32.mxu0 0.0
        %4401 = vmatmul.mubr.f32.gmra.mxu0 %v4301
        %v4402 = vpop.f32.mrf.mxu0
        %v4403 = vadd.f32 0.0, %v4402
        %v4404 = vpop.f32.mrf.mxu0
        %4405 = vmatprep.mubr.f32.mxu0 0.0
        %4406 = vmatmul.mubr.f32.gmra.mxu0 %v4304
        %v4407 = vpop.f32.mrf.mxu0
        %v4408 = vadd.f32 0.0, %v4407
        %v4409 = vpop.f32.mrf.mxu0
        %4410 = vdwg.mxu0
        %v4411 = vadd.f32 %v3879, %v4373
        %v4412 = vadd.f32 %v3880, %v4378
        %v4413 = vadd.f32 %v3881, %v4383
        %v4414 = vadd.f32 %v3882, %v4388
        %v4415 = vadd.f32 %v3883, %v4393
        %v4416 = vadd.f32 %v3884, %v4398
        %v4417 = vadd.f32 %v3885, %v4403
        %v4418 = vadd.f32 %v3886, %v4408
        %v4419 = vld [vmem:[%s1981] sm:$0xff]
        %v4420 = vld [vmem:[%s1981 + $0x8] sm:$0xff]
        %v4421 = vld [vmem:[%s1981 + $0x10] sm:$0xff]
        %v4422 = vld [vmem:[%s1981 + $0x18] sm:$0xff]
        %v4423 = vld [vmem:[%s1981 + $0x20] sm:$0xff]
        %v4424 = vld [vmem:[%s1981 + $0x28] sm:$0xff]
        %v4425 = vld [vmem:[%s1981 + $0x30] sm:$0xff]
        %v4426 = vld [vmem:[%s1981 + $0x38] sm:$0xff]
        %v4428 = vsel %vm897, %v4419, 0
        %v4431 = vsel %vm897, %v4420, 0
        %v4434 = vsel %vm897, %v4421, 0
        %v4437 = vsel %vm897, %v4422, 0
        %v4440 = vsel %vm897, %v4423, 0
        %v4443 = vsel %vm897, %v4424, 0
        %v4446 = vsel %vm897, %v4425, 0
        %v4449 = vsel %vm897, %v4426, 0
        %4451 = vmatprep.subr.mxu0 0.0
        %4452 = vmatpush1.msra.mxu0 0.0
        %4453 = vmatprep.subr.mxu0 0.0
        %4454 = vmatpush1.msra.mxu0 0.0
        %4455 = vmatprep.subr.mxu0 0.0
        %4456 = vmatpush1.msra.mxu0 0.0
        %4457 = vmatprep.subr.mxu0 0.0
        %4458 = vmatpush1.msra.mxu0 0.0
        %4459 = vmatprep.subr.mxu0 0.0
        %4460 = vmatpush1.msra.mxu0 0.0
        %4461 = vmatprep.subr.mxu0 0.0
        %4462 = vmatpush1.msra.mxu0 0.0
        %4463 = vmatprep.subr.mxu0 0.0
        %4464 = vmatpush1.msra.mxu0 0.0
        %4465 = vmatprep.subr.mxu0 0.0
        %4466 = vmatpush1.msra.mxu0 0.0
        %4467 = vmatprep.subr.mxu0 0.0
        %4468 = vmatpush1.msra.mxu0 %v4142
        %4469 = vmatprep.subr.mxu0 0.0
        %4470 = vmatpush1.msra.mxu0 %v4137
        %4471 = vmatprep.subr.mxu0 0.0
        %4472 = vmatpush1.msra.mxu0 %v4132
        %4473 = vmatprep.subr.mxu0 0.0
        %4474 = vmatpush1.msra.mxu0 %v4127
        %4475 = vmatprep.subr.mxu0 0.0
        %4476 = vmatpush1.msra.mxu0 %v4122
        %4477 = vmatprep.subr.mxu0 0.0
        %4478 = vmatpush1.msra.mxu0 %v4117
        %4479 = vmatprep.subr.mxu0 0.0
        %4480 = vmatpush1.msra.mxu0 %v4112
        %4481 = vmatprep.subr.mxu0 0.0
        %4482 = vmatpush1.msra.mxu0 %v4107
        %4483 = vmatprep.subr.mxu0 0.0
        %4484 = vmatpush2.msra.mxu0 0.0
        %4485 = vmatprep.subr.mxu0 0.0
        %4486 = vmatpush2.msra.mxu0 0.0
        %4487 = vmatprep.subr.mxu0 0.0
        %4488 = vmatpush2.msra.mxu0 0.0
        %4489 = vmatprep.subr.mxu0 0.0
        %4490 = vmatpush2.msra.mxu0 0.0
        %4491 = vmatprep.subr.mxu0 0.0
        %4492 = vmatpush2.msra.mxu0 0.0
        %4493 = vmatprep.subr.mxu0 0.0
        %4494 = vmatpush2.msra.mxu0 0.0
        %4495 = vmatprep.subr.mxu0 0.0
        %4496 = vmatpush2.msra.mxu0 0.0
        %4497 = vmatprep.subr.mxu0 0.0
        %4498 = vmatpush2.msra.mxu0 0.0
        %4499 = vmatprep.subr.mxu0 0.0
        %4500 = vmatpush2.msra.mxu0 0.0
        %4501 = vmatprep.subr.mxu0 0.0
        %4502 = vmatpush2.msra.mxu0 0.0
        %4503 = vmatprep.subr.mxu0 0.0
        %4504 = vmatpush2.msra.mxu0 0.0
        %4505 = vmatprep.subr.mxu0 0.0
        %4506 = vmatpush2.msra.mxu0 0.0
        %4507 = vmatprep.subr.mxu0 0.0
        %4508 = vmatpush2.msra.mxu0 0.0
        %4509 = vmatprep.subr.mxu0 0.0
        %4510 = vmatpush2.msra.mxu0 0.0
        %4511 = vmatprep.subr.mxu0 0.0
        %4512 = vmatpush2.msra.mxu0 0.0
        %4513 = vmatprep.subr.mxu0 0.0
        %4514 = vmatpush2.msra.mxu0 0.0
        %4515 = vmatprep.mubr.f32.mxu0 0.0
        %4516 = vmatmul.mubr.f32.gmra.mxu0 %v4428
        %v4517 = vpop.f32.mrf.mxu0
        %v4518 = vadd.f32 0.0, %v4517
        %v4519 = vpop.f32.mrf.mxu0
        %4520 = vmatprep.mubr.f32.mxu0 0.0
        %4521 = vmatmul.mubr.f32.gmra.mxu0 %v4431
        %v4522 = vpop.f32.mrf.mxu0
        %v4523 = vadd.f32 0.0, %v4522
        %v4524 = vpop.f32.mrf.mxu0
        %4525 = vmatprep.mubr.f32.mxu0 0.0
        %4526 = vmatmul.mubr.f32.gmra.mxu0 %v4434
        %v4527 = vpop.f32.mrf.mxu0
        %v4528 = vadd.f32 0.0, %v4527
        %v4529 = vpop.f32.mrf.mxu0
        %4530 = vmatprep.mubr.f32.mxu0 0.0
        %4531 = vmatmul.mubr.f32.gmra.mxu0 %v4437
        %v4532 = vpop.f32.mrf.mxu0
        %v4533 = vadd.f32 0.0, %v4532
        %v4534 = vpop.f32.mrf.mxu0
        %4535 = vmatprep.mubr.f32.mxu0 0.0
        %4536 = vmatmul.mubr.f32.gmra.mxu0 %v4440
        %v4537 = vpop.f32.mrf.mxu0
        %v4538 = vadd.f32 0.0, %v4537
        %v4539 = vpop.f32.mrf.mxu0
        %4540 = vmatprep.mubr.f32.mxu0 0.0
        %4541 = vmatmul.mubr.f32.gmra.mxu0 %v4443
        %v4542 = vpop.f32.mrf.mxu0
        %v4543 = vadd.f32 0.0, %v4542
        %v4544 = vpop.f32.mrf.mxu0
        %4545 = vmatprep.mubr.f32.mxu0 0.0
        %4546 = vmatmul.mubr.f32.gmra.mxu0 %v4446
        %v4547 = vpop.f32.mrf.mxu0
        %v4548 = vadd.f32 0.0, %v4547
        %v4549 = vpop.f32.mrf.mxu0
        %4550 = vmatprep.mubr.f32.mxu0 0.0
        %4551 = vmatmul.mubr.f32.gmra.mxu0 %v4449
        %v4552 = vpop.f32.mrf.mxu0
        %v4553 = vadd.f32 0.0, %v4552
        %v4554 = vpop.f32.mrf.mxu0
        %4555 = vdwg.mxu0
        %v4556 = vadd.f32 %v4411, %v4518
        %v4557 = vadd.f32 %v4412, %v4523
        %v4558 = vadd.f32 %v4413, %v4528
        %v4559 = vadd.f32 %v4414, %v4533
        %v4560 = vadd.f32 %v4415, %v4538
        %v4561 = vadd.f32 %v4416, %v4543
        %v4562 = vadd.f32 %v4417, %v4548
        %v4563 = vadd.f32 %v4418, %v4553
        %v4564 = vld [vmem:[%s2127] sm:$0xff]
        %v4565 = vld [vmem:[%s2127 + $0x8] sm:$0xff]
        %v4566 = vld [vmem:[%s2127 + $0x10] sm:$0xff]
        %v4567 = vld [vmem:[%s2127 + $0x18] sm:$0xff]
        %v4568 = vld [vmem:[%s2127 + $0x20] sm:$0xff]
        %v4569 = vld [vmem:[%s2127 + $0x28] sm:$0xff]
        %v4570 = vld [vmem:[%s2127 + $0x30] sm:$0xff]
        %v4571 = vld [vmem:[%s2127 + $0x38] sm:$0xff]
        %v4573 = vsel %vm897, %v4564, 0
        %v4576 = vsel %vm897, %v4565, 0
        %v4579 = vsel %vm897, %v4566, 0
        %v4582 = vsel %vm897, %v4567, 0
        %v4585 = vsel %vm897, %v4568, 0
        %v4588 = vsel %vm897, %v4569, 0
        %v4591 = vsel %vm897, %v4570, 0
        %v4594 = vsel %vm897, %v4571, 0
        %4596 = vmatprep.subr.mxu0 0.0
        %4597 = vmatpush1.msra.mxu0 0.0
        %4598 = vmatprep.subr.mxu0 0.0
        %4599 = vmatpush1.msra.mxu0 0.0
        %4600 = vmatprep.subr.mxu0 0.0
        %4601 = vmatpush1.msra.mxu0 0.0
        %4602 = vmatprep.subr.mxu0 0.0
        %4603 = vmatpush1.msra.mxu0 0.0
        %4604 = vmatprep.subr.mxu0 0.0
        %4605 = vmatpush1.msra.mxu0 0.0
        %4606 = vmatprep.subr.mxu0 0.0
        %4607 = vmatpush1.msra.mxu0 0.0
        %4608 = vmatprep.subr.mxu0 0.0
        %4609 = vmatpush1.msra.mxu0 0.0
        %4610 = vmatprep.subr.mxu0 0.0
        %4611 = vmatpush1.msra.mxu0 0.0
        %4612 = vmatprep.subr.mxu0 0.0
        %4613 = vmatpush1.msra.mxu0 %v4271
        %4614 = vmatprep.subr.mxu0 0.0
        %4615 = vmatpush1.msra.mxu0 %v4266
        %4616 = vmatprep.subr.mxu0 0.0
        %4617 = vmatpush1.msra.mxu0 %v4261
        %4618 = vmatprep.subr.mxu0 0.0
        %4619 = vmatpush1.msra.mxu0 %v4256
        %4620 = vmatprep.subr.mxu0 0.0
        %4621 = vmatpush1.msra.mxu0 %v4251
        %4622 = vmatprep.subr.mxu0 0.0
        %4623 = vmatpush1.msra.mxu0 %v4246
        %4624 = vmatprep.subr.mxu0 0.0
        %4625 = vmatpush1.msra.mxu0 %v4241
        %4626 = vmatprep.subr.mxu0 0.0
        %4627 = vmatpush1.msra.mxu0 %v4236
        %4628 = vmatprep.subr.mxu0 0.0
        %4629 = vmatpush2.msra.mxu0 0.0
        %4630 = vmatprep.subr.mxu0 0.0
        %4631 = vmatpush2.msra.mxu0 0.0
        %4632 = vmatprep.subr.mxu0 0.0
        %4633 = vmatpush2.msra.mxu0 0.0
        %4634 = vmatprep.subr.mxu0 0.0
        %4635 = vmatpush2.msra.mxu0 0.0
        %4636 = vmatprep.subr.mxu0 0.0
        %4637 = vmatpush2.msra.mxu0 0.0
        %4638 = vmatprep.subr.mxu0 0.0
        %4639 = vmatpush2.msra.mxu0 0.0
        %4640 = vmatprep.subr.mxu0 0.0
        %4641 = vmatpush2.msra.mxu0 0.0
        %4642 = vmatprep.subr.mxu0 0.0
        %4643 = vmatpush2.msra.mxu0 0.0
        %4644 = vmatprep.subr.mxu0 0.0
        %4645 = vmatpush2.msra.mxu0 0.0
        %4646 = vmatprep.subr.mxu0 0.0
        %4647 = vmatpush2.msra.mxu0 0.0
        %4648 = vmatprep.subr.mxu0 0.0
        %4649 = vmatpush2.msra.mxu0 0.0
        %4650 = vmatprep.subr.mxu0 0.0
        %4651 = vmatpush2.msra.mxu0 0.0
        %4652 = vmatprep.subr.mxu0 0.0
        %4653 = vmatpush2.msra.mxu0 0.0
        %4654 = vmatprep.subr.mxu0 0.0
        %4655 = vmatpush2.msra.mxu0 0.0
        %4656 = vmatprep.subr.mxu0 0.0
        %4657 = vmatpush2.msra.mxu0 0.0
        %4658 = vmatprep.subr.mxu0 0.0
        %4659 = vmatpush2.msra.mxu0 0.0
        %4660 = vmatprep.mubr.f32.mxu0 0.0
        %4661 = vmatmul.mubr.f32.gmra.mxu0 %v4573
        %v4662 = vpop.f32.mrf.mxu0
        %v4663 = vadd.f32 0.0, %v4662
        %v4664 = vpop.f32.mrf.mxu0
        %4665 = vmatprep.mubr.f32.mxu0 0.0
        %4666 = vmatmul.mubr.f32.gmra.mxu0 %v4576
        %v4667 = vpop.f32.mrf.mxu0
        %v4668 = vadd.f32 0.0, %v4667
        %v4669 = vpop.f32.mrf.mxu0
        %4670 = vmatprep.mubr.f32.mxu0 0.0
        %4671 = vmatmul.mubr.f32.gmra.mxu0 %v4579
        %v4672 = vpop.f32.mrf.mxu0
        %v4673 = vadd.f32 0.0, %v4672
        %v4674 = vpop.f32.mrf.mxu0
        %4675 = vmatprep.mubr.f32.mxu0 0.0
        %4676 = vmatmul.mubr.f32.gmra.mxu0 %v4582
        %v4677 = vpop.f32.mrf.mxu0
        %v4678 = vadd.f32 0.0, %v4677
        %v4679 = vpop.f32.mrf.mxu0
        %4680 = vmatprep.mubr.f32.mxu0 0.0
        %4681 = vmatmul.mubr.f32.gmra.mxu0 %v4585
        %v4682 = vpop.f32.mrf.mxu0
        %v4683 = vadd.f32 0.0, %v4682
        %v4684 = vpop.f32.mrf.mxu0
        %4685 = vmatprep.mubr.f32.mxu0 0.0
        %4686 = vmatmul.mubr.f32.gmra.mxu0 %v4588
        %v4687 = vpop.f32.mrf.mxu0
        %v4688 = vadd.f32 0.0, %v4687
        %v4689 = vpop.f32.mrf.mxu0
        %4690 = vmatprep.mubr.f32.mxu0 0.0
        %4691 = vmatmul.mubr.f32.gmra.mxu0 %v4591
        %v4692 = vpop.f32.mrf.mxu0
        %v4693 = vadd.f32 0.0, %v4692
        %v4694 = vpop.f32.mrf.mxu0
        %4695 = vmatprep.mubr.f32.mxu0 0.0
        %4696 = vmatmul.mubr.f32.gmra.mxu0 %v4594
        %v4697 = vpop.f32.mrf.mxu0
        %v4698 = vadd.f32 0.0, %v4697
        %v4699 = vpop.f32.mrf.mxu0
        %4700 = vdwg.mxu0
        %v4701 = vadd.f32 %v4556, %v4663
        %v4702 = vadd.f32 %v4557, %v4668
        %v4703 = vadd.f32 %v4558, %v4673
        %v4704 = vadd.f32 %v4559, %v4678
        %v4705 = vadd.f32 %v4560, %v4683
        %v4706 = vadd.f32 %v4561, %v4688
        %v4707 = vadd.f32 %v4562, %v4693
        %v4708 = vadd.f32 %v4563, %v4698
        %v4709 = vld [vmem:[%s2] sm:$0x1]
        %v4710 = vld [vmem:[%s2 + $0x1] sm:$0x1]
        %v4711 = vld [vmem:[%s2 + $0x2] sm:$0x1]
        %v4712 = vld [vmem:[%s2 + $0x3] sm:$0x1]
        %v4713 = vld [vmem:[%s2 + $0x4] sm:$0x1]
        %v4714 = vld [vmem:[%s2 + $0x5] sm:$0x1]
        %v4715 = vld [vmem:[%s2 + $0x6] sm:$0x1]
        %v4716 = vld [vmem:[%s2 + $0x7] sm:$0x1]
        %v4725 = vlaneseq
        %v4726 = vshrl.u32 %v4725, 7
        %v4727 = vsub.s32 0, %v4726
        %v4728 = vrot.slane %v4709, %v4727
        %v4729 = vlaneseq
        %v4730 = vshrl.u32 %v4729, 7
        %v4731 = vsub.s32 0, %v4730
        %v4732 = vrot.slane %v4710, %v4731
        %v4733 = vlaneseq
        %v4734 = vshrl.u32 %v4733, 7
        %v4735 = vsub.s32 0, %v4734
        %v4736 = vrot.slane %v4711, %v4735
        %v4737 = vlaneseq
        %v4738 = vshrl.u32 %v4737, 7
        %v4739 = vsub.s32 0, %v4738
        %v4740 = vrot.slane %v4712, %v4739
        %v4741 = vlaneseq
        %v4742 = vshrl.u32 %v4741, 7
        %v4743 = vsub.s32 0, %v4742
        %v4744 = vrot.slane %v4713, %v4743
        %v4745 = vlaneseq
        %v4746 = vshrl.u32 %v4745, 7
        %v4747 = vsub.s32 0, %v4746
        %v4748 = vrot.slane %v4714, %v4747
        %v4749 = vlaneseq
        %v4750 = vshrl.u32 %v4749, 7
        %v4751 = vsub.s32 0, %v4750
        %v4752 = vrot.slane %v4715, %v4751
        %v4753 = vlaneseq
        %v4754 = vshrl.u32 %v4753, 7
        %v4755 = vsub.s32 0, %v4754
        %v4756 = vrot.slane %v4716, %v4755
        %4757 = vset.pattern.permute.xlu0 0
        %4758 = vperm.xlu0 %4757, %v4728
        %v4759 = vpop.permute.xlu0 %4758
        %4761 = vset.pattern.permute.xlu0 0
        %4762 = vperm.xlu0 %4761, %v4732
        %v4763 = vpop.permute.xlu0 %4762
        %4765 = vset.pattern.permute.xlu0 0
        %4766 = vperm.xlu0 %4765, %v4736
        %v4767 = vpop.permute.xlu0 %4766
        %4769 = vset.pattern.permute.xlu0 0
        %4770 = vperm.xlu0 %4769, %v4740
        %v4771 = vpop.permute.xlu0 %4770
        %4773 = vset.pattern.permute.xlu0 0
        %4774 = vperm.xlu0 %4773, %v4744
        %v4775 = vpop.permute.xlu0 %4774
        %4777 = vset.pattern.permute.xlu0 0
        %4778 = vperm.xlu0 %4777, %v4748
        %v4779 = vpop.permute.xlu0 %4778
        %4781 = vset.pattern.permute.xlu0 0
        %4782 = vperm.xlu0 %4781, %v4752
        %v4783 = vpop.permute.xlu0 %4782
        %4785 = vset.pattern.permute.xlu0 0
        %4786 = vperm.xlu0 %4785, %v4756
        %v4787 = vpop.permute.xlu0 %4786
        %v4789 = vadd.f32 %v4701, %v4759
        %v4790 = vadd.f32 %v4702, %v4763
        %v4791 = vadd.f32 %v4703, %v4767
        %v4792 = vadd.f32 %v4704, %v4771
        %v4793 = vadd.f32 %v4705, %v4775
        %v4794 = vadd.f32 %v4706, %v4779
        %v4795 = vadd.f32 %v4707, %v4783
        %v4796 = vadd.f32 %v4708, %v4787
        %v4797 = vmax.f32 %v4789, 0.0
        %v4798 = vmax.f32 %v4790, 0.0
        %v4799 = vmax.f32 %v4791, 0.0
        %v4800 = vmax.f32 %v4792, 0.0
        %v4801 = vmax.f32 %v4793, 0.0
        %v4802 = vmax.f32 %v4794, 0.0
        %v4803 = vmax.f32 %v4795, 0.0
        %v4804 = vmax.f32 %v4796, 0.0
        %4805 = vxpose.xlu0.b32.start [1/16] %v4797, 128
        %4806 = vxpose.xlu0.b32.cont [2/16] 0.0, 128
        %4807 = vxpose.xlu0.b32.cont [3/16] 0.0, 128
        %4808 = vxpose.xlu0.b32.cont [4/16] 0.0, 128
        %4809 = vxpose.xlu0.b32.cont [5/16] 0.0, 128
        %4810 = vxpose.xlu0.b32.cont [6/16] 0.0, 128
        %4811 = vxpose.xlu0.b32.cont [7/16] 0.0, 128
        %4812 = vxpose.xlu0.b32.cont [8/16] 0.0, 128
        %4813 = vxpose.xlu0.b32.cont [9/16] 0.0, 128
        %4814 = vxpose.xlu0.b32.cont [10/16] 0.0, 128
        %4815 = vxpose.xlu0.b32.cont [11/16] 0.0, 128
        %4816 = vxpose.xlu0.b32.cont [12/16] 0.0, 128
        %4817 = vxpose.xlu0.b32.cont [13/16] 0.0, 128
        %4818 = vxpose.xlu0.b32.cont [14/16] 0.0, 128
        %4819 = vxpose.xlu0.b32.cont [15/16] 0.0, 128
        %4820 = vxpose.xlu0.b32.end [16/16] 0.0, 128
        %v4821 = vpop.trf.xlu0
        %v4822 = vpop.trf.xlu0
        %v4823 = vpop.trf.xlu0
        %v4824 = vpop.trf.xlu0
        %v4825 = vpop.trf.xlu0
        %v4826 = vpop.trf.xlu0
        %v4827 = vpop.trf.xlu0
        %v4828 = vpop.trf.xlu0
        %v4829 = vpop.trf.xlu0
        %v4830 = vpop.trf.xlu0
        %v4831 = vpop.trf.xlu0
        %v4832 = vpop.trf.xlu0
        %v4833 = vpop.trf.xlu0
        %v4834 = vpop.trf.xlu0
        %v4835 = vpop.trf.xlu0
        %v4836 = vpop.trf.xlu0
        %4837 = vxpose.xlu0.b32.start [1/16] %v4798, 128
        %4838 = vxpose.xlu0.b32.cont [2/16] 0.0, 128
        %4839 = vxpose.xlu0.b32.cont [3/16] 0.0, 128
        %4840 = vxpose.xlu0.b32.cont [4/16] 0.0, 128
        %4841 = vxpose.xlu0.b32.cont [5/16] 0.0, 128
        %4842 = vxpose.xlu0.b32.cont [6/16] 0.0, 128
        %4843 = vxpose.xlu0.b32.cont [7/16] 0.0, 128
        %4844 = vxpose.xlu0.b32.cont [8/16] 0.0, 128
        %4845 = vxpose.xlu0.b32.cont [9/16] 0.0, 128
        %4846 = vxpose.xlu0.b32.cont [10/16] 0.0, 128
        %4847 = vxpose.xlu0.b32.cont [11/16] 0.0, 128
        %4848 = vxpose.xlu0.b32.cont [12/16] 0.0, 128
        %4849 = vxpose.xlu0.b32.cont [13/16] 0.0, 128
        %4850 = vxpose.xlu0.b32.cont [14/16] 0.0, 128
        %4851 = vxpose.xlu0.b32.cont [15/16] 0.0, 128
        %4852 = vxpose.xlu0.b32.end [16/16] 0.0, 128
        %v4853 = vpop.trf.xlu0
        %v4854 = vpop.trf.xlu0
        %v4855 = vpop.trf.xlu0
        %v4856 = vpop.trf.xlu0
        %v4857 = vpop.trf.xlu0
        %v4858 = vpop.trf.xlu0
        %v4859 = vpop.trf.xlu0
        %v4860 = vpop.trf.xlu0
        %v4861 = vpop.trf.xlu0
        %v4862 = vpop.trf.xlu0
        %v4863 = vpop.trf.xlu0
        %v4864 = vpop.trf.xlu0
        %v4865 = vpop.trf.xlu0
        %v4866 = vpop.trf.xlu0
        %v4867 = vpop.trf.xlu0
        %v4868 = vpop.trf.xlu0
        %4869 = vxpose.xlu0.b32.start [1/16] %v4799, 128
        %4870 = vxpose.xlu0.b32.cont [2/16] 0.0, 128
        %4871 = vxpose.xlu0.b32.cont [3/16] 0.0, 128
        %4872 = vxpose.xlu0.b32.cont [4/16] 0.0, 128
        %4873 = vxpose.xlu0.b32.cont [5/16] 0.0, 128
        %4874 = vxpose.xlu0.b32.cont [6/16] 0.0, 128
        %4875 = vxpose.xlu0.b32.cont [7/16] 0.0, 128
        %4876 = vxpose.xlu0.b32.cont [8/16] 0.0, 128
        %4877 = vxpose.xlu0.b32.cont [9/16] 0.0, 128
        %4878 = vxpose.xlu0.b32.cont [10/16] 0.0, 128
        %4879 = vxpose.xlu0.b32.cont [11/16] 0.0, 128
        %4880 = vxpose.xlu0.b32.cont [12/16] 0.0, 128
        %4881 = vxpose.xlu0.b32.cont [13/16] 0.0, 128
        %4882 = vxpose.xlu0.b32.cont [14/16] 0.0, 128
        %4883 = vxpose.xlu0.b32.cont [15/16] 0.0, 128
        %4884 = vxpose.xlu0.b32.end [16/16] 0.0, 128
        %v4885 = vpop.trf.xlu0
        %v4886 = vpop.trf.xlu0
        %v4887 = vpop.trf.xlu0
        %v4888 = vpop.trf.xlu0
        %v4889 = vpop.trf.xlu0
        %v4890 = vpop.trf.xlu0
        %v4891 = vpop.trf.xlu0
        %v4892 = vpop.trf.xlu0
        %v4893 = vpop.trf.xlu0
        %v4894 = vpop.trf.xlu0
        %v4895 = vpop.trf.xlu0
        %v4896 = vpop.trf.xlu0
        %v4897 = vpop.trf.xlu0
        %v4898 = vpop.trf.xlu0
        %v4899 = vpop.trf.xlu0
        %v4900 = vpop.trf.xlu0
        %4901 = vxpose.xlu0.b32.start [1/16] %v4800, 128
        %4902 = vxpose.xlu0.b32.cont [2/16] 0.0, 128
        %4903 = vxpose.xlu0.b32.cont [3/16] 0.0, 128
        %4904 = vxpose.xlu0.b32.cont [4/16] 0.0, 128
        %4905 = vxpose.xlu0.b32.cont [5/16] 0.0, 128
        %4906 = vxpose.xlu0.b32.cont [6/16] 0.0, 128
        %4907 = vxpose.xlu0.b32.cont [7/16] 0.0, 128
        %4908 = vxpose.xlu0.b32.cont [8/16] 0.0, 128
        %4909 = vxpose.xlu0.b32.cont [9/16] 0.0, 128
        %4910 = vxpose.xlu0.b32.cont [10/16] 0.0, 128
        %4911 = vxpose.xlu0.b32.cont [11/16] 0.0, 128
        %4912 = vxpose.xlu0.b32.cont [12/16] 0.0, 128
        %4913 = vxpose.xlu0.b32.cont [13/16] 0.0, 128
        %4914 = vxpose.xlu0.b32.cont [14/16] 0.0, 128
        %4915 = vxpose.xlu0.b32.cont [15/16] 0.0, 128
        %4916 = vxpose.xlu0.b32.end [16/16] 0.0, 128
        %v4917 = vpop.trf.xlu0
        %v4918 = vpop.trf.xlu0
        %v4919 = vpop.trf.xlu0
        %v4920 = vpop.trf.xlu0
        %v4921 = vpop.trf.xlu0
        %v4922 = vpop.trf.xlu0
        %v4923 = vpop.trf.xlu0
        %v4924 = vpop.trf.xlu0
        %v4925 = vpop.trf.xlu0
        %v4926 = vpop.trf.xlu0
        %v4927 = vpop.trf.xlu0
        %v4928 = vpop.trf.xlu0
        %v4929 = vpop.trf.xlu0
        %v4930 = vpop.trf.xlu0
        %v4931 = vpop.trf.xlu0
        %v4932 = vpop.trf.xlu0
        %4933 = vxpose.xlu0.b32.start [1/16] %v4801, 128
        %4934 = vxpose.xlu0.b32.cont [2/16] 0.0, 128
        %4935 = vxpose.xlu0.b32.cont [3/16] 0.0, 128
        %4936 = vxpose.xlu0.b32.cont [4/16] 0.0, 128
        %4937 = vxpose.xlu0.b32.cont [5/16] 0.0, 128
        %4938 = vxpose.xlu0.b32.cont [6/16] 0.0, 128
        %4939 = vxpose.xlu0.b32.cont [7/16] 0.0, 128
        %4940 = vxpose.xlu0.b32.cont [8/16] 0.0, 128
        %4941 = vxpose.xlu0.b32.cont [9/16] 0.0, 128
        %4942 = vxpose.xlu0.b32.cont [10/16] 0.0, 128
        %4943 = vxpose.xlu0.b32.cont [11/16] 0.0, 128
        %4944 = vxpose.xlu0.b32.cont [12/16] 0.0, 128
        %4945 = vxpose.xlu0.b32.cont [13/16] 0.0, 128
        %4946 = vxpose.xlu0.b32.cont [14/16] 0.0, 128
        %4947 = vxpose.xlu0.b32.cont [15/16] 0.0, 128
        %4948 = vxpose.xlu0.b32.end [16/16] 0.0, 128
        %v4949 = vpop.trf.xlu0
        %v4950 = vpop.trf.xlu0
        %v4951 = vpop.trf.xlu0
        %v4952 = vpop.trf.xlu0
        %v4953 = vpop.trf.xlu0
        %v4954 = vpop.trf.xlu0
        %v4955 = vpop.trf.xlu0
        %v4956 = vpop.trf.xlu0
        %v4957 = vpop.trf.xlu0
        %v4958 = vpop.trf.xlu0
        %v4959 = vpop.trf.xlu0
        %v4960 = vpop.trf.xlu0
        %v4961 = vpop.trf.xlu0
        %v4962 = vpop.trf.xlu0
        %v4963 = vpop.trf.xlu0
        %v4964 = vpop.trf.xlu0
        %4965 = vxpose.xlu0.b32.start [1/16] %v4802, 128
        %4966 = vxpose.xlu0.b32.cont [2/16] 0.0, 128
        %4967 = vxpose.xlu0.b32.cont [3/16] 0.0, 128
        %4968 = vxpose.xlu0.b32.cont [4/16] 0.0, 128
        %4969 = vxpose.xlu0.b32.cont [5/16] 0.0, 128
        %4970 = vxpose.xlu0.b32.cont [6/16] 0.0, 128
        %4971 = vxpose.xlu0.b32.cont [7/16] 0.0, 128
        %4972 = vxpose.xlu0.b32.cont [8/16] 0.0, 128
        %4973 = vxpose.xlu0.b32.cont [9/16] 0.0, 128
        %4974 = vxpose.xlu0.b32.cont [10/16] 0.0, 128
        %4975 = vxpose.xlu0.b32.cont [11/16] 0.0, 128
        %4976 = vxpose.xlu0.b32.cont [12/16] 0.0, 128
        %4977 = vxpose.xlu0.b32.cont [13/16] 0.0, 128
        %4978 = vxpose.xlu0.b32.cont [14/16] 0.0, 128
        %4979 = vxpose.xlu0.b32.cont [15/16] 0.0, 128
        %4980 = vxpose.xlu0.b32.end [16/16] 0.0, 128
        %v4981 = vpop.trf.xlu0
        %v4982 = vpop.trf.xlu0
        %v4983 = vpop.trf.xlu0
        %v4984 = vpop.trf.xlu0
        %v4985 = vpop.trf.xlu0
        %v4986 = vpop.trf.xlu0
        %v4987 = vpop.trf.xlu0
        %v4988 = vpop.trf.xlu0
        %v4989 = vpop.trf.xlu0
        %v4990 = vpop.trf.xlu0
        %v4991 = vpop.trf.xlu0
        %v4992 = vpop.trf.xlu0
        %v4993 = vpop.trf.xlu0
        %v4994 = vpop.trf.xlu0
        %v4995 = vpop.trf.xlu0
        %v4996 = vpop.trf.xlu0
        %4997 = vxpose.xlu0.b32.start [1/16] %v4803, 128
        %4998 = vxpose.xlu0.b32.cont [2/16] 0.0, 128
        %4999 = vxpose.xlu0.b32.cont [3/16] 0.0, 128
        %5000 = vxpose.xlu0.b32.cont [4/16] 0.0, 128
        %5001 = vxpose.xlu0.b32.cont [5/16] 0.0, 128
        %5002 = vxpose.xlu0.b32.cont [6/16] 0.0, 128
        %5003 = vxpose.xlu0.b32.cont [7/16] 0.0, 128
        %5004 = vxpose.xlu0.b32.cont [8/16] 0.0, 128
        %5005 = vxpose.xlu0.b32.cont [9/16] 0.0, 128
        %5006 = vxpose.xlu0.b32.cont [10/16] 0.0, 128
        %5007 = vxpose.xlu0.b32.cont [11/16] 0.0, 128
        %5008 = vxpose.xlu0.b32.cont [12/16] 0.0, 128
        %5009 = vxpose.xlu0.b32.cont [13/16] 0.0, 128
        %5010 = vxpose.xlu0.b32.cont [14/16] 0.0, 128
        %5011 = vxpose.xlu0.b32.cont [15/16] 0.0, 128
        %5012 = vxpose.xlu0.b32.end [16/16] 0.0, 128
        %v5013 = vpop.trf.xlu0
        %v5014 = vpop.trf.xlu0
        %v5015 = vpop.trf.xlu0
        %v5016 = vpop.trf.xlu0
        %v5017 = vpop.trf.xlu0
        %v5018 = vpop.trf.xlu0
        %v5019 = vpop.trf.xlu0
        %v5020 = vpop.trf.xlu0
        %v5021 = vpop.trf.xlu0
        %v5022 = vpop.trf.xlu0
        %v5023 = vpop.trf.xlu0
        %v5024 = vpop.trf.xlu0
        %v5025 = vpop.trf.xlu0
        %v5026 = vpop.trf.xlu0
        %v5027 = vpop.trf.xlu0
        %v5028 = vpop.trf.xlu0
        %5029 = vxpose.xlu0.b32.start [1/16] %v4804, 128
        %5030 = vxpose.xlu0.b32.cont [2/16] 0.0, 128
        %5031 = vxpose.xlu0.b32.cont [3/16] 0.0, 128
        %5032 = vxpose.xlu0.b32.cont [4/16] 0.0, 128
        %5033 = vxpose.xlu0.b32.cont [5/16] 0.0, 128
        %5034 = vxpose.xlu0.b32.cont [6/16] 0.0, 128
        %5035 = vxpose.xlu0.b32.cont [7/16] 0.0, 128
        %5036 = vxpose.xlu0.b32.cont [8/16] 0.0, 128
        %5037 = vxpose.xlu0.b32.cont [9/16] 0.0, 128
        %5038 = vxpose.xlu0.b32.cont [10/16] 0.0, 128
        %5039 = vxpose.xlu0.b32.cont [11/16] 0.0, 128
        %5040 = vxpose.xlu0.b32.cont [12/16] 0.0, 128
        %5041 = vxpose.xlu0.b32.cont [13/16] 0.0, 128
        %5042 = vxpose.xlu0.b32.cont [14/16] 0.0, 128
        %5043 = vxpose.xlu0.b32.cont [15/16] 0.0, 128
        %5044 = vxpose.xlu0.b32.end [16/16] 0.0, 128
        %v5045 = vpop.trf.xlu0
        %v5046 = vpop.trf.xlu0
        %v5047 = vpop.trf.xlu0
        %v5048 = vpop.trf.xlu0
        %v5049 = vpop.trf.xlu0
        %v5050 = vpop.trf.xlu0
        %v5051 = vpop.trf.xlu0
        %v5052 = vpop.trf.xlu0
        %v5053 = vpop.trf.xlu0
        %v5054 = vpop.trf.xlu0
        %v5055 = vpop.trf.xlu0
        %v5056 = vpop.trf.xlu0
        %v5057 = vpop.trf.xlu0
        %v5058 = vpop.trf.xlu0
        %v5059 = vpop.trf.xlu0
        %v5060 = vpop.trf.xlu0
        %5077 = vrot.lane.b32.xlu0 %v4821, 8
        %v5078 = vpop.permute.xlu0 %5077
        %5079 = vrot.lane.b32.xlu0 %v4822, 8
        %v5080 = vpop.permute.xlu0 %5079
        %5081 = vrot.lane.b32.xlu0 %v4853, 8
        %v5082 = vpop.permute.xlu0 %5081
        %5083 = vrot.lane.b32.xlu0 %v4854, 8
        %v5084 = vpop.permute.xlu0 %5083
        %5085 = vrot.lane.b32.xlu0 %v4885, 8
        %v5086 = vpop.permute.xlu0 %5085
        %5087 = vrot.lane.b32.xlu0 %v4886, 8
        %v5088 = vpop.permute.xlu0 %5087
        %5089 = vrot.lane.b32.xlu0 %v4917, 8
        %v5090 = vpop.permute.xlu0 %5089
        %5091 = vrot.lane.b32.xlu0 %v4918, 8
        %v5092 = vpop.permute.xlu0 %5091
        %5093 = vrot.lane.b32.xlu0 %v4949, 8
        %v5094 = vpop.permute.xlu0 %5093
        %5095 = vrot.lane.b32.xlu0 %v4950, 8
        %v5096 = vpop.permute.xlu0 %5095
        %5097 = vrot.lane.b32.xlu0 %v4981, 8
        %v5098 = vpop.permute.xlu0 %5097
        %5099 = vrot.lane.b32.xlu0 %v4982, 8
        %v5100 = vpop.permute.xlu0 %5099
        %5101 = vrot.lane.b32.xlu0 %v5013, 8
        %v5102 = vpop.permute.xlu0 %5101
        %5103 = vrot.lane.b32.xlu0 %v5014, 8
        %v5104 = vpop.permute.xlu0 %5103
        %5105 = vrot.lane.b32.xlu0 %v5045, 8
        %v5106 = vpop.permute.xlu0 %5105
        %5107 = vrot.lane.b32.xlu0 %v5046, 8
        %v5108 = vpop.permute.xlu0 %5107
        %vm5125 = vcmask 130112
        %5126 = vst.msk [vmem:[%s259] sm:$0xff] %vm5125, %v5078
        %5127 = vst.msk [vmem:[%s259 + $0x8] sm:$0xff] %vm5125, %v5080
        %5128 = vst.msk [vmem:[%s259 + $0x10] sm:$0xff] %vm5125, %v5082
        %5129 = vst.msk [vmem:[%s259 + $0x18] sm:$0xff] %vm5125, %v5084
        %5130 = vst.msk [vmem:[%s259 + $0x20] sm:$0xff] %vm5125, %v5086
        %5131 = vst.msk [vmem:[%s259 + $0x28] sm:$0xff] %vm5125, %v5088
        %5132 = vst.msk [vmem:[%s259 + $0x30] sm:$0xff] %vm5125, %v5090
        %5133 = vst.msk [vmem:[%s259 + $0x38] sm:$0xff] %vm5125, %v5092
        %5134 = vst.msk [vmem:[%s259 + $0x40] sm:$0xff] %vm5125, %v5094
        %5135 = vst.msk [vmem:[%s259 + $0x48] sm:$0xff] %vm5125, %v5096
        %5136 = vst.msk [vmem:[%s259 + $0x50] sm:$0xff] %vm5125, %v5098
        %5137 = vst.msk [vmem:[%s259 + $0x58] sm:$0xff] %vm5125, %v5100
        %5138 = vst.msk [vmem:[%s259 + $0x60] sm:$0xff] %vm5125, %v5102
        %5139 = vst.msk [vmem:[%s259 + $0x68] sm:$0xff] %vm5125, %v5104
        %5140 = vst.msk [vmem:[%s259 + $0x70] sm:$0xff] %vm5125, %v5106
        %5141 = vst.msk [vmem:[%s259 + $0x78] sm:$0xff] %vm5125, %v5108
        %s5142 = sand.u32 %s133, 1
        %s5143 = scalar_lea.sflag [#allocation4], %s5142
        %s5144 = sand.u32 %s133, 1
        %s5145 = smul.addr %s5144, 128
        %s5146 = scalar_lea.vmem [#allocation8], %s5145
        // Predicated region
        $region49: #{tpu_custom_call.1} parent=35 // pred_check
          %p5147 = pneg %p143
        $region50: #{tpu_custom_call.1} parent=35 // pred_check_branch
          %5149 = sbr.rel (%p5147) target = $region52
        $region51: #{tpu_custom_call.1} parent=35 // pred_region
          %s5151 = ssub.s32 2048, 2048
          %5152 = vsyncadd %s5143, %s5151
          %s5153 = smul.addr %s24, 16
          %s5154 = sadd.s32 %s25, %s5153
          %s5155 = smul.addr %s5154, 128
          %s5156 = scalar_lea.hbm %s4, %s5155
          %s5157 = sshll.u32 %s5146, 4
          %s5158 = int_to_ptr.vmem [resolvable:$true] %s5157
          %5163 = dma.vmem_to_hbm [thread:$0]  %s5158, 2048, %s5156, %s5143, 128, 128, 8
        $region52: #{tpu_custom_call.1} parent=35 // pred_fallthru
          _
      $region36: #{tpu_custom_call.1} parent=5 // pred_fallthru
        _
      %p5164 = scmp.le.s32.totalorder 2, %s15
      // Predicated region
      $region53: #{tpu_custom_call.1} parent=5 // pred_check
        %p5165 = pneg %p5164
      $region54: #{tpu_custom_call.1} parent=5 // pred_check_branch
        %5167 = sbr.rel (%p5165) target = $region56
      $region55: #{tpu_custom_call.1} parent=5 // pred_region
        %s5168 = ssub.s32 %s15, 2
        // Predicated region
        $region57: #{tpu_custom_call.1} parent=55 // pred_check
          %p5169 = pneg %p149
        $region58: #{tpu_custom_call.1} parent=55 // pred_check_branch
          %5171 = sbr.rel (%p5169) target = $region60
        $region59: #{tpu_custom_call.1} parent=55 // pred_region
          %s5172 = sand.u32 %s134, 1
          %s5173 = scalar_lea.sflag [#allocation4], %s5172
          %s5174 = sand.u32 %s134, 1
          %s5175 = smul.addr %s5174, 128
          %s5176 = scalar_lea.vmem [#allocation8], %s5175
          %5177 = dma.done %s5173, 2048
        $region60: #{tpu_custom_call.1} parent=55 // pred_fallthru
          _
      $region56: #{tpu_custom_call.1} parent=5 // pred_fallthru
        _
    $region6: #{tpu_custom_call.1} parent=1 // loop_footer
      %s19 = sadd.s32 1, %s15
    $region7: #{tpu_custom_call.1} parent=1 // loop_footer_branch
      %14 = sbr.rel target = $region3
    $region8: #{tpu_custom_call.1} parent=1 // loop_exit
      _
    %5178 = vsyncpa [#allocation3], 1
    %s5179 = scalar_lea.sflag [#allocation3], 1
    %5180 = vsyncpa %s5179, 1
    %5181 = vsyncpa [#allocation6], 1
    %5182 = vsyncpa [#allocation4], 1
    %s5183 = scalar_lea.sflag [#allocation4], 1
    %5184 = vsyncpa %s5183, 1

</llo_original>
